<compile_context>
chip_gen: v6e
topology: v6e:2x2x1
jax: 0.10.0
libtpu: 0.0.40
codegen_flags: <defaults>
</compile_context>

<pallas_src>
import functools

import jax
import jax.numpy as jnp
from jax.experimental import pallas as pl
from jax.experimental.pallas import tpu as pltpu


def _make_lstm_kernel(num_layers, T, B, H):
    def kernel(x_ref, *rest):
        # rest = [wih_0, whh_0, b_0, ..., wih_{L-1}, whh_{L-1}, b_{L-1},
        #         fc_w, fc_b, out_ref, seq_scr, gx_scr, h_scr, c_scr]
        wrefs = rest[: 3 * num_layers]
        (fc_w_ref, fc_b_ref, out_ref,
         seq_scr, gx_scr, h_scr, c_scr) = rest[3 * num_layers:]

        for l in range(num_layers):
            wih = wrefs[3 * l][...]       # (D_l, 4H)  pre-transposed
            whh = wrefs[3 * l + 1][...]   # (H,   4H)
            b = wrefs[3 * l + 2][...]     # (1,   4H)  (b_ih + b_hh)

            # Hoisted input projection for the whole sequence: one big
            # MXU matmul off the sequential critical path.
            seq_in = x_ref[...] if l == 0 else seq_scr[...]   # (T*B, D_l)
            gx_scr[...] = (
                jnp.dot(seq_in, wih, preferred_element_type=jnp.float32) + b
            )                                                 # (T*B, 4H)

            h_scr[...] = jnp.zeros_like(h_scr)                # (B, H)
            c_scr[...] = jnp.zeros_like(c_scr)                # (B, H)

            is_last_layer = (l == num_layers - 1)

            def step(t, carry):
                h_prev = h_scr[...]
                c_prev = c_scr[...]
                # Only the recurrent matmul remains on the sequential path.
                gates = gx_scr[pl.ds(t * B, B), :] + jnp.dot(
                    h_prev, whh, preferred_element_type=jnp.float32
                )  # (B, 4H), PyTorch gate order: i, f, g, o
                i_g = jax.nn.sigmoid(gates[:, 0 * H:1 * H])
                f_g = jax.nn.sigmoid(gates[:, 1 * H:2 * H])
                g_g = jnp.tanh(gates[:, 2 * H:3 * H])
                o_g = jax.nn.sigmoid(gates[:, 3 * H:4 * H])
                c_new = f_g * c_prev + i_g * g_g
                h_new = o_g * jnp.tanh(c_new)
                h_scr[...] = h_new
                c_scr[...] = c_new
                if not is_last_layer:
                    # layer output feeds the next layer's hoisted projection
                    seq_scr[pl.ds(t * B, B), :] = h_new
                return carry

            jax.lax.fori_loop(0, T, step, 0, unroll=True)

        # fc head on the last-timestep hidden state of the top layer.
        out_ref[...] = (
            jnp.dot(h_scr[...], fc_w_ref[...], preferred_element_type=jnp.float32)
            + fc_b_ref[...]
        )

    return kernel


def my_rnn_forward(x, params, *, num_layers, hidden_features):
    """x: (B, T, D_in) float32 (batch_first, like PyTorch). Returns (B, 4)."""
    B, T, D_in = x.shape
    H = hidden_features

    # Time-major, flattened to 2D: row t*B + b holds sample b at time t.
    x2d = jnp.transpose(x, (1, 0, 2)).reshape(T * B, D_in)

    # Flatten params: per layer (wih_T, whh_T, b), then fc_w_T, fc_b.
    flat_weights = []
    in_specs = [pl.BlockSpec((T * B, D_in), lambda i: (0, 0))]
    for l in range(num_layers):
        wih_t, whh_t, b = params["layers"][l]
        flat_weights += [wih_t, whh_t, b]
        in_specs += [
            pl.BlockSpec(wih_t.shape, lambda i: (0, 0)),
            pl.BlockSpec(whh_t.shape, lambda i: (0, 0)),
            pl.BlockSpec(b.shape, lambda i: (0, 0)),
        ]
    fc_w_t, fc_b = params["fc"]
    flat_weights += [fc_w_t, fc_b]
    in_specs += [
        pl.BlockSpec(fc_w_t.shape, lambda i: (0, 0)),
        pl.BlockSpec(fc_b.shape, lambda i: (0, 0)),
    ]

    kernel = _make_lstm_kernel(num_layers, T, B, H)

    out = pl.pallas_call(
        kernel,
        out_shape=jax.ShapeDtypeStruct((B, 4), jnp.float32),
        grid_spec=pltpu.PrefetchScalarGridSpec(
            num_scalar_prefetch=0,
            grid=(1,),  # whole sequence handled in one invocation
            in_specs=in_specs,
            out_specs=pl.BlockSpec((B, 4), lambda i: (0, 0)),
            scratch_shapes=[
                pltpu.VMEM((T * B, H), jnp.float32),       # seq_scr: layer output
                pltpu.VMEM((T * B, 4 * H), jnp.float32),   # gx_scr: hoisted x-proj
                pltpu.VMEM((B, H), jnp.float32),           # h state
                pltpu.VMEM((B, H), jnp.float32),           # c state
            ],
        ),
        compiler_params=pltpu.CompilerParams(
            # time recurrence is inherently sequential; at larger batch a
            # leading "parallel" batch-tile axis could shard across v7x's 2 TCs
            dimension_semantics=("arbitrary",),
        ),
    )(x2d, *flat_weights)
    return out


def init_params(key, in_features, hidden_features, num_layers):
    """Deterministic init matching PyTorch LSTM/Linear parameter shapes
    (stored pre-transposed for row-major matmuls inside the kernel)."""
    H = hidden_features
    k = 1.0 / jnp.sqrt(jnp.float32(H))
    layers = []
    for l in range(num_layers):
        d_l = in_features if l == 0 else H
        key, k1, k2, k3, k4 = jax.random.split(key, 5)
        wih_t = jax.random.uniform(k1, (d_l, 4 * H), jnp.float32, -k, k)
        whh_t = jax.random.uniform(k2, (H, 4 * H), jnp.float32, -k, k)
        b_ih = jax.random.uniform(k3, (4 * H,), jnp.float32, -k, k)
        b_hh = jax.random.uniform(k4, (4 * H,), jnp.float32, -k, k)
        layers.append((wih_t, whh_t, (b_ih + b_hh).reshape(1, 4 * H)))
    key, k5, k6 = jax.random.split(key, 3)
    kf = 1.0 / jnp.sqrt(jnp.float32(H))
    fc_w_t = jax.random.uniform(k5, (H, 4), jnp.float32, -kf, kf)
    fc_b = jax.random.uniform(k6, (4,), jnp.float32, -kf, kf).reshape(1, 4)
    return {"layers": layers, "fc": (fc_w_t, fc_b)}


def reference_forward(x, params, *, num_layers, hidden_features):
    """Pure-JAX reference (same math) for a correctness check."""
    B, T, _ = x.shape
    H = hidden_features
    inp_seq = x
    for l in range(num_layers):
        wih_t, whh_t, b = params["layers"][l]

        def step(carry, x_t):
            h, c = carry
            g = x_t @ wih_t + h @ whh_t + b
            i = jax.nn.sigmoid(g[:, 0 * H:1 * H])
            f = jax.nn.sigmoid(g[:, 1 * H:2 * H])
            gg = jnp.tanh(g[:, 2 * H:3 * H])
            o = jax.nn.sigmoid(g[:, 3 * H:4 * H])
            c = f * c + i * gg
            h = o * jnp.tanh(c)
            return (h, c), h

        init = (jnp.zeros((B, H), jnp.float32), jnp.zeros((B, H), jnp.float32))
        _, hs = jax.lax.scan(step, init, jnp.transpose(inp_seq, (1, 0, 2)))
        inp_seq = jnp.transpose(hs, (1, 0, 2))
    fc_w_t, fc_b = params["fc"]
    return inp_seq[:, -1, :] @ fc_w_t + fc_b


if __name__ == "__main__":
    B, T, D_in, H, L = 2, 8, 16, 32, 2

    key = jax.random.PRNGKey(0)
    key, kx = jax.random.split(key)
    x = jax.random.normal(kx, (B, T, D_in), dtype=jnp.float32)
    params = init_params(key, D_in, H, L)

    fwd = functools.partial(my_rnn_forward, num_layers=L, hidden_features=H)
    y = jax.block_until_ready(fwd(x, params))
    assert y.shape == (B, 4) and y.dtype == jnp.float32

    y_ref = reference_forward(x, params, num_layers=L, hidden_features=H)
    if not jnp.allclose(y, y_ref, rtol=1e-4, atol=1e-4):
        raise AssertionError("Pallas kernel does not match JAX reference")

    print("KERNEL_OK")
</pallas_src>

<mosaic_0001>
module attributes {stable_mosaic.version = 11 : i64} {
  func.func @kernel(%arg0: i32, %arg1: memref<16x16xf32, #tpu.memory_space<vmem>>, %arg2: memref<16x128xf32, #tpu.memory_space<vmem>>, %arg3: memref<32x128xf32, #tpu.memory_space<vmem>>, %arg4: memref<1x128xf32, #tpu.memory_space<vmem>>, %arg5: memref<32x128xf32, #tpu.memory_space<vmem>>, %arg6: memref<32x128xf32, #tpu.memory_space<vmem>>, %arg7: memref<1x128xf32, #tpu.memory_space<vmem>>, %arg8: memref<32x4xf32, #tpu.memory_space<vmem>>, %arg9: memref<1x4xf32, #tpu.memory_space<vmem>>, %arg10: memref<2x4xf32, #tpu.memory_space<vmem>>, %arg11: memref<16x32xf32, #tpu.memory_space<vmem>>, %arg12: memref<16x128xf32, #tpu.memory_space<vmem>>, %arg13: memref<2x32xf32, #tpu.memory_space<vmem>>, %arg14: memref<2x32xf32, #tpu.memory_space<vmem>>) attributes {dimension_semantics = [#tpu.dimension_semantics<arbitrary>], iteration_bounds = array<i64: 1>, scalar_prefetch = 0 : i64, scratch_operands = 4 : i64, tpu.core_type = #tpu.core_type<tc>, window_params = [{pipeline_mode = #tpu.pipeline_mode<synchronous>, transform_indices = @transform_0, window_bounds = array<i64: 16, 16>}, {pipeline_mode = #tpu.pipeline_mode<synchronous>, transform_indices = @transform_1, window_bounds = array<i64: 16, 128>}, {pipeline_mode = #tpu.pipeline_mode<synchronous>, transform_indices = @transform_2, window_bounds = array<i64: 32, 128>}, {pipeline_mode = #tpu.pipeline_mode<synchronous>, transform_indices = @transform_3, window_bounds = array<i64: 1, 128>}, {pipeline_mode = #tpu.pipeline_mode<synchronous>, transform_indices = @transform_4, window_bounds = array<i64: 32, 128>}, {pipeline_mode = #tpu.pipeline_mode<synchronous>, transform_indices = @transform_5, window_bounds = array<i64: 32, 128>}, {pipeline_mode = #tpu.pipeline_mode<synchronous>, transform_indices = @transform_6, window_bounds = array<i64: 1, 128>}, {pipeline_mode = #tpu.pipeline_mode<synchronous>, transform_indices = @transform_7, window_bounds = array<i64: 32, 4>}, {pipeline_mode = #tpu.pipeline_mode<synchronous>, transform_indices = @transform_8, window_bounds = array<i64: 1, 4>}, {pipeline_mode = #tpu.pipeline_mode<synchronous>, transform_indices = @transform_9, window_bounds = array<i64: 2, 4>}]} {
    %c0 = arith.constant 0 : index
    %c0_0 = arith.constant 0 : index
    %0 = vector.load %arg2[%c0, %c0_0] : memref<16x128xf32, #tpu.memory_space<vmem>>, vector<16x128xf32>
    %c0_1 = arith.constant 0 : index
    %c0_2 = arith.constant 0 : index
    %1 = vector.load %arg3[%c0_1, %c0_2] : memref<32x128xf32, #tpu.memory_space<vmem>>, vector<32x128xf32>
    %c0_3 = arith.constant 0 : index
    %c0_4 = arith.constant 0 : index
    %2 = vector.load %arg4[%c0_3, %c0_4] : memref<1x128xf32, #tpu.memory_space<vmem>>, vector<1x128xf32>
    %c0_5 = arith.constant 0 : index
    %c0_6 = arith.constant 0 : index
    %3 = vector.load %arg1[%c0_5, %c0_6] : memref<16x16xf32, #tpu.memory_space<vmem>>, vector<16x16xf32>
    %cst = arith.constant dense<0.000000e+00> : vector<16x128xf32>
    %4 = tpu.matmul %3, %0, %cst {dimension_numbers = #tpu.dot_dimension_numbers<[1], [0], [0], [1], [0, 0, 1, 1], [], []>} : vector<16x16xf32>, vector<16x128xf32>, vector<16x128xf32> -> vector<16x128xf32>
    %5 = vector.broadcast %2 : vector<1x128xf32> to vector<16x128xf32>
    %6 = arith.addf %4, %5 : vector<16x128xf32>
    %c0_7 = arith.constant 0 : index
    %c0_8 = arith.constant 0 : index
    %7 = vector.load %arg12[%c0_7, %c0_8] : memref<16x128xf32, #tpu.memory_space<vmem>>, vector<16x128xf32>
    tpu.vector_store %arg12[%c0_7, %c0_8], %6 {strides = array<i32>} : memref<16x128xf32, #tpu.memory_space<vmem>>, vector<16x128xf32>,
    %cst_9 = arith.constant 0.000000e+00 : f32
    %8 = vector.broadcast %cst_9 : f32 to vector<2x32xf32>
    %c0_10 = arith.constant 0 : index
    %c0_11 = arith.constant 0 : index
    %9 = vector.load %arg13[%c0_10, %c0_11] : memref<2x32xf32, #tpu.memory_space<vmem>>, vector<2x32xf32>
    tpu.vector_store %arg13[%c0_10, %c0_11], %8 {strides = array<i32>} : memref<2x32xf32, #tpu.memory_space<vmem>>, vector<2x32xf32>,
    %cst_12 = arith.constant 0.000000e+00 : f32
    %10 = vector.broadcast %cst_12 : f32 to vector<2x32xf32>
    %c0_13 = arith.constant 0 : index
    %c0_14 = arith.constant 0 : index
    %11 = vector.load %arg14[%c0_13, %c0_14] : memref<2x32xf32, #tpu.memory_space<vmem>>, vector<2x32xf32>
    tpu.vector_store %arg14[%c0_13, %c0_14], %10 {strides = array<i32>} : memref<2x32xf32, #tpu.memory_space<vmem>>, vector<2x32xf32>,
    %c0_i32 = arith.constant 0 : i32
    %c0_15 = arith.constant 0 : index
    %c0_16 = arith.constant 0 : index
    %12 = vector.load %arg13[%c0_15, %c0_16] : memref<2x32xf32, #tpu.memory_space<vmem>>, vector<2x32xf32>
    %c0_17 = arith.constant 0 : index
    %c0_18 = arith.constant 0 : index
    %13 = vector.load %arg14[%c0_17, %c0_18] : memref<2x32xf32, #tpu.memory_space<vmem>>, vector<2x32xf32>
    %c2_i32 = arith.constant 2 : i32
    %14 = arith.muli %c0_i32, %c2_i32 : i32
    %15 = arith.index_cast %14 : i32 to index
    %c0_19 = arith.constant 0 : index
    %16 = vector.load %arg12[%15, %c0_19] : memref<16x128xf32, #tpu.memory_space<vmem>>, vector<2x128xf32>
    %cst_20 = arith.constant dense<0.000000e+00> : vector<2x128xf32>
    %17 = tpu.matmul %12, %1, %cst_20 {dimension_numbers = #tpu.dot_dimension_numbers<[1], [0], [0], [1], [0, 0, 1, 1], [], []>} : vector<2x32xf32>, vector<32x128xf32>, vector<2x128xf32> -> vector<2x128xf32>
    %18 = arith.addf %16, %17 : vector<2x128xf32>
    %19 = vector.extract_strided_slice %18 {offsets = [0, 0], sizes = [2, 32], strides = [1, 1]} : vector<2x128xf32> to vector<2x32xf32>
    %20 = arith.negf %19 : vector<2x32xf32>
    %21 = math.exp %20 : vector<2x32xf32>
    %cst_21 = arith.constant 1.000000e+00 : f32
    %22 = vector.broadcast %cst_21 : f32 to vector<2x32xf32>
    %23 = arith.addf %22, %21 : vector<2x32xf32>
    %24 = arith.divf %22, %23 : vector<2x32xf32>
    %25 = vector.extract_strided_slice %18 {offsets = [0, 32], sizes = [2, 32], strides = [1, 1]} : vector<2x128xf32> to vector<2x32xf32>
    %26 = arith.negf %25 : vector<2x32xf32>
    %27 = math.exp %26 : vector<2x32xf32>
    %cst_22 = arith.constant 1.000000e+00 : f32
    %28 = vector.broadcast %cst_22 : f32 to vector<2x32xf32>
    %29 = arith.addf %28, %27 : vector<2x32xf32>
    %30 = arith.divf %28, %29 : vector<2x32xf32>
    %31 = vector.extract_strided_slice %18 {offsets = [0, 64], sizes = [2, 32], strides = [1, 1]} : vector<2x128xf32> to vector<2x32xf32>
    %32 = math.tanh %31 : vector<2x32xf32>
    %33 = vector.extract_strided_slice %18 {offsets = [0, 96], sizes = [2, 32], strides = [1, 1]} : vector<2x128xf32> to vector<2x32xf32>
    %34 = arith.negf %33 : vector<2x32xf32>
    %35 = math.exp %34 : vector<2x32xf32>
    %cst_23 = arith.constant 1.000000e+00 : f32
    %36 = vector.broadcast %cst_23 : f32 to vector<2x32xf32>
    %37 = arith.addf %36, %35 : vector<2x32xf32>
    %38 = arith.divf %36, %37 : vector<2x32xf32>
    %39 = arith.mulf %30, %13 : vector<2x32xf32>
    %40 = arith.mulf %24, %32 : vector<2x32xf32>
    %41 = arith.addf %39, %40 : vector<2x32xf32>
    %42 = math.tanh %41 : vector<2x32xf32>
    %43 = arith.mulf %38, %42 : vector<2x32xf32>
    %c0_24 = arith.constant 0 : index
    %c0_25 = arith.constant 0 : index
    %44 = vector.load %arg13[%c0_24, %c0_25] : memref<2x32xf32, #tpu.memory_space<vmem>>, vector<2x32xf32>
    tpu.vector_store %arg13[%c0_24, %c0_25], %43 {strides = array<i32>} : memref<2x32xf32, #tpu.memory_space<vmem>>, vector<2x32xf32>,
    %c0_26 = arith.constant 0 : index
    %c0_27 = arith.constant 0 : index
    %45 = vector.load %arg14[%c0_26, %c0_27] : memref<2x32xf32, #tpu.memory_space<vmem>>, vector<2x32xf32>
    tpu.vector_store %arg14[%c0_26, %c0_27], %41 {strides = array<i32>} : memref<2x32xf32, #tpu.memory_space<vmem>>, vector<2x32xf32>,
    %c2_i32_28 = arith.constant 2 : i32
    %46 = arith.muli %c0_i32, %c2_i32_28 : i32
    %47 = arith.index_cast %46 : i32 to index
    %c0_29 = arith.constant 0 : index
    %48 = vector.load %arg11[%47, %c0_29] : memref<16x32xf32, #tpu.memory_space<vmem>>, vector<2x32xf32>
    tpu.vector_store %arg11[%47, %c0_29], %43 {strides = array<i32>} : memref<16x32xf32, #tpu.memory_space<vmem>>, vector<2x32xf32>,
    %c1_i32 = arith.constant 1 : i32
    %c0_30 = arith.constant 0 : index
    %c0_31 = arith.constant 0 : index
    %49 = vector.load %arg13[%c0_30, %c0_31] : memref<2x32xf32, #tpu.memory_space<vmem>>, vector<2x32xf32>
    %c0_32 = arith.constant 0 : index
    %c0_33 = arith.constant 0 : index
    %50 = vector.load %arg14[%c0_32, %c0_33] : memref<2x32xf32, #tpu.memory_space<vmem>>, vector<2x32xf32>
    %c2_i32_34 = arith.constant 2 : i32
    %51 = arith.muli %c1_i32, %c2_i32_34 : i32
    %52 = arith.index_cast %51 : i32 to index
    %c0_35 = arith.constant 0 : index
    %53 = vector.load %arg12[%52, %c0_35] : memref<16x128xf32, #tpu.memory_space<vmem>>, vector<2x128xf32>
    %cst_36 = arith.constant dense<0.000000e+00> : vector<2x128xf32>
    %54 = tpu.matmul %49, %1, %cst_36 {dimension_numbers = #tpu.dot_dimension_numbers<[1], [0], [0], [1], [0, 0, 1, 1], [], []>} : vector<2x32xf32>, vector<32x128xf32>, vector<2x128xf32> -> vector<2x128xf32>
    %55 = arith.addf %53, %54 : vector<2x128xf32>
    %56 = vector.extract_strided_slice %55 {offsets = [0, 0], sizes = [2, 32], strides = [1, 1]} : vector<2x128xf32> to vector<2x32xf32>
    %57 = arith.negf %56 : vector<2x32xf32>
    %58 = math.exp %57 : vector<2x32xf32>
    %cst_37 = arith.constant 1.000000e+00 : f32
    %59 = vector.broadcast %cst_37 : f32 to vector<2x32xf32>
    %60 = arith.addf %59, %58 : vector<2x32xf32>
    %61 = arith.divf %59, %60 : vector<2x32xf32>
    %62 = vector.extract_strided_slice %55 {offsets = [0, 32], sizes = [2, 32], strides = [1, 1]} : vector<2x128xf32> to vector<2x32xf32>
    %63 = arith.negf %62 : vector<2x32xf32>
    %64 = math.exp %63 : vector<2x32xf32>
    %cst_38 = arith.constant 1.000000e+00 : f32
    %65 = vector.broadcast %cst_38 : f32 to vector<2x32xf32>
    %66 = arith.addf %65, %64 : vector<2x32xf32>
    %67 = arith.divf %65, %66 : vector<2x32xf32>
    %68 = vector.extract_strided_slice %55 {offsets = [0, 64], sizes = [2, 32], strides = [1, 1]} : vector<2x128xf32> to vector<2x32xf32>
    %69 = math.tanh %68 : vector<2x32xf32>
    %70 = vector.extract_strided_slice %55 {offsets = [0, 96], sizes = [2, 32], strides = [1, 1]} : vector<2x128xf32> to vector<2x32xf32>
    %71 = arith.negf %70 : vector<2x32xf32>
    %72 = math.exp %71 : vector<2x32xf32>
    %cst_39 = arith.constant 1.000000e+00 : f32
    %73 = vector.broadcast %cst_39 : f32 to vector<2x32xf32>
    %74 = arith.addf %73, %72 : vector<2x32xf32>
    %75 = arith.divf %73, %74 : vector<2x32xf32>
    %76 = arith.mulf %67, %50 : vector<2x32xf32>
    %77 = arith.mulf %61, %69 : vector<2x32xf32>
    %78 = arith.addf %76, %77 : vector<2x32xf32>
    %79 = math.tanh %78 : vector<2x32xf32>
    %80 = arith.mulf %75, %79 : vector<2x32xf32>
    %c0_40 = arith.constant 0 : index
    %c0_41 = arith.constant 0 : index
    %81 = vector.load %arg13[%c0_40, %c0_41] : memref<2x32xf32, #tpu.memory_space<vmem>>, vector<2x32xf32>
    tpu.vector_store %arg13[%c0_40, %c0_41], %80 {strides = array<i32>} : memref<2x32xf32, #tpu.memory_space<vmem>>, vector<2x32xf32>,
    %c0_42 = arith.constant 0 : index
    %c0_43 = arith.constant 0 : index
    %82 = vector.load %arg14[%c0_42, %c0_43] : memref<2x32xf32, #tpu.memory_space<vmem>>, vector<2x32xf32>
    tpu.vector_store %arg14[%c0_42, %c0_43], %78 {strides = array<i32>} : memref<2x32xf32, #tpu.memory_space<vmem>>, vector<2x32xf32>,
    %c2_i32_44 = arith.constant 2 : i32
    %83 = arith.muli %c1_i32, %c2_i32_44 : i32
    %84 = arith.index_cast %83 : i32 to index
    %c0_45 = arith.constant 0 : index
    %85 = vector.load %arg11[%84, %c0_45] : memref<16x32xf32, #tpu.memory_space<vmem>>, vector<2x32xf32>
    tpu.vector_store %arg11[%84, %c0_45], %80 {strides = array<i32>} : memref<16x32xf32, #tpu.memory_space<vmem>>, vector<2x32xf32>,
    %c2_i32_46 = arith.constant 2 : i32
    %c0_47 = arith.constant 0 : index
    %c0_48 = arith.constant 0 : index
    %86 = vector.load %arg13[%c0_47, %c0_48] : memref<2x32xf32, #tpu.memory_space<vmem>>, vector<2x32xf32>
    %c0_49 = arith.constant 0 : index
    %c0_50 = arith.constant 0 : index
    %87 = vector.load %arg14[%c0_49, %c0_50] : memref<2x32xf32, #tpu.memory_space<vmem>>, vector<2x32xf32>
    %c2_i32_51 = arith.constant 2 : i32
    %88 = arith.muli %c2_i32_46, %c2_i32_51 : i32
    %89 = arith.index_cast %88 : i32 to index
    %c0_52 = arith.constant 0 : index
    %90 = vector.load %arg12[%89, %c0_52] : memref<16x128xf32, #tpu.memory_space<vmem>>, vector<2x128xf32>
    %cst_53 = arith.constant dense<0.000000e+00> : vector<2x128xf32>
    %91 = tpu.matmul %86, %1, %cst_53 {dimension_numbers = #tpu.dot_dimension_numbers<[1], [0], [0], [1], [0, 0, 1, 1], [], []>} : vector<2x32xf32>, vector<32x128xf32>, vector<2x128xf32> -> vector<2x128xf32>
    %92 = arith.addf %90, %91 : vector<2x128xf32>
    %93 = vector.extract_strided_slice %92 {offsets = [0, 0], sizes = [2, 32], strides = [1, 1]} : vector<2x128xf32> to vector<2x32xf32>
    %94 = arith.negf %93 : vector<2x32xf32>
    %95 = math.exp %94 : vector<2x32xf32>
    %cst_54 = arith.constant 1.000000e+00 : f32
    %96 = vector.broadcast %cst_54 : f32 to vector<2x32xf32>
    %97 = arith.addf %96, %95 : vector<2x32xf32>
    %98 = arith.divf %96, %97 : vector<2x32xf32>
    %99 = vector.extract_strided_slice %92 {offsets = [0, 32], sizes = [2, 32], strides = [1, 1]} : vector<2x128xf32> to vector<2x32xf32>
    %100 = arith.negf %99 : vector<2x32xf32>
    %101 = math.exp %100 : vector<2x32xf32>
    %cst_55 = arith.constant 1.000000e+00 : f32
    %102 = vector.broadcast %cst_55 : f32 to vector<2x32xf32>
    %103 = arith.addf %102, %101 : vector<2x32xf32>
    %104 = arith.divf %102, %103 : vector<2x32xf32>
    %105 = vector.extract_strided_slice %92 {offsets = [0, 64], sizes = [2, 32], strides = [1, 1]} : vector<2x128xf32> to vector<2x32xf32>
    %106 = math.tanh %105 : vector<2x32xf32>
    %107 = vector.extract_strided_slice %92 {offsets = [0, 96], sizes = [2, 32], strides = [1, 1]} : vector<2x128xf32> to vector<2x32xf32>
    %108 = arith.negf %107 : vector<2x32xf32>
    %109 = math.exp %108 : vector<2x32xf32>
    %cst_56 = arith.constant 1.000000e+00 : f32
    %110 = vector.broadcast %cst_56 : f32 to vector<2x32xf32>
    %111 = arith.addf %110, %109 : vector<2x32xf32>
    %112 = arith.divf %110, %111 : vector<2x32xf32>
    %113 = arith.mulf %104, %87 : vector<2x32xf32>
    %114 = arith.mulf %98, %106 : vector<2x32xf32>
    %115 = arith.addf %113, %114 : vector<2x32xf32>
    %116 = math.tanh %115 : vector<2x32xf32>
    %117 = arith.mulf %112, %116 : vector<2x32xf32>
    %c0_57 = arith.constant 0 : index
    %c0_58 = arith.constant 0 : index
    %118 = vector.load %arg13[%c0_57, %c0_58] : memref<2x32xf32, #tpu.memory_space<vmem>>, vector<2x32xf32>
    tpu.vector_store %arg13[%c0_57, %c0_58], %117 {strides = array<i32>} : memref<2x32xf32, #tpu.memory_space<vmem>>, vector<2x32xf32>,
    %c0_59 = arith.constant 0 : index
    %c0_60 = arith.constant 0 : index
    %119 = vector.load %arg14[%c0_59, %c0_60] : memref<2x32xf32, #tpu.memory_space<vmem>>, vector<2x32xf32>
    tpu.vector_store %arg14[%c0_59, %c0_60], %115 {strides = array<i32>} : memref<2x32xf32, #tpu.memory_space<vmem>>, vector<2x32xf32>,
    %c2_i32_61 = arith.constant 2 : i32
    %120 = arith.muli %c2_i32_46, %c2_i32_61 : i32
    %121 = arith.index_cast %120 : i32 to index
    %c0_62 = arith.constant 0 : index
    %122 = vector.load %arg11[%121, %c0_62] : memref<16x32xf32, #tpu.memory_space<vmem>>, vector<2x32xf32>
    tpu.vector_store %arg11[%121, %c0_62], %117 {strides = array<i32>} : memref<16x32xf32, #tpu.memory_space<vmem>>, vector<2x32xf32>,
    %c3_i32 = arith.constant 3 : i32
    %c0_63 = arith.constant 0 : index
    %c0_64 = arith.constant 0 : index
    %123 = vector.load %arg13[%c0_63, %c0_64] : memref<2x32xf32, #tpu.memory_space<vmem>>, vector<2x32xf32>
    %c0_65 = arith.constant 0 : index
    %c0_66 = arith.constant 0 : index
    %124 = vector.load %arg14[%c0_65, %c0_66] : memref<2x32xf32, #tpu.memory_space<vmem>>, vector<2x32xf32>
    %c2_i32_67 = arith.constant 2 : i32
    %125 = arith.muli %c3_i32, %c2_i32_67 : i32
    %126 = arith.index_cast %125 : i32 to index
    %c0_68 = arith.constant 0 : index
    %127 = vector.load %arg12[%126, %c0_68] : memref<16x128xf32, #tpu.memory_space<vmem>>, vector<2x128xf32>
    %cst_69 = arith.constant dense<0.000000e+00> : vector<2x128xf32>
    %128 = tpu.matmul %123, %1, %cst_69 {dimension_numbers = #tpu.dot_dimension_numbers<[1], [0], [0], [1], [0, 0, 1, 1], [], []>} : vector<2x32xf32>, vector<32x128xf32>, vector<2x128xf32> -> vector<2x128xf32>
    %129 = arith.addf %127, %128 : vector<2x128xf32>
    %130 = vector.extract_strided_slice %129 {offsets = [0, 0], sizes = [2, 32], strides = [1, 1]} : vector<2x128xf32> to vector<2x32xf32>
    %131 = arith.negf %130 : vector<2x32xf32>
    %132 = math.exp %131 : vector<2x32xf32>
    %cst_70 = arith.constant 1.000000e+00 : f32
    %133 = vector.broadcast %cst_70 : f32 to vector<2x32xf32>
    %134 = arith.addf %133, %132 : vector<2x32xf32>
    %135 = arith.divf %133, %134 : vector<2x32xf32>
    %136 = vector.extract_strided_slice %129 {offsets = [0, 32], sizes = [2, 32], strides = [1, 1]} : vector<2x128xf32> to vector<2x32xf32>
    %137 = arith.negf %136 : vector<2x32xf32>
    %138 = math.exp %137 : vector<2x32xf32>
    %cst_71 = arith.constant 1.000000e+00 : f32
    %139 = vector.broadcast %cst_71 : f32 to vector<2x32xf32>
    %140 = arith.addf %139, %138 : vector<2x32xf32>
    %141 = arith.divf %139, %140 : vector<2x32xf32>
    %142 = vector.extract_strided_slice %129 {offsets = [0, 64], sizes = [2, 32], strides = [1, 1]} : vector<2x128xf32> to vector<2x32xf32>
    %143 = math.tanh %142 : vector<2x32xf32>
    %144 = vector.extract_strided_slice %129 {offsets = [0, 96], sizes = [2, 32], strides = [1, 1]} : vector<2x128xf32> to vector<2x32xf32>
    %145 = arith.negf %144 : vector<2x32xf32>
    %146 = math.exp %145 : vector<2x32xf32>
    %cst_72 = arith.constant 1.000000e+00 : f32
    %147 = vector.broadcast %cst_72 : f32 to vector<2x32xf32>
    %148 = arith.addf %147, %146 : vector<2x32xf32>
    %149 = arith.divf %147, %148 : vector<2x32xf32>
    %150 = arith.mulf %141, %124 : vector<2x32xf32>
    %151 = arith.mulf %135, %143 : vector<2x32xf32>
    %152 = arith.addf %150, %151 : vector<2x32xf32>
    %153 = math.tanh %152 : vector<2x32xf32>
    %154 = arith.mulf %149, %153 : vector<2x32xf32>
    %c0_73 = arith.constant 0 : index
    %c0_74 = arith.constant 0 : index
    %155 = vector.load %arg13[%c0_73, %c0_74] : memref<2x32xf32, #tpu.memory_space<vmem>>, vector<2x32xf32>
    tpu.vector_store %arg13[%c0_73, %c0_74], %154 {strides = array<i32>} : memref<2x32xf32, #tpu.memory_space<vmem>>, vector<2x32xf32>,
    %c0_75 = arith.constant 0 : index
    %c0_76 = arith.constant 0 : index
    %156 = vector.load %arg14[%c0_75, %c0_76] : memref<2x32xf32, #tpu.memory_space<vmem>>, vector<2x32xf32>
    tpu.vector_store %arg14[%c0_75, %c0_76], %152 {strides = array<i32>} : memref<2x32xf32, #tpu.memory_space<vmem>>, vector<2x32xf32>,
    %c2_i32_77 = arith.constant 2 : i32
    %157 = arith.muli %c3_i32, %c2_i32_77 : i32
    %158 = arith.index_cast %157 : i32 to index
    %c0_78 = arith.constant 0 : index
    %159 = vector.load %arg11[%158, %c0_78] : memref<16x32xf32, #tpu.memory_space<vmem>>, vector<2x32xf32>
    tpu.vector_store %arg11[%158, %c0_78], %154 {strides = array<i32>} : memref<16x32xf32, #tpu.memory_space<vmem>>, vector<2x32xf32>,
    %c4_i32 = arith.constant 4 : i32
    %c0_79 = arith.constant 0 : index
    %c0_80 = arith.constant 0 : index
    %160 = vector.load %arg13[%c0_79, %c0_80] : memref<2x32xf32, #tpu.memory_space<vmem>>, vector<2x32xf32>
    %c0_81 = arith.constant 0 : index
    %c0_82 = arith.constant 0 : index
    %161 = vector.load %arg14[%c0_81, %c0_82] : memref<2x32xf32, #tpu.memory_space<vmem>>, vector<2x32xf32>
    %c2_i32_83 = arith.constant 2 : i32
    %162 = arith.muli %c4_i32, %c2_i32_83 : i32
    %163 = arith.index_cast %162 : i32 to index
    %c0_84 = arith.constant 0 : index
    %164 = vector.load %arg12[%163, %c0_84] : memref<16x128xf32, #tpu.memory_space<vmem>>, vector<2x128xf32>
    %cst_85 = arith.constant dense<0.000000e+00> : vector<2x128xf32>
    %165 = tpu.matmul %160, %1, %cst_85 {dimension_numbers = #tpu.dot_dimension_numbers<[1], [0], [0], [1], [0, 0, 1, 1], [], []>} : vector<2x32xf32>, vector<32x128xf32>, vector<2x128xf32> -> vector<2x128xf32>
    %166 = arith.addf %164, %165 : vector<2x128xf32>
    %167 = vector.extract_strided_slice %166 {offsets = [0, 0], sizes = [2, 32], strides = [1, 1]} : vector<2x128xf32> to vector<2x32xf32>
    %168 = arith.negf %167 : vector<2x32xf32>
    %169 = math.exp %168 : vector<2x32xf32>
    %cst_86 = arith.constant 1.000000e+00 : f32
    %170 = vector.broadcast %cst_86 : f32 to vector<2x32xf32>
    %171 = arith.addf %170, %169 : vector<2x32xf32>
    %172 = arith.divf %170, %171 : vector<2x32xf32>
    %173 = vector.extract_strided_slice %166 {offsets = [0, 32], sizes = [2, 32], strides = [1, 1]} : vector<2x128xf32> to vector<2x32xf32>
    %174 = arith.negf %173 : vector<2x32xf32>
    %175 = math.exp %174 : vector<2x32xf32>
    %cst_87 = arith.constant 1.000000e+00 : f32
    %176 = vector.broadcast %cst_87 : f32 to vector<2x32xf32>
    %177 = arith.addf %176, %175 : vector<2x32xf32>
    %178 = arith.divf %176, %177 : vector<2x32xf32>
    %179 = vector.extract_strided_slice %166 {offsets = [0, 64], sizes = [2, 32], strides = [1, 1]} : vector<2x128xf32> to vector<2x32xf32>
    %180 = math.tanh %179 : vector<2x32xf32>
    %181 = vector.extract_strided_slice %166 {offsets = [0, 96], sizes = [2, 32], strides = [1, 1]} : vector<2x128xf32> to vector<2x32xf32>
    %182 = arith.negf %181 : vector<2x32xf32>
    %183 = math.exp %182 : vector<2x32xf32>
    %cst_88 = arith.constant 1.000000e+00 : f32
    %184 = vector.broadcast %cst_88 : f32 to vector<2x32xf32>
    %185 = arith.addf %184, %183 : vector<2x32xf32>
    %186 = arith.divf %184, %185 : vector<2x32xf32>
    %187 = arith.mulf %178, %161 : vector<2x32xf32>
    %188 = arith.mulf %172, %180 : vector<2x32xf32>
    %189 = arith.addf %187, %188 : vector<2x32xf32>
    %190 = math.tanh %189 : vector<2x32xf32>
    %191 = arith.mulf %186, %190 : vector<2x32xf32>
    %c0_89 = arith.constant 0 : index
    %c0_90 = arith.constant 0 : index
    %192 = vector.load %arg13[%c0_89, %c0_90] : memref<2x32xf32, #tpu.memory_space<vmem>>, vector<2x32xf32>
    tpu.vector_store %arg13[%c0_89, %c0_90], %191 {strides = array<i32>} : memref<2x32xf32, #tpu.memory_space<vmem>>, vector<2x32xf32>,
    %c0_91 = arith.constant 0 : index
    %c0_92 = arith.constant 0 : index
    %193 = vector.load %arg14[%c0_91, %c0_92] : memref<2x32xf32, #tpu.memory_space<vmem>>, vector<2x32xf32>
    tpu.vector_store %arg14[%c0_91, %c0_92], %189 {strides = array<i32>} : memref<2x32xf32, #tpu.memory_space<vmem>>, vector<2x32xf32>,
    %c2_i32_93 = arith.constant 2 : i32
    %194 = arith.muli %c4_i32, %c2_i32_93 : i32
    %195 = arith.index_cast %194 : i32 to index
    %c0_94 = arith.constant 0 : index
    %196 = vector.load %arg11[%195, %c0_94] : memref<16x32xf32, #tpu.memory_space<vmem>>, vector<2x32xf32>
    tpu.vector_store %arg11[%195, %c0_94], %191 {strides = array<i32>} : memref<16x32xf32, #tpu.memory_space<vmem>>, vector<2x32xf32>,
    %c5_i32 = arith.constant 5 : i32
    %c0_95 = arith.constant 0 : index
    %c0_96 = arith.constant 0 : index
    %197 = vector.load %arg13[%c0_95, %c0_96] : memref<2x32xf32, #tpu.memory_space<vmem>>, vector<2x32xf32>
    %c0_97 = arith.constant 0 : index
    %c0_98 = arith.constant 0 : index
    %198 = vector.load %arg14[%c0_97, %c0_98] : memref<2x32xf32, #tpu.memory_space<vmem>>, vector<2x32xf32>
    %c2_i32_99 = arith.constant 2 : i32
    %199 = arith.muli %c5_i32, %c2_i32_99 : i32
    %200 = arith.index_cast %199 : i32 to index
    %c0_100 = arith.constant 0 : index
    %201 = vector.load %arg12[%200, %c0_100] : memref<16x128xf32, #tpu.memory_space<vmem>>, vector<2x128xf32>
    %cst_101 = arith.constant dense<0.000000e+00> : vector<2x128xf32>
    %202 = tpu.matmul %197, %1, %cst_101 {dimension_numbers = #tpu.dot_dimension_numbers<[1], [0], [0], [1], [0, 0, 1, 1], [], []>} : vector<2x32xf32>, vector<32x128xf32>, vector<2x128xf32> -> vector<2x128xf32>
    %203 = arith.addf %201, %202 : vector<2x128xf32>
    %204 = vector.extract_strided_slice %203 {offsets = [0, 0], sizes = [2, 32], strides = [1, 1]} : vector<2x128xf32> to vector<2x32xf32>
    %205 = arith.negf %204 : vector<2x32xf32>
    %206 = math.exp %205 : vector<2x32xf32>
    %cst_102 = arith.constant 1.000000e+00 : f32
    %207 = vector.broadcast %cst_102 : f32 to vector<2x32xf32>
    %208 = arith.addf %207, %206 : vector<2x32xf32>
    %209 = arith.divf %207, %208 : vector<2x32xf32>
    %210 = vector.extract_strided_slice %203 {offsets = [0, 32], sizes = [2, 32], strides = [1, 1]} : vector<2x128xf32> to vector<2x32xf32>
    %211 = arith.negf %210 : vector<2x32xf32>
    %212 = math.exp %211 : vector<2x32xf32>
    %cst_103 = arith.constant 1.000000e+00 : f32
    %213 = vector.broadcast %cst_103 : f32 to vector<2x32xf32>
    %214 = arith.addf %213, %212 : vector<2x32xf32>
    %215 = arith.divf %213, %214 : vector<2x32xf32>
    %216 = vector.extract_strided_slice %203 {offsets = [0, 64], sizes = [2, 32], strides = [1, 1]} : vector<2x128xf32> to vector<2x32xf32>
    %217 = math.tanh %216 : vector<2x32xf32>
    %218 = vector.extract_strided_slice %203 {offsets = [0, 96], sizes = [2, 32], strides = [1, 1]} : vector<2x128xf32> to vector<2x32xf32>
    %219 = arith.negf %218 : vector<2x32xf32>
    %220 = math.exp %219 : vector<2x32xf32>
    %cst_104 = arith.constant 1.000000e+00 : f32
    %221 = vector.broadcast %cst_104 : f32 to vector<2x32xf32>
    %222 = arith.addf %221, %220 : vector<2x32xf32>
    %223 = arith.divf %221, %222 : vector<2x32xf32>
    %224 = arith.mulf %215, %198 : vector<2x32xf32>
    %225 = arith.mulf %209, %217 : vector<2x32xf32>
    %226 = arith.addf %224, %225 : vector<2x32xf32>
    %227 = math.tanh %226 : vector<2x32xf32>
    %228 = arith.mulf %223, %227 : vector<2x32xf32>
    %c0_105 = arith.constant 0 : index
    %c0_106 = arith.constant 0 : index
    %229 = vector.load %arg13[%c0_105, %c0_106] : memref<2x32xf32, #tpu.memory_space<vmem>>, vector<2x32xf32>
    tpu.vector_store %arg13[%c0_105, %c0_106], %228 {strides = array<i32>} : memref<2x32xf32, #tpu.memory_space<vmem>>, vector<2x32xf32>,
    %c0_107 = arith.constant 0 : index
    %c0_108 = arith.constant 0 : index
    %230 = vector.load %arg14[%c0_107, %c0_108] : memref<2x32xf32, #tpu.memory_space<vmem>>, vector<2x32xf32>
    tpu.vector_store %arg14[%c0_107, %c0_108], %226 {strides = array<i32>} : memref<2x32xf32, #tpu.memory_space<vmem>>, vector<2x32xf32>,
    %c2_i32_109 = arith.constant 2 : i32
    %231 = arith.muli %c5_i32, %c2_i32_109 : i32
    %232 = arith.index_cast %231 : i32 to index
    %c0_110 = arith.constant 0 : index
    %233 = vector.load %arg11[%232, %c0_110] : memref<16x32xf32, #tpu.memory_space<vmem>>, vector<2x32xf32>
    tpu.vector_store %arg11[%232, %c0_110], %228 {strides = array<i32>} : memref<16x32xf32, #tpu.memory_space<vmem>>, vector<2x32xf32>,
    %c6_i32 = arith.constant 6 : i32
    %c0_111 = arith.constant 0 : index
    %c0_112 = arith.constant 0 : index
    %234 = vector.load %arg13[%c0_111, %c0_112] : memref<2x32xf32, #tpu.memory_space<vmem>>, vector<2x32xf32>
    %c0_113 = arith.constant 0 : index
    %c0_114 = arith.constant 0 : index
    %235 = vector.load %arg14[%c0_113, %c0_114] : memref<2x32xf32, #tpu.memory_space<vmem>>, vector<2x32xf32>
    %c2_i32_115 = arith.constant 2 : i32
    %236 = arith.muli %c6_i32, %c2_i32_115 : i32
    %237 = arith.index_cast %236 : i32 to index
    %c0_116 = arith.constant 0 : index
    %238 = vector.load %arg12[%237, %c0_116] : memref<16x128xf32, #tpu.memory_space<vmem>>, vector<2x128xf32>
    %cst_117 = arith.constant dense<0.000000e+00> : vector<2x128xf32>
    %239 = tpu.matmul %234, %1, %cst_117 {dimension_numbers = #tpu.dot_dimension_numbers<[1], [0], [0], [1], [0, 0, 1, 1], [], []>} : vector<2x32xf32>, vector<32x128xf32>, vector<2x128xf32> -> vector<2x128xf32>
    %240 = arith.addf %238, %239 : vector<2x128xf32>
    %241 = vector.extract_strided_slice %240 {offsets = [0, 0], sizes = [2, 32], strides = [1, 1]} : vector<2x128xf32> to vector<2x32xf32>
    %242 = arith.negf %241 : vector<2x32xf32>
    %243 = math.exp %242 : vector<2x32xf32>
    %cst_118 = arith.constant 1.000000e+00 : f32
    %244 = vector.broadcast %cst_118 : f32 to vector<2x32xf32>
    %245 = arith.addf %244, %243 : vector<2x32xf32>
    %246 = arith.divf %244, %245 : vector<2x32xf32>
    %247 = vector.extract_strided_slice %240 {offsets = [0, 32], sizes = [2, 32], strides = [1, 1]} : vector<2x128xf32> to vector<2x32xf32>
    %248 = arith.negf %247 : vector<2x32xf32>
    %249 = math.exp %248 : vector<2x32xf32>
    %cst_119 = arith.constant 1.000000e+00 : f32
    %250 = vector.broadcast %cst_119 : f32 to vector<2x32xf32>
    %251 = arith.addf %250, %249 : vector<2x32xf32>
    %252 = arith.divf %250, %251 : vector<2x32xf32>
    %253 = vector.extract_strided_slice %240 {offsets = [0, 64], sizes = [2, 32], strides = [1, 1]} : vector<2x128xf32> to vector<2x32xf32>
    %254 = math.tanh %253 : vector<2x32xf32>
    %255 = vector.extract_strided_slice %240 {offsets = [0, 96], sizes = [2, 32], strides = [1, 1]} : vector<2x128xf32> to vector<2x32xf32>
    %256 = arith.negf %255 : vector<2x32xf32>
    %257 = math.exp %256 : vector<2x32xf32>
    %cst_120 = arith.constant 1.000000e+00 : f32
    %258 = vector.broadcast %cst_120 : f32 to vector<2x32xf32>
    %259 = arith.addf %258, %257 : vector<2x32xf32>
    %260 = arith.divf %258, %259 : vector<2x32xf32>
    %261 = arith.mulf %252, %235 : vector<2x32xf32>
    %262 = arith.mulf %246, %254 : vector<2x32xf32>
    %263 = arith.addf %261, %262 : vector<2x32xf32>
    %264 = math.tanh %263 : vector<2x32xf32>
    %265 = arith.mulf %260, %264 : vector<2x32xf32>
    %c0_121 = arith.constant 0 : index
    %c0_122 = arith.constant 0 : index
    %266 = vector.load %arg13[%c0_121, %c0_122] : memref<2x32xf32, #tpu.memory_space<vmem>>, vector<2x32xf32>
    tpu.vector_store %arg13[%c0_121, %c0_122], %265 {strides = array<i32>} : memref<2x32xf32, #tpu.memory_space<vmem>>, vector<2x32xf32>,
    %c0_123 = arith.constant 0 : index
    %c0_124 = arith.constant 0 : index
    %267 = vector.load %arg14[%c0_123, %c0_124] : memref<2x32xf32, #tpu.memory_space<vmem>>, vector<2x32xf32>
    tpu.vector_store %arg14[%c0_123, %c0_124], %263 {strides = array<i32>} : memref<2x32xf32, #tpu.memory_space<vmem>>, vector<2x32xf32>,
    %c2_i32_125 = arith.constant 2 : i32
    %268 = arith.muli %c6_i32, %c2_i32_125 : i32
    %269 = arith.index_cast %268 : i32 to index
    %c0_126 = arith.constant 0 : index
    %270 = vector.load %arg11[%269, %c0_126] : memref<16x32xf32, #tpu.memory_space<vmem>>, vector<2x32xf32>
    tpu.vector_store %arg11[%269, %c0_126], %265 {strides = array<i32>} : memref<16x32xf32, #tpu.memory_space<vmem>>, vector<2x32xf32>,
    %c7_i32 = arith.constant 7 : i32
    %c0_127 = arith.constant 0 : index
    %c0_128 = arith.constant 0 : index
    %271 = vector.load %arg13[%c0_127, %c0_128] : memref<2x32xf32, #tpu.memory_space<vmem>>, vector<2x32xf32>
    %c0_129 = arith.constant 0 : index
    %c0_130 = arith.constant 0 : index
    %272 = vector.load %arg14[%c0_129, %c0_130] : memref<2x32xf32, #tpu.memory_space<vmem>>, vector<2x32xf32>
    %c2_i32_131 = arith.constant 2 : i32
    %273 = arith.muli %c7_i32, %c2_i32_131 : i32
    %274 = arith.index_cast %273 : i32 to index
    %c0_132 = arith.constant 0 : index
    %275 = vector.load %arg12[%274, %c0_132] : memref<16x128xf32, #tpu.memory_space<vmem>>, vector<2x128xf32>
    %cst_133 = arith.constant dense<0.000000e+00> : vector<2x128xf32>
    %276 = tpu.matmul %271, %1, %cst_133 {dimension_numbers = #tpu.dot_dimension_numbers<[1], [0], [0], [1], [0, 0, 1, 1], [], []>} : vector<2x32xf32>, vector<32x128xf32>, vector<2x128xf32> -> vector<2x128xf32>
    %277 = arith.addf %275, %276 : vector<2x128xf32>
    %278 = vector.extract_strided_slice %277 {offsets = [0, 0], sizes = [2, 32], strides = [1, 1]} : vector<2x128xf32> to vector<2x32xf32>
    %279 = arith.negf %278 : vector<2x32xf32>
    %280 = math.exp %279 : vector<2x32xf32>
    %cst_134 = arith.constant 1.000000e+00 : f32
    %281 = vector.broadcast %cst_134 : f32 to vector<2x32xf32>
    %282 = arith.addf %281, %280 : vector<2x32xf32>
    %283 = arith.divf %281, %282 : vector<2x32xf32>
    %284 = vector.extract_strided_slice %277 {offsets = [0, 32], sizes = [2, 32], strides = [1, 1]} : vector<2x128xf32> to vector<2x32xf32>
    %285 = arith.negf %284 : vector<2x32xf32>
    %286 = math.exp %285 : vector<2x32xf32>
    %cst_135 = arith.constant 1.000000e+00 : f32
    %287 = vector.broadcast %cst_135 : f32 to vector<2x32xf32>
    %288 = arith.addf %287, %286 : vector<2x32xf32>
    %289 = arith.divf %287, %288 : vector<2x32xf32>
    %290 = vector.extract_strided_slice %277 {offsets = [0, 64], sizes = [2, 32], strides = [1, 1]} : vector<2x128xf32> to vector<2x32xf32>
    %291 = math.tanh %290 : vector<2x32xf32>
    %292 = vector.extract_strided_slice %277 {offsets = [0, 96], sizes = [2, 32], strides = [1, 1]} : vector<2x128xf32> to vector<2x32xf32>
    %293 = arith.negf %292 : vector<2x32xf32>
    %294 = math.exp %293 : vector<2x32xf32>
    %cst_136 = arith.constant 1.000000e+00 : f32
    %295 = vector.broadcast %cst_136 : f32 to vector<2x32xf32>
    %296 = arith.addf %295, %294 : vector<2x32xf32>
    %297 = arith.divf %295, %296 : vector<2x32xf32>
    %298 = arith.mulf %289, %272 : vector<2x32xf32>
    %299 = arith.mulf %283, %291 : vector<2x32xf32>
    %300 = arith.addf %298, %299 : vector<2x32xf32>
    %301 = math.tanh %300 : vector<2x32xf32>
    %302 = arith.mulf %297, %301 : vector<2x32xf32>
    %c0_137 = arith.constant 0 : index
    %c0_138 = arith.constant 0 : index
    %303 = vector.load %arg13[%c0_137, %c0_138] : memref<2x32xf32, #tpu.memory_space<vmem>>, vector<2x32xf32>
    tpu.vector_store %arg13[%c0_137, %c0_138], %302 {strides = array<i32>} : memref<2x32xf32, #tpu.memory_space<vmem>>, vector<2x32xf32>,
    %c0_139 = arith.constant 0 : index
    %c0_140 = arith.constant 0 : index
    %304 = vector.load %arg14[%c0_139, %c0_140] : memref<2x32xf32, #tpu.memory_space<vmem>>, vector<2x32xf32>
    tpu.vector_store %arg14[%c0_139, %c0_140], %300 {strides = array<i32>} : memref<2x32xf32, #tpu.memory_space<vmem>>, vector<2x32xf32>,
    %c2_i32_141 = arith.constant 2 : i32
    %305 = arith.muli %c7_i32, %c2_i32_141 : i32
    %306 = arith.index_cast %305 : i32 to index
    %c0_142 = arith.constant 0 : index
    %307 = vector.load %arg11[%306, %c0_142] : memref<16x32xf32, #tpu.memory_space<vmem>>, vector<2x32xf32>
    tpu.vector_store %arg11[%306, %c0_142], %302 {strides = array<i32>} : memref<16x32xf32, #tpu.memory_space<vmem>>, vector<2x32xf32>,
    %c8_i32 = arith.constant 8 : i32
    %c0_143 = arith.constant 0 : index
    %c0_144 = arith.constant 0 : index
    %308 = vector.load %arg5[%c0_143, %c0_144] : memref<32x128xf32, #tpu.memory_space<vmem>>, vector<32x128xf32>
    %c0_145 = arith.constant 0 : index
    %c0_146 = arith.constant 0 : index
    %309 = vector.load %arg6[%c0_145, %c0_146] : memref<32x128xf32, #tpu.memory_space<vmem>>, vector<32x128xf32>
    %c0_147 = arith.constant 0 : index
    %c0_148 = arith.constant 0 : index
    %310 = vector.load %arg7[%c0_147, %c0_148] : memref<1x128xf32, #tpu.memory_space<vmem>>, vector<1x128xf32>
    %c0_149 = arith.constant 0 : index
    %c0_150 = arith.constant 0 : index
    %311 = vector.load %arg11[%c0_149, %c0_150] : memref<16x32xf32, #tpu.memory_space<vmem>>, vector<16x32xf32>
    %cst_151 = arith.constant dense<0.000000e+00> : vector<16x128xf32>
    %312 = tpu.matmul %311, %308, %cst_151 {dimension_numbers = #tpu.dot_dimension_numbers<[1], [0], [0], [1], [0, 0, 1, 1], [], []>} : vector<16x32xf32>, vector<32x128xf32>, vector<16x128xf32> -> vector<16x128xf32>
    %313 = vector.broadcast %310 : vector<1x128xf32> to vector<16x128xf32>
    %314 = arith.addf %312, %313 : vector<16x128xf32>
    %c0_152 = arith.constant 0 : index
    %c0_153 = arith.constant 0 : index
    %315 = vector.load %arg12[%c0_152, %c0_153] : memref<16x128xf32, #tpu.memory_space<vmem>>, vector<16x128xf32>
    tpu.vector_store %arg12[%c0_152, %c0_153], %314 {strides = array<i32>} : memref<16x128xf32, #tpu.memory_space<vmem>>, vector<16x128xf32>,
    %cst_154 = arith.constant 0.000000e+00 : f32
    %316 = vector.broadcast %cst_154 : f32 to vector<2x32xf32>
    %c0_155 = arith.constant 0 : index
    %c0_156 = arith.constant 0 : index
    %317 = vector.load %arg13[%c0_155, %c0_156] : memref<2x32xf32, #tpu.memory_space<vmem>>, vector<2x32xf32>
    tpu.vector_store %arg13[%c0_155, %c0_156], %316 {strides = array<i32>} : memref<2x32xf32, #tpu.memory_space<vmem>>, vector<2x32xf32>,
    %cst_157 = arith.constant 0.000000e+00 : f32
    %318 = vector.broadcast %cst_157 : f32 to vector<2x32xf32>
    %c0_158 = arith.constant 0 : index
    %c0_159 = arith.constant 0 : index
    %319 = vector.load %arg14[%c0_158, %c0_159] : memref<2x32xf32, #tpu.memory_space<vmem>>, vector<2x32xf32>
    tpu.vector_store %arg14[%c0_158, %c0_159], %318 {strides = array<i32>} : memref<2x32xf32, #tpu.memory_space<vmem>>, vector<2x32xf32>,
    %c0_i32_160 = arith.constant 0 : i32
    %c0_161 = arith.constant 0 : index
    %c0_162 = arith.constant 0 : index
    %320 = vector.load %arg13[%c0_161, %c0_162] : memref<2x32xf32, #tpu.memory_space<vmem>>, vector<2x32xf32>
    %c0_163 = arith.constant 0 : index
    %c0_164 = arith.constant 0 : index
    %321 = vector.load %arg14[%c0_163, %c0_164] : memref<2x32xf32, #tpu.memory_space<vmem>>, vector<2x32xf32>
    %c2_i32_165 = arith.constant 2 : i32
    %322 = arith.muli %c0_i32_160, %c2_i32_165 : i32
    %323 = arith.index_cast %322 : i32 to index
    %c0_166 = arith.constant 0 : index
    %324 = vector.load %arg12[%323, %c0_166] : memref<16x128xf32, #tpu.memory_space<vmem>>, vector<2x128xf32>
    %cst_167 = arith.constant dense<0.000000e+00> : vector<2x128xf32>
    %325 = tpu.matmul %320, %309, %cst_167 {dimension_numbers = #tpu.dot_dimension_numbers<[1], [0], [0], [1], [0, 0, 1, 1], [], []>} : vector<2x32xf32>, vector<32x128xf32>, vector<2x128xf32> -> vector<2x128xf32>
    %326 = arith.addf %324, %325 : vector<2x128xf32>
    %327 = vector.extract_strided_slice %326 {offsets = [0, 0], sizes = [2, 32], strides = [1, 1]} : vector<2x128xf32> to vector<2x32xf32>
    %328 = arith.negf %327 : vector<2x32xf32>
    %329 = math.exp %328 : vector<2x32xf32>
    %cst_168 = arith.constant 1.000000e+00 : f32
    %330 = vector.broadcast %cst_168 : f32 to vector<2x32xf32>
    %331 = arith.addf %330, %329 : vector<2x32xf32>
    %332 = arith.divf %330, %331 : vector<2x32xf32>
    %333 = vector.extract_strided_slice %326 {offsets = [0, 32], sizes = [2, 32], strides = [1, 1]} : vector<2x128xf32> to vector<2x32xf32>
    %334 = arith.negf %333 : vector<2x32xf32>
    %335 = math.exp %334 : vector<2x32xf32>
    %cst_169 = arith.constant 1.000000e+00 : f32
    %336 = vector.broadcast %cst_169 : f32 to vector<2x32xf32>
    %337 = arith.addf %336, %335 : vector<2x32xf32>
    %338 = arith.divf %336, %337 : vector<2x32xf32>
    %339 = vector.extract_strided_slice %326 {offsets = [0, 64], sizes = [2, 32], strides = [1, 1]} : vector<2x128xf32> to vector<2x32xf32>
    %340 = math.tanh %339 : vector<2x32xf32>
    %341 = vector.extract_strided_slice %326 {offsets = [0, 96], sizes = [2, 32], strides = [1, 1]} : vector<2x128xf32> to vector<2x32xf32>
    %342 = arith.negf %341 : vector<2x32xf32>
    %343 = math.exp %342 : vector<2x32xf32>
    %cst_170 = arith.constant 1.000000e+00 : f32
    %344 = vector.broadcast %cst_170 : f32 to vector<2x32xf32>
    %345 = arith.addf %344, %343 : vector<2x32xf32>
    %346 = arith.divf %344, %345 : vector<2x32xf32>
    %347 = arith.mulf %338, %321 : vector<2x32xf32>
    %348 = arith.mulf %332, %340 : vector<2x32xf32>
    %349 = arith.addf %347, %348 : vector<2x32xf32>
    %350 = math.tanh %349 : vector<2x32xf32>
    %351 = arith.mulf %346, %350 : vector<2x32xf32>
    %c0_171 = arith.constant 0 : index
    %c0_172 = arith.constant 0 : index
    %352 = vector.load %arg13[%c0_171, %c0_172] : memref<2x32xf32, #tpu.memory_space<vmem>>, vector<2x32xf32>
    tpu.vector_store %arg13[%c0_171, %c0_172], %351 {strides = array<i32>} : memref<2x32xf32, #tpu.memory_space<vmem>>, vector<2x32xf32>,
    %c0_173 = arith.constant 0 : index
    %c0_174 = arith.constant 0 : index
    %353 = vector.load %arg14[%c0_173, %c0_174] : memref<2x32xf32, #tpu.memory_space<vmem>>, vector<2x32xf32>
    tpu.vector_store %arg14[%c0_173, %c0_174], %349 {strides = array<i32>} : memref<2x32xf32, #tpu.memory_space<vmem>>, vector<2x32xf32>,
    %c1_i32_175 = arith.constant 1 : i32
    %c0_176 = arith.constant 0 : index
    %c0_177 = arith.constant 0 : index
    %354 = vector.load %arg13[%c0_176, %c0_177] : memref<2x32xf32, #tpu.memory_space<vmem>>, vector<2x32xf32>
    %c0_178 = arith.constant 0 : index
    %c0_179 = arith.constant 0 : index
    %355 = vector.load %arg14[%c0_178, %c0_179] : memref<2x32xf32, #tpu.memory_space<vmem>>, vector<2x32xf32>
    %c2_i32_180 = arith.constant 2 : i32
    %356 = arith.muli %c1_i32_175, %c2_i32_180 : i32
    %357 = arith.index_cast %356 : i32 to index
    %c0_181 = arith.constant 0 : index
    %358 = vector.load %arg12[%357, %c0_181] : memref<16x128xf32, #tpu.memory_space<vmem>>, vector<2x128xf32>
    %cst_182 = arith.constant dense<0.000000e+00> : vector<2x128xf32>
    %359 = tpu.matmul %354, %309, %cst_182 {dimension_numbers = #tpu.dot_dimension_numbers<[1], [0], [0], [1], [0, 0, 1, 1], [], []>} : vector<2x32xf32>, vector<32x128xf32>, vector<2x128xf32> -> vector<2x128xf32>
    %360 = arith.addf %358, %359 : vector<2x128xf32>
    %361 = vector.extract_strided_slice %360 {offsets = [0, 0], sizes = [2, 32], strides = [1, 1]} : vector<2x128xf32> to vector<2x32xf32>
    %362 = arith.negf %361 : vector<2x32xf32>
    %363 = math.exp %362 : vector<2x32xf32>
    %cst_183 = arith.constant 1.000000e+00 : f32
    %364 = vector.broadcast %cst_183 : f32 to vector<2x32xf32>
    %365 = arith.addf %364, %363 : vector<2x32xf32>
    %366 = arith.divf %364, %365 : vector<2x32xf32>
    %367 = vector.extract_strided_slice %360 {offsets = [0, 32], sizes = [2, 32], strides = [1, 1]} : vector<2x128xf32> to vector<2x32xf32>
    %368 = arith.negf %367 : vector<2x32xf32>
    %369 = math.exp %368 : vector<2x32xf32>
    %cst_184 = arith.constant 1.000000e+00 : f32
    %370 = vector.broadcast %cst_184 : f32 to vector<2x32xf32>
    %371 = arith.addf %370, %369 : vector<2x32xf32>
    %372 = arith.divf %370, %371 : vector<2x32xf32>
    %373 = vector.extract_strided_slice %360 {offsets = [0, 64], sizes = [2, 32], strides = [1, 1]} : vector<2x128xf32> to vector<2x32xf32>
    %374 = math.tanh %373 : vector<2x32xf32>
    %375 = vector.extract_strided_slice %360 {offsets = [0, 96], sizes = [2, 32], strides = [1, 1]} : vector<2x128xf32> to vector<2x32xf32>
    %376 = arith.negf %375 : vector<2x32xf32>
    %377 = math.exp %376 : vector<2x32xf32>
    %cst_185 = arith.constant 1.000000e+00 : f32
    %378 = vector.broadcast %cst_185 : f32 to vector<2x32xf32>
    %379 = arith.addf %378, %377 : vector<2x32xf32>
    %380 = arith.divf %378, %379 : vector<2x32xf32>
    %381 = arith.mulf %372, %355 : vector<2x32xf32>
    %382 = arith.mulf %366, %374 : vector<2x32xf32>
    %383 = arith.addf %381, %382 : vector<2x32xf32>
    %384 = math.tanh %383 : vector<2x32xf32>
    %385 = arith.mulf %380, %384 : vector<2x32xf32>
    %c0_186 = arith.constant 0 : index
    %c0_187 = arith.constant 0 : index
    %386 = vector.load %arg13[%c0_186, %c0_187] : memref<2x32xf32, #tpu.memory_space<vmem>>, vector<2x32xf32>
    tpu.vector_store %arg13[%c0_186, %c0_187], %385 {strides = array<i32>} : memref<2x32xf32, #tpu.memory_space<vmem>>, vector<2x32xf32>,
    %c0_188 = arith.constant 0 : index
    %c0_189 = arith.constant 0 : index
    %387 = vector.load %arg14[%c0_188, %c0_189] : memref<2x32xf32, #tpu.memory_space<vmem>>, vector<2x32xf32>
    tpu.vector_store %arg14[%c0_188, %c0_189], %383 {strides = array<i32>} : memref<2x32xf32, #tpu.memory_space<vmem>>, vector<2x32xf32>,
    %c2_i32_190 = arith.constant 2 : i32
    %c0_191 = arith.constant 0 : index
    %c0_192 = arith.constant 0 : index
    %388 = vector.load %arg13[%c0_191, %c0_192] : memref<2x32xf32, #tpu.memory_space<vmem>>, vector<2x32xf32>
    %c0_193 = arith.constant 0 : index
    %c0_194 = arith.constant 0 : index
    %389 = vector.load %arg14[%c0_193, %c0_194] : memref<2x32xf32, #tpu.memory_space<vmem>>, vector<2x32xf32>
    %c2_i32_195 = arith.constant 2 : i32
    %390 = arith.muli %c2_i32_190, %c2_i32_195 : i32
    %391 = arith.index_cast %390 : i32 to index
    %c0_196 = arith.constant 0 : index
    %392 = vector.load %arg12[%391, %c0_196] : memref<16x128xf32, #tpu.memory_space<vmem>>, vector<2x128xf32>
    %cst_197 = arith.constant dense<0.000000e+00> : vector<2x128xf32>
    %393 = tpu.matmul %388, %309, %cst_197 {dimension_numbers = #tpu.dot_dimension_numbers<[1], [0], [0], [1], [0, 0, 1, 1], [], []>} : vector<2x32xf32>, vector<32x128xf32>, vector<2x128xf32> -> vector<2x128xf32>
    %394 = arith.addf %392, %393 : vector<2x128xf32>
    %395 = vector.extract_strided_slice %394 {offsets = [0, 0], sizes = [2, 32], strides = [1, 1]} : vector<2x128xf32> to vector<2x32xf32>
    %396 = arith.negf %395 : vector<2x32xf32>
    %397 = math.exp %396 : vector<2x32xf32>
    %cst_198 = arith.constant 1.000000e+00 : f32
    %398 = vector.broadcast %cst_198 : f32 to vector<2x32xf32>
    %399 = arith.addf %398, %397 : vector<2x32xf32>
    %400 = arith.divf %398, %399 : vector<2x32xf32>
    %401 = vector.extract_strided_slice %394 {offsets = [0, 32], sizes = [2, 32], strides = [1, 1]} : vector<2x128xf32> to vector<2x32xf32>
    %402 = arith.negf %401 : vector<2x32xf32>
    %403 = math.exp %402 : vector<2x32xf32>
    %cst_199 = arith.constant 1.000000e+00 : f32
    %404 = vector.broadcast %cst_199 : f32 to vector<2x32xf32>
    %405 = arith.addf %404, %403 : vector<2x32xf32>
    %406 = arith.divf %404, %405 : vector<2x32xf32>
    %407 = vector.extract_strided_slice %394 {offsets = [0, 64], sizes = [2, 32], strides = [1, 1]} : vector<2x128xf32> to vector<2x32xf32>
    %408 = math.tanh %407 : vector<2x32xf32>
    %409 = vector.extract_strided_slice %394 {offsets = [0, 96], sizes = [2, 32], strides = [1, 1]} : vector<2x128xf32> to vector<2x32xf32>
    %410 = arith.negf %409 : vector<2x32xf32>
    %411 = math.exp %410 : vector<2x32xf32>
    %cst_200 = arith.constant 1.000000e+00 : f32
    %412 = vector.broadcast %cst_200 : f32 to vector<2x32xf32>
    %413 = arith.addf %412, %411 : vector<2x32xf32>
    %414 = arith.divf %412, %413 : vector<2x32xf32>
    %415 = arith.mulf %406, %389 : vector<2x32xf32>
    %416 = arith.mulf %400, %408 : vector<2x32xf32>
    %417 = arith.addf %415, %416 : vector<2x32xf32>
    %418 = math.tanh %417 : vector<2x32xf32>
    %419 = arith.mulf %414, %418 : vector<2x32xf32>
    %c0_201 = arith.constant 0 : index
    %c0_202 = arith.constant 0 : index
    %420 = vector.load %arg13[%c0_201, %c0_202] : memref<2x32xf32, #tpu.memory_space<vmem>>, vector<2x32xf32>
    tpu.vector_store %arg13[%c0_201, %c0_202], %419 {strides = array<i32>} : memref<2x32xf32, #tpu.memory_space<vmem>>, vector<2x32xf32>,
    %c0_203 = arith.constant 0 : index
    %c0_204 = arith.constant 0 : index
    %421 = vector.load %arg14[%c0_203, %c0_204] : memref<2x32xf32, #tpu.memory_space<vmem>>, vector<2x32xf32>
    tpu.vector_store %arg14[%c0_203, %c0_204], %417 {strides = array<i32>} : memref<2x32xf32, #tpu.memory_space<vmem>>, vector<2x32xf32>,
    %c3_i32_205 = arith.constant 3 : i32
    %c0_206 = arith.constant 0 : index
    %c0_207 = arith.constant 0 : index
    %422 = vector.load %arg13[%c0_206, %c0_207] : memref<2x32xf32, #tpu.memory_space<vmem>>, vector<2x32xf32>
    %c0_208 = arith.constant 0 : index
    %c0_209 = arith.constant 0 : index
    %423 = vector.load %arg14[%c0_208, %c0_209] : memref<2x32xf32, #tpu.memory_space<vmem>>, vector<2x32xf32>
    %c2_i32_210 = arith.constant 2 : i32
    %424 = arith.muli %c3_i32_205, %c2_i32_210 : i32
    %425 = arith.index_cast %424 : i32 to index
    %c0_211 = arith.constant 0 : index
    %426 = vector.load %arg12[%425, %c0_211] : memref<16x128xf32, #tpu.memory_space<vmem>>, vector<2x128xf32>
    %cst_212 = arith.constant dense<0.000000e+00> : vector<2x128xf32>
    %427 = tpu.matmul %422, %309, %cst_212 {dimension_numbers = #tpu.dot_dimension_numbers<[1], [0], [0], [1], [0, 0, 1, 1], [], []>} : vector<2x32xf32>, vector<32x128xf32>, vector<2x128xf32> -> vector<2x128xf32>
    %428 = arith.addf %426, %427 : vector<2x128xf32>
    %429 = vector.extract_strided_slice %428 {offsets = [0, 0], sizes = [2, 32], strides = [1, 1]} : vector<2x128xf32> to vector<2x32xf32>
    %430 = arith.negf %429 : vector<2x32xf32>
    %431 = math.exp %430 : vector<2x32xf32>
    %cst_213 = arith.constant 1.000000e+00 : f32
    %432 = vector.broadcast %cst_213 : f32 to vector<2x32xf32>
    %433 = arith.addf %432, %431 : vector<2x32xf32>
    %434 = arith.divf %432, %433 : vector<2x32xf32>
    %435 = vector.extract_strided_slice %428 {offsets = [0, 32], sizes = [2, 32], strides = [1, 1]} : vector<2x128xf32> to vector<2x32xf32>
    %436 = arith.negf %435 : vector<2x32xf32>
    %437 = math.exp %436 : vector<2x32xf32>
    %cst_214 = arith.constant 1.000000e+00 : f32
    %438 = vector.broadcast %cst_214 : f32 to vector<2x32xf32>
    %439 = arith.addf %438, %437 : vector<2x32xf32>
    %440 = arith.divf %438, %439 : vector<2x32xf32>
    %441 = vector.extract_strided_slice %428 {offsets = [0, 64], sizes = [2, 32], strides = [1, 1]} : vector<2x128xf32> to vector<2x32xf32>
    %442 = math.tanh %441 : vector<2x32xf32>
    %443 = vector.extract_strided_slice %428 {offsets = [0, 96], sizes = [2, 32], strides = [1, 1]} : vector<2x128xf32> to vector<2x32xf32>
    %444 = arith.negf %443 : vector<2x32xf32>
    %445 = math.exp %444 : vector<2x32xf32>
    %cst_215 = arith.constant 1.000000e+00 : f32
    %446 = vector.broadcast %cst_215 : f32 to vector<2x32xf32>
    %447 = arith.addf %446, %445 : vector<2x32xf32>
    %448 = arith.divf %446, %447 : vector<2x32xf32>
    %449 = arith.mulf %440, %423 : vector<2x32xf32>
    %450 = arith.mulf %434, %442 : vector<2x32xf32>
    %451 = arith.addf %449, %450 : vector<2x32xf32>
    %452 = math.tanh %451 : vector<2x32xf32>
    %453 = arith.mulf %448, %452 : vector<2x32xf32>
    %c0_216 = arith.constant 0 : index
    %c0_217 = arith.constant 0 : index
    %454 = vector.load %arg13[%c0_216, %c0_217] : memref<2x32xf32, #tpu.memory_space<vmem>>, vector<2x32xf32>
    tpu.vector_store %arg13[%c0_216, %c0_217], %453 {strides = array<i32>} : memref<2x32xf32, #tpu.memory_space<vmem>>, vector<2x32xf32>,
    %c0_218 = arith.constant 0 : index
    %c0_219 = arith.constant 0 : index
    %455 = vector.load %arg14[%c0_218, %c0_219] : memref<2x32xf32, #tpu.memory_space<vmem>>, vector<2x32xf32>
    tpu.vector_store %arg14[%c0_218, %c0_219], %451 {strides = array<i32>} : memref<2x32xf32, #tpu.memory_space<vmem>>, vector<2x32xf32>,
    %c4_i32_220 = arith.constant 4 : i32
    %c0_221 = arith.constant 0 : index
    %c0_222 = arith.constant 0 : index
    %456 = vector.load %arg13[%c0_221, %c0_222] : memref<2x32xf32, #tpu.memory_space<vmem>>, vector<2x32xf32>
    %c0_223 = arith.constant 0 : index
    %c0_224 = arith.constant 0 : index
    %457 = vector.load %arg14[%c0_223, %c0_224] : memref<2x32xf32, #tpu.memory_space<vmem>>, vector<2x32xf32>
    %c2_i32_225 = arith.constant 2 : i32
    %458 = arith.muli %c4_i32_220, %c2_i32_225 : i32
    %459 = arith.index_cast %458 : i32 to index
    %c0_226 = arith.constant 0 : index
    %460 = vector.load %arg12[%459, %c0_226] : memref<16x128xf32, #tpu.memory_space<vmem>>, vector<2x128xf32>
    %cst_227 = arith.constant dense<0.000000e+00> : vector<2x128xf32>
    %461 = tpu.matmul %456, %309, %cst_227 {dimension_numbers = #tpu.dot_dimension_numbers<[1], [0], [0], [1], [0, 0, 1, 1], [], []>} : vector<2x32xf32>, vector<32x128xf32>, vector<2x128xf32> -> vector<2x128xf32>
    %462 = arith.addf %460, %461 : vector<2x128xf32>
    %463 = vector.extract_strided_slice %462 {offsets = [0, 0], sizes = [2, 32], strides = [1, 1]} : vector<2x128xf32> to vector<2x32xf32>
    %464 = arith.negf %463 : vector<2x32xf32>
    %465 = math.exp %464 : vector<2x32xf32>
    %cst_228 = arith.constant 1.000000e+00 : f32
    %466 = vector.broadcast %cst_228 : f32 to vector<2x32xf32>
    %467 = arith.addf %466, %465 : vector<2x32xf32>
    %468 = arith.divf %466, %467 : vector<2x32xf32>
    %469 = vector.extract_strided_slice %462 {offsets = [0, 32], sizes = [2, 32], strides = [1, 1]} : vector<2x128xf32> to vector<2x32xf32>
    %470 = arith.negf %469 : vector<2x32xf32>
    %471 = math.exp %470 : vector<2x32xf32>
    %cst_229 = arith.constant 1.000000e+00 : f32
    %472 = vector.broadcast %cst_229 : f32 to vector<2x32xf32>
    %473 = arith.addf %472, %471 : vector<2x32xf32>
    %474 = arith.divf %472, %473 : vector<2x32xf32>
    %475 = vector.extract_strided_slice %462 {offsets = [0, 64], sizes = [2, 32], strides = [1, 1]} : vector<2x128xf32> to vector<2x32xf32>
    %476 = math.tanh %475 : vector<2x32xf32>
    %477 = vector.extract_strided_slice %462 {offsets = [0, 96], sizes = [2, 32], strides = [1, 1]} : vector<2x128xf32> to vector<2x32xf32>
    %478 = arith.negf %477 : vector<2x32xf32>
    %479 = math.exp %478 : vector<2x32xf32>
    %cst_230 = arith.constant 1.000000e+00 : f32
    %480 = vector.broadcast %cst_230 : f32 to vector<2x32xf32>
    %481 = arith.addf %480, %479 : vector<2x32xf32>
    %482 = arith.divf %480, %481 : vector<2x32xf32>
    %483 = arith.mulf %474, %457 : vector<2x32xf32>
    %484 = arith.mulf %468, %476 : vector<2x32xf32>
    %485 = arith.addf %483, %484 : vector<2x32xf32>
    %486 = math.tanh %485 : vector<2x32xf32>
    %487 = arith.mulf %482, %486 : vector<2x32xf32>
    %c0_231 = arith.constant 0 : index
    %c0_232 = arith.constant 0 : index
    %488 = vector.load %arg13[%c0_231, %c0_232] : memref<2x32xf32, #tpu.memory_space<vmem>>, vector<2x32xf32>
    tpu.vector_store %arg13[%c0_231, %c0_232], %487 {strides = array<i32>} : memref<2x32xf32, #tpu.memory_space<vmem>>, vector<2x32xf32>,
    %c0_233 = arith.constant 0 : index
    %c0_234 = arith.constant 0 : index
    %489 = vector.load %arg14[%c0_233, %c0_234] : memref<2x32xf32, #tpu.memory_space<vmem>>, vector<2x32xf32>
    tpu.vector_store %arg14[%c0_233, %c0_234], %485 {strides = array<i32>} : memref<2x32xf32, #tpu.memory_space<vmem>>, vector<2x32xf32>,
    %c5_i32_235 = arith.constant 5 : i32
    %c0_236 = arith.constant 0 : index
    %c0_237 = arith.constant 0 : index
    %490 = vector.load %arg13[%c0_236, %c0_237] : memref<2x32xf32, #tpu.memory_space<vmem>>, vector<2x32xf32>
    %c0_238 = arith.constant 0 : index
    %c0_239 = arith.constant 0 : index
    %491 = vector.load %arg14[%c0_238, %c0_239] : memref<2x32xf32, #tpu.memory_space<vmem>>, vector<2x32xf32>
    %c2_i32_240 = arith.constant 2 : i32
    %492 = arith.muli %c5_i32_235, %c2_i32_240 : i32
    %493 = arith.index_cast %492 : i32 to index
    %c0_241 = arith.constant 0 : index
    %494 = vector.load %arg12[%493, %c0_241] : memref<16x128xf32, #tpu.memory_space<vmem>>, vector<2x128xf32>
    %cst_242 = arith.constant dense<0.000000e+00> : vector<2x128xf32>
    %495 = tpu.matmul %490, %309, %cst_242 {dimension_numbers = #tpu.dot_dimension_numbers<[1], [0], [0], [1], [0, 0, 1, 1], [], []>} : vector<2x32xf32>, vector<32x128xf32>, vector<2x128xf32> -> vector<2x128xf32>
    %496 = arith.addf %494, %495 : vector<2x128xf32>
    %497 = vector.extract_strided_slice %496 {offsets = [0, 0], sizes = [2, 32], strides = [1, 1]} : vector<2x128xf32> to vector<2x32xf32>
    %498 = arith.negf %497 : vector<2x32xf32>
    %499 = math.exp %498 : vector<2x32xf32>
    %cst_243 = arith.constant 1.000000e+00 : f32
    %500 = vector.broadcast %cst_243 : f32 to vector<2x32xf32>
    %501 = arith.addf %500, %499 : vector<2x32xf32>
    %502 = arith.divf %500, %501 : vector<2x32xf32>
    %503 = vector.extract_strided_slice %496 {offsets = [0, 32], sizes = [2, 32], strides = [1, 1]} : vector<2x128xf32> to vector<2x32xf32>
    %504 = arith.negf %503 : vector<2x32xf32>
    %505 = math.exp %504 : vector<2x32xf32>
    %cst_244 = arith.constant 1.000000e+00 : f32
    %506 = vector.broadcast %cst_244 : f32 to vector<2x32xf32>
    %507 = arith.addf %506, %505 : vector<2x32xf32>
    %508 = arith.divf %506, %507 : vector<2x32xf32>
    %509 = vector.extract_strided_slice %496 {offsets = [0, 64], sizes = [2, 32], strides = [1, 1]} : vector<2x128xf32> to vector<2x32xf32>
    %510 = math.tanh %509 : vector<2x32xf32>
    %511 = vector.extract_strided_slice %496 {offsets = [0, 96], sizes = [2, 32], strides = [1, 1]} : vector<2x128xf32> to vector<2x32xf32>
    %512 = arith.negf %511 : vector<2x32xf32>
    %513 = math.exp %512 : vector<2x32xf32>
    %cst_245 = arith.constant 1.000000e+00 : f32
    %514 = vector.broadcast %cst_245 : f32 to vector<2x32xf32>
    %515 = arith.addf %514, %513 : vector<2x32xf32>
    %516 = arith.divf %514, %515 : vector<2x32xf32>
    %517 = arith.mulf %508, %491 : vector<2x32xf32>
    %518 = arith.mulf %502, %510 : vector<2x32xf32>
    %519 = arith.addf %517, %518 : vector<2x32xf32>
    %520 = math.tanh %519 : vector<2x32xf32>
    %521 = arith.mulf %516, %520 : vector<2x32xf32>
    %c0_246 = arith.constant 0 : index
    %c0_247 = arith.constant 0 : index
    %522 = vector.load %arg13[%c0_246, %c0_247] : memref<2x32xf32, #tpu.memory_space<vmem>>, vector<2x32xf32>
    tpu.vector_store %arg13[%c0_246, %c0_247], %521 {strides = array<i32>} : memref<2x32xf32, #tpu.memory_space<vmem>>, vector<2x32xf32>,
    %c0_248 = arith.constant 0 : index
    %c0_249 = arith.constant 0 : index
    %523 = vector.load %arg14[%c0_248, %c0_249] : memref<2x32xf32, #tpu.memory_space<vmem>>, vector<2x32xf32>
    tpu.vector_store %arg14[%c0_248, %c0_249], %519 {strides = array<i32>} : memref<2x32xf32, #tpu.memory_space<vmem>>, vector<2x32xf32>,
    %c6_i32_250 = arith.constant 6 : i32
    %c0_251 = arith.constant 0 : index
    %c0_252 = arith.constant 0 : index
    %524 = vector.load %arg13[%c0_251, %c0_252] : memref<2x32xf32, #tpu.memory_space<vmem>>, vector<2x32xf32>
    %c0_253 = arith.constant 0 : index
    %c0_254 = arith.constant 0 : index
    %525 = vector.load %arg14[%c0_253, %c0_254] : memref<2x32xf32, #tpu.memory_space<vmem>>, vector<2x32xf32>
    %c2_i32_255 = arith.constant 2 : i32
    %526 = arith.muli %c6_i32_250, %c2_i32_255 : i32
    %527 = arith.index_cast %526 : i32 to index
    %c0_256 = arith.constant 0 : index
    %528 = vector.load %arg12[%527, %c0_256] : memref<16x128xf32, #tpu.memory_space<vmem>>, vector<2x128xf32>
    %cst_257 = arith.constant dense<0.000000e+00> : vector<2x128xf32>
    %529 = tpu.matmul %524, %309, %cst_257 {dimension_numbers = #tpu.dot_dimension_numbers<[1], [0], [0], [1], [0, 0, 1, 1], [], []>} : vector<2x32xf32>, vector<32x128xf32>, vector<2x128xf32> -> vector<2x128xf32>
    %530 = arith.addf %528, %529 : vector<2x128xf32>
    %531 = vector.extract_strided_slice %530 {offsets = [0, 0], sizes = [2, 32], strides = [1, 1]} : vector<2x128xf32> to vector<2x32xf32>
    %532 = arith.negf %531 : vector<2x32xf32>
    %533 = math.exp %532 : vector<2x32xf32>
    %cst_258 = arith.constant 1.000000e+00 : f32
    %534 = vector.broadcast %cst_258 : f32 to vector<2x32xf32>
    %535 = arith.addf %534, %533 : vector<2x32xf32>
    %536 = arith.divf %534, %535 : vector<2x32xf32>
    %537 = vector.extract_strided_slice %530 {offsets = [0, 32], sizes = [2, 32], strides = [1, 1]} : vector<2x128xf32> to vector<2x32xf32>
    %538 = arith.negf %537 : vector<2x32xf32>
    %539 = math.exp %538 : vector<2x32xf32>
    %cst_259 = arith.constant 1.000000e+00 : f32
    %540 = vector.broadcast %cst_259 : f32 to vector<2x32xf32>
    %541 = arith.addf %540, %539 : vector<2x32xf32>
    %542 = arith.divf %540, %541 : vector<2x32xf32>
    %543 = vector.extract_strided_slice %530 {offsets = [0, 64], sizes = [2, 32], strides = [1, 1]} : vector<2x128xf32> to vector<2x32xf32>
    %544 = math.tanh %543 : vector<2x32xf32>
    %545 = vector.extract_strided_slice %530 {offsets = [0, 96], sizes = [2, 32], strides = [1, 1]} : vector<2x128xf32> to vector<2x32xf32>
    %546 = arith.negf %545 : vector<2x32xf32>
    %547 = math.exp %546 : vector<2x32xf32>
    %cst_260 = arith.constant 1.000000e+00 : f32
    %548 = vector.broadcast %cst_260 : f32 to vector<2x32xf32>
    %549 = arith.addf %548, %547 : vector<2x32xf32>
    %550 = arith.divf %548, %549 : vector<2x32xf32>
    %551 = arith.mulf %542, %525 : vector<2x32xf32>
    %552 = arith.mulf %536, %544 : vector<2x32xf32>
    %553 = arith.addf %551, %552 : vector<2x32xf32>
    %554 = math.tanh %553 : vector<2x32xf32>
    %555 = arith.mulf %550, %554 : vector<2x32xf32>
    %c0_261 = arith.constant 0 : index
    %c0_262 = arith.constant 0 : index
    %556 = vector.load %arg13[%c0_261, %c0_262] : memref<2x32xf32, #tpu.memory_space<vmem>>, vector<2x32xf32>
    tpu.vector_store %arg13[%c0_261, %c0_262], %555 {strides = array<i32>} : memref<2x32xf32, #tpu.memory_space<vmem>>, vector<2x32xf32>,
    %c0_263 = arith.constant 0 : index
    %c0_264 = arith.constant 0 : index
    %557 = vector.load %arg14[%c0_263, %c0_264] : memref<2x32xf32, #tpu.memory_space<vmem>>, vector<2x32xf32>
    tpu.vector_store %arg14[%c0_263, %c0_264], %553 {strides = array<i32>} : memref<2x32xf32, #tpu.memory_space<vmem>>, vector<2x32xf32>,
    %c7_i32_265 = arith.constant 7 : i32
    %c0_266 = arith.constant 0 : index
    %c0_267 = arith.constant 0 : index
    %558 = vector.load %arg13[%c0_266, %c0_267] : memref<2x32xf32, #tpu.memory_space<vmem>>, vector<2x32xf32>
    %c0_268 = arith.constant 0 : index
    %c0_269 = arith.constant 0 : index
    %559 = vector.load %arg14[%c0_268, %c0_269] : memref<2x32xf32, #tpu.memory_space<vmem>>, vector<2x32xf32>
    %c2_i32_270 = arith.constant 2 : i32
    %560 = arith.muli %c7_i32_265, %c2_i32_270 : i32
    %561 = arith.index_cast %560 : i32 to index
    %c0_271 = arith.constant 0 : index
    %562 = vector.load %arg12[%561, %c0_271] : memref<16x128xf32, #tpu.memory_space<vmem>>, vector<2x128xf32>
    %cst_272 = arith.constant dense<0.000000e+00> : vector<2x128xf32>
    %563 = tpu.matmul %558, %309, %cst_272 {dimension_numbers = #tpu.dot_dimension_numbers<[1], [0], [0], [1], [0, 0, 1, 1], [], []>} : vector<2x32xf32>, vector<32x128xf32>, vector<2x128xf32> -> vector<2x128xf32>
    %564 = arith.addf %562, %563 : vector<2x128xf32>
    %565 = vector.extract_strided_slice %564 {offsets = [0, 0], sizes = [2, 32], strides = [1, 1]} : vector<2x128xf32> to vector<2x32xf32>
    %566 = arith.negf %565 : vector<2x32xf32>
    %567 = math.exp %566 : vector<2x32xf32>
    %cst_273 = arith.constant 1.000000e+00 : f32
    %568 = vector.broadcast %cst_273 : f32 to vector<2x32xf32>
    %569 = arith.addf %568, %567 : vector<2x32xf32>
    %570 = arith.divf %568, %569 : vector<2x32xf32>
    %571 = vector.extract_strided_slice %564 {offsets = [0, 32], sizes = [2, 32], strides = [1, 1]} : vector<2x128xf32> to vector<2x32xf32>
    %572 = arith.negf %571 : vector<2x32xf32>
    %573 = math.exp %572 : vector<2x32xf32>
    %cst_274 = arith.constant 1.000000e+00 : f32
    %574 = vector.broadcast %cst_274 : f32 to vector<2x32xf32>
    %575 = arith.addf %574, %573 : vector<2x32xf32>
    %576 = arith.divf %574, %575 : vector<2x32xf32>
    %577 = vector.extract_strided_slice %564 {offsets = [0, 64], sizes = [2, 32], strides = [1, 1]} : vector<2x128xf32> to vector<2x32xf32>
    %578 = math.tanh %577 : vector<2x32xf32>
    %579 = vector.extract_strided_slice %564 {offsets = [0, 96], sizes = [2, 32], strides = [1, 1]} : vector<2x128xf32> to vector<2x32xf32>
    %580 = arith.negf %579 : vector<2x32xf32>
    %581 = math.exp %580 : vector<2x32xf32>
    %cst_275 = arith.constant 1.000000e+00 : f32
    %582 = vector.broadcast %cst_275 : f32 to vector<2x32xf32>
    %583 = arith.addf %582, %581 : vector<2x32xf32>
    %584 = arith.divf %582, %583 : vector<2x32xf32>
    %585 = arith.mulf %576, %559 : vector<2x32xf32>
    %586 = arith.mulf %570, %578 : vector<2x32xf32>
    %587 = arith.addf %585, %586 : vector<2x32xf32>
    %588 = math.tanh %587 : vector<2x32xf32>
    %589 = arith.mulf %584, %588 : vector<2x32xf32>
    %c0_276 = arith.constant 0 : index
    %c0_277 = arith.constant 0 : index
    %590 = vector.load %arg13[%c0_276, %c0_277] : memref<2x32xf32, #tpu.memory_space<vmem>>, vector<2x32xf32>
    tpu.vector_store %arg13[%c0_276, %c0_277], %589 {strides = array<i32>} : memref<2x32xf32, #tpu.memory_space<vmem>>, vector<2x32xf32>,
    %c0_278 = arith.constant 0 : index
    %c0_279 = arith.constant 0 : index
    %591 = vector.load %arg14[%c0_278, %c0_279] : memref<2x32xf32, #tpu.memory_space<vmem>>, vector<2x32xf32>
    tpu.vector_store %arg14[%c0_278, %c0_279], %587 {strides = array<i32>} : memref<2x32xf32, #tpu.memory_space<vmem>>, vector<2x32xf32>,
    %c8_i32_280 = arith.constant 8 : i32
    %c0_281 = arith.constant 0 : index
    %c0_282 = arith.constant 0 : index
    %592 = vector.load %arg13[%c0_281, %c0_282] : memref<2x32xf32, #tpu.memory_space<vmem>>, vector<2x32xf32>
    %c0_283 = arith.constant 0 : index
    %c0_284 = arith.constant 0 : index
    %593 = vector.load %arg8[%c0_283, %c0_284] : memref<32x4xf32, #tpu.memory_space<vmem>>, vector<32x4xf32>
    %cst_285 = arith.constant dense<0.000000e+00> : vector<2x4xf32>
    %594 = tpu.matmul %592, %593, %cst_285 {dimension_numbers = #tpu.dot_dimension_numbers<[1], [0], [0], [1], [0, 0, 1, 1], [], []>} : vector<2x32xf32>, vector<32x4xf32>, vector<2x4xf32> -> vector<2x4xf32>
    %c0_286 = arith.constant 0 : index
    %c0_287 = arith.constant 0 : index
    %595 = vector.load %arg9[%c0_286, %c0_287] : memref<1x4xf32, #tpu.memory_space<vmem>>, vector<1x4xf32>
    %596 = vector.broadcast %595 : vector<1x4xf32> to vector<2x4xf32>
    %597 = arith.addf %594, %596 : vector<2x4xf32>
    %c0_288 = arith.constant 0 : index
    %c0_289 = arith.constant 0 : index
    %598 = vector.load %arg10[%c0_288, %c0_289] : memref<2x4xf32, #tpu.memory_space<vmem>>, vector<2x4xf32>
    tpu.vector_store %arg10[%c0_288, %c0_289], %597 {strides = array<i32>} : memref<2x4xf32, #tpu.memory_space<vmem>>, vector<2x4xf32>,
    return
  }
  func.func @transform_0(%arg0: i32) -> (i32, i32) {
    %c0_i32 = arith.constant 0 : i32
    %c0_i32_0 = arith.constant 0 : i32
    %c0_i32_1 = arith.constant 0 : i32
    return %c0_i32, %c0_i32_0 : i32, i32
  }
  func.func @transform_1(%arg0: i32) -> (i32, i32) {
    %c0_i32 = arith.constant 0 : i32
    %c0_i32_0 = arith.constant 0 : i32
    %c0_i32_1 = arith.constant 0 : i32
    return %c0_i32, %c0_i32_0 : i32, i32
  }
  func.func @transform_2(%arg0: i32) -> (i32, i32) {
    %c0_i32 = arith.constant 0 : i32
    %c0_i32_0 = arith.constant 0 : i32
    %c0_i32_1 = arith.constant 0 : i32
    return %c0_i32, %c0_i32_0 : i32, i32
  }
  func.func @transform_3(%arg0: i32) -> (i32, i32) {
    %c0_i32 = arith.constant 0 : i32
    %c0_i32_0 = arith.constant 0 : i32
    %c0_i32_1 = arith.constant 0 : i32
    return %c0_i32, %c0_i32_0 : i32, i32
  }
  func.func @transform_4(%arg0: i32) -> (i32, i32) {
    %c0_i32 = arith.constant 0 : i32
    %c0_i32_0 = arith.constant 0 : i32
    %c0_i32_1 = arith.constant 0 : i32
    return %c0_i32, %c0_i32_0 : i32, i32
  }
  func.func @transform_5(%arg0: i32) -> (i32, i32) {
    %c0_i32 = arith.constant 0 : i32
    %c0_i32_0 = arith.constant 0 : i32
    %c0_i32_1 = arith.constant 0 : i32
    return %c0_i32, %c0_i32_0 : i32, i32
  }
  func.func @transform_6(%arg0: i32) -> (i32, i32) {
    %c0_i32 = arith.constant 0 : i32
    %c0_i32_0 = arith.constant 0 : i32
    %c0_i32_1 = arith.constant 0 : i32
    return %c0_i32, %c0_i32_0 : i32, i32
  }
  func.func @transform_7(%arg0: i32) -> (i32, i32) {
    %c0_i32 = arith.constant 0 : i32
    %c0_i32_0 = arith.constant 0 : i32
    %c0_i32_1 = arith.constant 0 : i32
    return %c0_i32, %c0_i32_0 : i32, i32
  }
  func.func @transform_8(%arg0: i32) -> (i32, i32) {
    %c0_i32 = arith.constant 0 : i32
    %c0_i32_0 = arith.constant 0 : i32
    %c0_i32_1 = arith.constant 0 : i32
    return %c0_i32, %c0_i32_0 : i32, i32
  }
  func.func @transform_9(%arg0: i32) -> (i32, i32) {
    %c0_i32 = arith.constant 0 : i32
    %c0_i32_0 = arith.constant 0 : i32
    %c0_i32_1 = arith.constant 0 : i32
    return %c0_i32, %c0_i32_0 : i32, i32
  }
}

</mosaic_0001>

<llo_original>
// kernel: tpu_custom_call.1
$region0: #{tpu_custom_call.1}
  #allocation0 [shape = 'u32[]', space=smem, size = 0x4, offset = 0x4, fixed_abs, tag = 'smem constant byte address 0x4 - core index']
  #allocation1 [shape = 'u32[144,128]{1,0:T(1,128)}', space=vmem, size = 0x12000, scoped, tag = 'internal scratch']
  #allocation2 [shape = 'f32[16,32]{1,0:T(8,128)}', space=vmem, size = 0x2000, scoped, tag = 'scratch operand']
  #allocation3 [shape = 'f32[16,128]{1,0:T(8,128)}', space=vmem, size = 0x2000, scoped, tag = 'scratch operand']
  #allocation4 [shape = 'f32[2,32]{1,0:T(2,128)}', space=vmem, size = 0x400, scoped, tag = 'scratch operand']
  #allocation5 [shape = 'f32[2,32]{1,0:T(2,128)}', space=vmem, size = 0x400, scoped, tag = 'scratch operand']
  %s0 = inlined_call_operand.hbm [shape: f32[16,16], index: 0, kind: input, shape index: {}]
  %s1 = inlined_call_operand.hbm [shape: f32[16,128], index: 1, kind: input, shape index: {}]
  %s2 = inlined_call_operand.vmem [shape: f32[32,128], index: 2, kind: input, shape index: {}]
  %s3 = inlined_call_operand.vmem [shape: f32[1,128], index: 3, kind: input, shape index: {}]
  %s4 = inlined_call_operand.hbm [shape: f32[32,128], index: 4, kind: input, shape index: {}]
  %s5 = inlined_call_operand.hbm [shape: f32[32,128], index: 5, kind: input, shape index: {}]
  %s6 = inlined_call_operand.vmem [shape: f32[1,128], index: 6, kind: input, shape index: {}]
  %s7 = inlined_call_operand.vmem [shape: f32[32,4], index: 7, kind: input, shape index: {}]
  %s8 = inlined_call_operand.vmem [shape: f32[1,4], index: 8, kind: input, shape index: {}]
  %s9 = inlined_call_operand.hbm [shape: f32[2,4], index: 9, kind: output, shape index: {}]
  %s10 = sld [smem:[#allocation0]]
  $region62: #{tpu_custom_call.1} parent=0
    _
  %s12 = ssub.s32 1, %s10
  %s13 = scalar_select 0, %s12, %s10
  $region1: #{tpu_custom_call.1} parent=0
    #allocation6 [shape = 'u8[8192]{0}', space=vmem, size = 0x2000, scoped, tag = 'input window, operand 0, single buffered']
    #allocation7 [shape = 's32[1]{0}', space=sflag, size = 0x4, scoped, tag = 'scoped memory for tpu_custom_call.1']
    #allocation8 [shape = 's32[1]{0}', space=sflag, size = 0x4, scoped, tag = 'scoped memory for tpu_custom_call.1']
    #allocation9 [shape = 'u8[8192]{0}', space=vmem, size = 0x2000, scoped, tag = 'input window, operand 1, single buffered']
    #allocation10 [shape = 's32[1]{0}', space=sflag, size = 0x4, scoped, tag = 'scoped memory for tpu_custom_call.1']
    #allocation11 [shape = 'u8[16384]{0}', space=vmem, size = 0x4000, scoped, tag = 'input window, operand 4, single buffered']
    #allocation12 [shape = 'u8[16384]{0}', space=vmem, size = 0x4000, scoped, tag = 'input window, operand 5, single buffered']
    #allocation13 [shape = 's32[1]{0}', space=sflag, size = 0x4, scoped, tag = 'scoped memory for tpu_custom_call.1']
    #allocation14 [shape = 'u8[1024]{0}', space=vmem, size = 0x400, scoped, tag = 'output window, operand 0, single buffered']
    %14 = vsyncpa [#allocation7], 0
    %15 = vsyncpa [#allocation10], 0
    %16 = vsyncpa [#allocation13], 0
    %17 = vsyncpa [#allocation8], 0
    // Predicated region
    $region2: #{tpu_custom_call.1} parent=1 // pred_check
      _
    $region3: #{tpu_custom_call.1} parent=1 // pred_check_branch
      %19 = sbr.rel (0) target = $region5
    $region4: #{tpu_custom_call.1} parent=1 // pred_region
      %s21 = ssub.s32 256, 256
      %22 = vsyncadd [#allocation7], %s21
      %s23 = sshll.u32 [#allocation6], 4
      %s24 = int_to_ptr.vmem [resolvable:$true] %s23
      %29 = dma.hbm_to_vmem [thread:$0]  %s0, 256, %s24, [#allocation7], 128, 128, 8
    $region5: #{tpu_custom_call.1} parent=1 // pred_fallthru
      _
    // Predicated region
    $region6: #{tpu_custom_call.1} parent=1 // pred_check
      _
    $region7: #{tpu_custom_call.1} parent=1 // pred_check_branch
      %31 = sbr.rel (0) target = $region9
    $region8: #{tpu_custom_call.1} parent=1 // pred_region
      %s33 = ssub.s32 256, 256
      %34 = vsyncadd [#allocation10], %s33
      %s35 = sshll.u32 [#allocation9], 4
      %s36 = int_to_ptr.vmem [resolvable:$true] %s35
      %41 = dma.hbm_to_vmem [thread:$0]  %s1, 256, %s36, [#allocation10], 128, 128, 8
    $region9: #{tpu_custom_call.1} parent=1 // pred_fallthru
      _
    // Predicated region
    $region10: #{tpu_custom_call.1} parent=1 // pred_check
      _
    $region11: #{tpu_custom_call.1} parent=1 // pred_check_branch
      %43 = sbr.rel (0) target = $region13
    $region12: #{tpu_custom_call.1} parent=1 // pred_region
      _
    $region13: #{tpu_custom_call.1} parent=1 // pred_fallthru
      _
    // Predicated region
    $region14: #{tpu_custom_call.1} parent=1 // pred_check
      _
    $region15: #{tpu_custom_call.1} parent=1 // pred_check_branch
      %45 = sbr.rel (0) target = $region17
    $region16: #{tpu_custom_call.1} parent=1 // pred_region
      _
    $region17: #{tpu_custom_call.1} parent=1 // pred_fallthru
      _
    // Predicated region
    $region18: #{tpu_custom_call.1} parent=1 // pred_check
      _
    $region19: #{tpu_custom_call.1} parent=1 // pred_check_branch
      %47 = sbr.rel (0) target = $region21
    $region20: #{tpu_custom_call.1} parent=1 // pred_region
      %s49 = ssub.s32 512, 512
      %50 = vsyncadd [#allocation10], %s49
      %s51 = sshll.u32 [#allocation11], 4
      %s52 = int_to_ptr.vmem [resolvable:$true] %s51
      %57 = dma.hbm_to_vmem [thread:$0]  %s4, 512, %s52, [#allocation10], 128, 128, 8
    $region21: #{tpu_custom_call.1} parent=1 // pred_fallthru
      _
    // Predicated region
    $region22: #{tpu_custom_call.1} parent=1 // pred_check
      _
    $region23: #{tpu_custom_call.1} parent=1 // pred_check_branch
      %59 = sbr.rel (0) target = $region25
    $region24: #{tpu_custom_call.1} parent=1 // pred_region
      %s61 = ssub.s32 512, 512
      %62 = vsyncadd [#allocation13], %s61
      %s63 = sshll.u32 [#allocation12], 4
      %s64 = int_to_ptr.vmem [resolvable:$true] %s63
      %69 = dma.hbm_to_vmem [thread:$0]  %s5, 512, %s64, [#allocation13], 128, 128, 8
    $region25: #{tpu_custom_call.1} parent=1 // pred_fallthru
      _
    // Predicated region
    $region26: #{tpu_custom_call.1} parent=1 // pred_check
      _
    $region27: #{tpu_custom_call.1} parent=1 // pred_check_branch
      %71 = sbr.rel (0) target = $region29
    $region28: #{tpu_custom_call.1} parent=1 // pred_region
      _
    $region29: #{tpu_custom_call.1} parent=1 // pred_fallthru
      _
    // Predicated region
    $region30: #{tpu_custom_call.1} parent=1 // pred_check
      _
    $region31: #{tpu_custom_call.1} parent=1 // pred_check_branch
      %73 = sbr.rel (0) target = $region33
    $region32: #{tpu_custom_call.1} parent=1 // pred_region
      _
    $region33: #{tpu_custom_call.1} parent=1 // pred_fallthru
      _
    // Predicated region
    $region34: #{tpu_custom_call.1} parent=1 // pred_check
      _
    $region35: #{tpu_custom_call.1} parent=1 // pred_check_branch
      %75 = sbr.rel (0) target = $region37
    $region36: #{tpu_custom_call.1} parent=1 // pred_region
      _
    $region37: #{tpu_custom_call.1} parent=1 // pred_fallthru
      _
    // Predicated region
    $region38: #{tpu_custom_call.1} parent=1 // pred_check
      _
    $region39: #{tpu_custom_call.1} parent=1 // pred_check_branch
      %77 = sbr.rel (0) target = $region41
    $region40: #{tpu_custom_call.1} parent=1 // pred_region
      %78 = dma.done [#allocation7], 256
    $region41: #{tpu_custom_call.1} parent=1 // pred_fallthru
      _
    // Predicated region
    $region42: #{tpu_custom_call.1} parent=1 // pred_check
      _
    $region43: #{tpu_custom_call.1} parent=1 // pred_check_branch
      %80 = sbr.rel (0) target = $region45
    $region44: #{tpu_custom_call.1} parent=1 // pred_region
      %81 = dma.done [#allocation10], 256
    $region45: #{tpu_custom_call.1} parent=1 // pred_fallthru
      _
    // Predicated region
    $region46: #{tpu_custom_call.1} parent=1 // pred_check
      _
    $region47: #{tpu_custom_call.1} parent=1 // pred_check_branch
      %83 = sbr.rel (0) target = $region49
    $region48: #{tpu_custom_call.1} parent=1 // pred_region
      %84 = dma.done [#allocation10], 512
    $region49: #{tpu_custom_call.1} parent=1 // pred_fallthru
      _
    // Predicated region
    $region50: #{tpu_custom_call.1} parent=1 // pred_check
      _
    $region51: #{tpu_custom_call.1} parent=1 // pred_check_branch
      %86 = sbr.rel (0) target = $region53
    $region52: #{tpu_custom_call.1} parent=1 // pred_region
      %87 = dma.done [#allocation13], 512
    $region53: #{tpu_custom_call.1} parent=1 // pred_fallthru
      _
    %v88 = vld [vmem:[#allocation9] sm:$0xff]
    %v89 = vld [vmem:[#allocation9 + $0x8] sm:$0xff]
    %v90 = vld [vmem:[%s2] sm:$0xff]
    %v91 = vld [vmem:[%s2 + $0x8] sm:$0xff]
    %v92 = vld [vmem:[%s2 + $0x10] sm:$0xff]
    %v93 = vld [vmem:[%s2 + $0x18] sm:$0xff]
    %v94 = vld [vmem:[%s3] sm:$0x1]
    %v95 = vld [vmem:[#allocation6] sm:$0xff]
    %v96 = vld [vmem:[#allocation6 + $0x8] sm:$0xff]
    %v98 = vlaneseq
    %v99 = vshrl.u32 %v98, 7
    %v100 = vsub.s32 0, %v99
    %v101 = vrot.slane %v94, %v100
    %vm103 = vcmask 130048
    %v105 = vsel %vm103, %v95, 0
    %v108 = vsel %vm103, %v96, 0
    %110 = vmatprep.subr.mxu0 0.0
    %111 = vmatpush1.msra.mxu0 0.0
    %112 = vmatprep.subr.mxu0 0.0
    %113 = vmatpush1.msra.mxu0 0.0
    %114 = vmatprep.subr.mxu0 0.0
    %115 = vmatpush1.msra.mxu0 0.0
    %116 = vmatprep.subr.mxu0 0.0
    %117 = vmatpush1.msra.mxu0 0.0
    %118 = vmatprep.subr.mxu0 0.0
    %119 = vmatpush1.msra.mxu0 0.0
    %120 = vmatprep.subr.mxu0 0.0
    %121 = vmatpush1.msra.mxu0 0.0
    %122 = vmatprep.subr.mxu0 0.0
    %123 = vmatpush1.msra.mxu0 0.0
    %124 = vmatprep.subr.mxu0 0.0
    %125 = vmatpush1.msra.mxu0 0.0
    %126 = vmatprep.subr.mxu0 0.0
    %127 = vmatpush1.msra.mxu0 0.0
    %128 = vmatprep.subr.mxu0 0.0
    %129 = vmatpush1.msra.mxu0 0.0
    %130 = vmatprep.subr.mxu0 0.0
    %131 = vmatpush1.msra.mxu0 0.0
    %132 = vmatprep.subr.mxu0 0.0
    %133 = vmatpush1.msra.mxu0 0.0
    %134 = vmatprep.subr.mxu0 0.0
    %135 = vmatpush1.msra.mxu0 0.0
    %136 = vmatprep.subr.mxu0 0.0
    %137 = vmatpush1.msra.mxu0 0.0
    %138 = vmatprep.subr.mxu0 0.0
    %139 = vmatpush1.msra.mxu0 %v89
    %140 = vmatprep.subr.mxu0 0.0
    %141 = vmatpush1.msra.mxu0 %v88
    %142 = vmatprep.subr.mxu0 0.0
    %143 = vmatpush2.msra.mxu0 0.0
    %144 = vmatprep.subr.mxu0 0.0
    %145 = vmatpush2.msra.mxu0 0.0
    %146 = vmatprep.subr.mxu0 0.0
    %147 = vmatpush2.msra.mxu0 0.0
    %148 = vmatprep.subr.mxu0 0.0
    %149 = vmatpush2.msra.mxu0 0.0
    %150 = vmatprep.subr.mxu0 0.0
    %151 = vmatpush2.msra.mxu0 0.0
    %152 = vmatprep.subr.mxu0 0.0
    %153 = vmatpush2.msra.mxu0 0.0
    %154 = vmatprep.subr.mxu0 0.0
    %155 = vmatpush2.msra.mxu0 0.0
    %156 = vmatprep.subr.mxu0 0.0
    %157 = vmatpush2.msra.mxu0 0.0
    %158 = vmatprep.subr.mxu0 0.0
    %159 = vmatpush2.msra.mxu0 0.0
    %160 = vmatprep.subr.mxu0 0.0
    %161 = vmatpush2.msra.mxu0 0.0
    %162 = vmatprep.subr.mxu0 0.0
    %163 = vmatpush2.msra.mxu0 0.0
    %164 = vmatprep.subr.mxu0 0.0
    %165 = vmatpush2.msra.mxu0 0.0
    %166 = vmatprep.subr.mxu0 0.0
    %167 = vmatpush2.msra.mxu0 0.0
    %168 = vmatprep.subr.mxu0 0.0
    %169 = vmatpush2.msra.mxu0 0.0
    %170 = vmatprep.subr.mxu0 0.0
    %171 = vmatpush2.msra.mxu0 0.0
    %172 = vmatprep.subr.mxu0 0.0
    %173 = vmatpush2.msra.mxu0 0.0
    %174 = vmatprep.mubr.f32.mxu0 0.0
    %175 = vmatmul.mubr.f32.gmra.mxu0 %v105
    %v176 = vpop.f32.mrf.mxu0
    %v177 = vadd.f32 %v101, %v176
    %v178 = vpop.f32.mrf.mxu0
    %179 = vmatprep.mubr.f32.mxu0 0.0
    %180 = vmatmul.mubr.f32.gmra.mxu0 %v108
    %v181 = vpop.f32.mrf.mxu0
    %v182 = vadd.f32 %v101, %v181
    %v183 = vpop.f32.mrf.mxu0
    %184 = vdwg.mxu0
    %185 = vst [vmem:[#allocation3] sm:$0xff] %v177
    %186 = vst [vmem:[#allocation3 + $0x8] sm:$0xff] %v182
    %vm187 = vcmask 254976
    %188 = vst.msk [vmem:[#allocation4] sm:$0x3] %vm187, 0.0
    %189 = vst.msk [vmem:[#allocation5] sm:$0x3] %vm187, 0.0
    %v190 = vld [vmem:[#allocation4] sm:$0x3]
    %v191 = vld [vmem:[#allocation5] sm:$0x3]
    %v192 = vld [vmem:[#allocation3] sm:$0x3]
    %vm193 = vcmask 261120
    %v195 = vsel %vm193, %v190, 0
    %197 = vmatprep.subr.mxu0 0.0
    %198 = vmatpush1.msra.mxu0 0.0
    %199 = vmatprep.subr.mxu0 0.0
    %200 = vmatpush1.msra.mxu0 0.0
    %201 = vmatprep.subr.mxu0 0.0
    %202 = vmatpush1.msra.mxu0 0.0
    %203 = vmatprep.subr.mxu0 0.0
    %204 = vmatpush1.msra.mxu0 0.0
    %205 = vmatprep.subr.mxu0 0.0
    %206 = vmatpush1.msra.mxu0 0.0
    %207 = vmatprep.subr.mxu0 0.0
    %208 = vmatpush1.msra.mxu0 0.0
    %209 = vmatprep.subr.mxu0 0.0
    %210 = vmatpush1.msra.mxu0 0.0
    %211 = vmatprep.subr.mxu0 0.0
    %212 = vmatpush1.msra.mxu0 0.0
    %213 = vmatprep.subr.mxu0 0.0
    %214 = vmatpush1.msra.mxu0 0.0
    %215 = vmatprep.subr.mxu0 0.0
    %216 = vmatpush1.msra.mxu0 0.0
    %217 = vmatprep.subr.mxu0 0.0
    %218 = vmatpush1.msra.mxu0 0.0
    %219 = vmatprep.subr.mxu0 0.0
    %220 = vmatpush1.msra.mxu0 0.0
    %221 = vmatprep.subr.mxu0 0.0
    %222 = vmatpush1.msra.mxu0 %v93
    %223 = vmatprep.subr.mxu0 0.0
    %224 = vmatpush1.msra.mxu0 %v92
    %225 = vmatprep.subr.mxu0 0.0
    %226 = vmatpush1.msra.mxu0 %v91
    %227 = vmatprep.subr.mxu0 0.0
    %228 = vmatpush1.msra.mxu0 %v90
    %229 = vmatprep.subr.mxu0 0.0
    %230 = vmatpush2.msra.mxu0 0.0
    %231 = vmatprep.subr.mxu0 0.0
    %232 = vmatpush2.msra.mxu0 0.0
    %233 = vmatprep.subr.mxu0 0.0
    %234 = vmatpush2.msra.mxu0 0.0
    %235 = vmatprep.subr.mxu0 0.0
    %236 = vmatpush2.msra.mxu0 0.0
    %237 = vmatprep.subr.mxu0 0.0
    %238 = vmatpush2.msra.mxu0 0.0
    %239 = vmatprep.subr.mxu0 0.0
    %240 = vmatpush2.msra.mxu0 0.0
    %241 = vmatprep.subr.mxu0 0.0
    %242 = vmatpush2.msra.mxu0 0.0
    %243 = vmatprep.subr.mxu0 0.0
    %244 = vmatpush2.msra.mxu0 0.0
    %245 = vmatprep.subr.mxu0 0.0
    %246 = vmatpush2.msra.mxu0 0.0
    %247 = vmatprep.subr.mxu0 0.0
    %248 = vmatpush2.msra.mxu0 0.0
    %249 = vmatprep.subr.mxu0 0.0
    %250 = vmatpush2.msra.mxu0 0.0
    %251 = vmatprep.subr.mxu0 0.0
    %252 = vmatpush2.msra.mxu0 0.0
    %253 = vmatprep.subr.mxu0 0.0
    %254 = vmatpush2.msra.mxu0 0.0
    %255 = vmatprep.subr.mxu0 0.0
    %256 = vmatpush2.msra.mxu0 0.0
    %257 = vmatprep.subr.mxu0 0.0
    %258 = vmatpush2.msra.mxu0 0.0
    %259 = vmatprep.subr.mxu0 0.0
    %260 = vmatpush2.msra.mxu0 0.0
    %261 = vmatprep.mubr.f32.mxu0 0.0
    %262 = vmatmul.mubr.f32.gmra.mxu0 %v195
    %v263 = vpop.f32.mrf.mxu0
    %v264 = vadd.f32 0.0, %v263
    %v265 = vpop.f32.mrf.mxu0
    %266 = vdwg.mxu0
    %v267 = vadd.f32 %v192, %v264
    %v268 = vxor.u32 %v267, 2147483648
    %v269 = vmul.f32 %v268, 1.442695
    %v270 = vpow.pop %v269
    %v271 = vadd.f32 %v270, 1.0
    %v272 = vrcp.pop %v271
    %v273 = vmul.f32 1.0, %v272
    %v274 = vtanh.pop %v267
    %276 = vrot.lane.b32.xlu0 %v191, 32
    %v277 = vpop.permute.xlu0 %276
    %v279 = vmul.f32 %v273, %v277
    %281 = vrot.lane.b32.xlu0 %v274, 64
    %v282 = vpop.permute.xlu0 %281
    %v284 = vmul.f32 %v273, %v282
    %286 = vrot.lane.b32.xlu0 %v284, 32
    %v287 = vpop.permute.xlu0 %286
    %v289 = vadd.f32 %v279, %v287
    %v290 = vtanh.pop %v289
    %292 = vrot.lane.b32.xlu0 %v290, 64
    %v293 = vpop.permute.xlu0 %292
    %v295 = vmul.f32 %v273, %v293
    %297 = vrot.lane.b32.xlu0 %v295, 32
    %v298 = vpop.permute.xlu0 %297
    %300 = vst.msk [vmem:[#allocation4] sm:$0x3] %vm187, %v298
    %302 = vrot.lane.b32.xlu0 %v289, 96
    %v303 = vpop.permute.xlu0 %302
    %305 = vst.msk [vmem:[#allocation5] sm:$0x3] %vm187, %v303
    %306 = vst.msk [vmem:[#allocation2] sm:$0x3] %vm187, %v298
    %v307 = vld [vmem:[#allocation4] sm:$0x3]
    %v308 = vld [vmem:[#allocation5] sm:$0x3]
    %v309 = vld [vmem:[#allocation3 + $0x2] sm:$0x3]
    %v311 = vsel %vm193, %v307, 0
    %313 = vmatprep.subr.mxu0 0.0
    %314 = vmatpush1.msra.mxu0 0.0
    %315 = vmatprep.subr.mxu0 0.0
    %316 = vmatpush1.msra.mxu0 0.0
    %317 = vmatprep.subr.mxu0 0.0
    %318 = vmatpush1.msra.mxu0 0.0
    %319 = vmatprep.subr.mxu0 0.0
    %320 = vmatpush1.msra.mxu0 0.0
    %321 = vmatprep.subr.mxu0 0.0
    %322 = vmatpush1.msra.mxu0 0.0
    %323 = vmatprep.subr.mxu0 0.0
    %324 = vmatpush1.msra.mxu0 0.0
    %325 = vmatprep.subr.mxu0 0.0
    %326 = vmatpush1.msra.mxu0 0.0
    %327 = vmatprep.subr.mxu0 0.0
    %328 = vmatpush1.msra.mxu0 0.0
    %329 = vmatprep.subr.mxu0 0.0
    %330 = vmatpush1.msra.mxu0 0.0
    %331 = vmatprep.subr.mxu0 0.0
    %332 = vmatpush1.msra.mxu0 0.0
    %333 = vmatprep.subr.mxu0 0.0
    %334 = vmatpush1.msra.mxu0 0.0
    %335 = vmatprep.subr.mxu0 0.0
    %336 = vmatpush1.msra.mxu0 0.0
    %337 = vmatprep.subr.mxu0 0.0
    %338 = vmatpush1.msra.mxu0 %v93
    %339 = vmatprep.subr.mxu0 0.0
    %340 = vmatpush1.msra.mxu0 %v92
    %341 = vmatprep.subr.mxu0 0.0
    %342 = vmatpush1.msra.mxu0 %v91
    %343 = vmatprep.subr.mxu0 0.0
    %344 = vmatpush1.msra.mxu0 %v90
    %345 = vmatprep.subr.mxu0 0.0
    %346 = vmatpush2.msra.mxu0 0.0
    %347 = vmatprep.subr.mxu0 0.0
    %348 = vmatpush2.msra.mxu0 0.0
    %349 = vmatprep.subr.mxu0 0.0
    %350 = vmatpush2.msra.mxu0 0.0
    %351 = vmatprep.subr.mxu0 0.0
    %352 = vmatpush2.msra.mxu0 0.0
    %353 = vmatprep.subr.mxu0 0.0
    %354 = vmatpush2.msra.mxu0 0.0
    %355 = vmatprep.subr.mxu0 0.0
    %356 = vmatpush2.msra.mxu0 0.0
    %357 = vmatprep.subr.mxu0 0.0
    %358 = vmatpush2.msra.mxu0 0.0
    %359 = vmatprep.subr.mxu0 0.0
    %360 = vmatpush2.msra.mxu0 0.0
    %361 = vmatprep.subr.mxu0 0.0
    %362 = vmatpush2.msra.mxu0 0.0
    %363 = vmatprep.subr.mxu0 0.0
    %364 = vmatpush2.msra.mxu0 0.0
    %365 = vmatprep.subr.mxu0 0.0
    %366 = vmatpush2.msra.mxu0 0.0
    %367 = vmatprep.subr.mxu0 0.0
    %368 = vmatpush2.msra.mxu0 0.0
    %369 = vmatprep.subr.mxu0 0.0
    %370 = vmatpush2.msra.mxu0 0.0
    %371 = vmatprep.subr.mxu0 0.0
    %372 = vmatpush2.msra.mxu0 0.0
    %373 = vmatprep.subr.mxu0 0.0
    %374 = vmatpush2.msra.mxu0 0.0
    %375 = vmatprep.subr.mxu0 0.0
    %376 = vmatpush2.msra.mxu0 0.0
    %377 = vmatprep.mubr.f32.mxu0 0.0
    %378 = vmatmul.mubr.f32.gmra.mxu0 %v311
    %v379 = vpop.f32.mrf.mxu0
    %v380 = vadd.f32 0.0, %v379
    %v381 = vpop.f32.mrf.mxu0
    %382 = vdwg.mxu0
    %v383 = vadd.f32 %v309, %v380
    %v384 = vxor.u32 %v383, 2147483648
    %v385 = vmul.f32 %v384, 1.442695
    %v386 = vpow.pop %v385
    %v387 = vadd.f32 %v386, 1.0
    %v388 = vrcp.pop %v387
    %v389 = vmul.f32 1.0, %v388
    %v390 = vtanh.pop %v383
    %392 = vrot.lane.b32.xlu0 %v308, 32
    %v393 = vpop.permute.xlu0 %392
    %v395 = vmul.f32 %v389, %v393
    %397 = vrot.lane.b32.xlu0 %v390, 64
    %v398 = vpop.permute.xlu0 %397
    %v400 = vmul.f32 %v389, %v398
    %402 = vrot.lane.b32.xlu0 %v400, 32
    %v403 = vpop.permute.xlu0 %402
    %v405 = vadd.f32 %v395, %v403
    %v406 = vtanh.pop %v405
    %408 = vrot.lane.b32.xlu0 %v406, 64
    %v409 = vpop.permute.xlu0 %408
    %v411 = vmul.f32 %v389, %v409
    %413 = vrot.lane.b32.xlu0 %v411, 32
    %v414 = vpop.permute.xlu0 %413
    %416 = vst.msk [vmem:[#allocation4] sm:$0x3] %vm187, %v414
    %418 = vrot.lane.b32.xlu0 %v405, 96
    %v419 = vpop.permute.xlu0 %418
    %421 = vst.msk [vmem:[#allocation5] sm:$0x3] %vm187, %v419
    %422 = vst.msk [vmem:[#allocation2 + $0x2] sm:$0x3] %vm187, %v414
    %v423 = vld [vmem:[#allocation4] sm:$0x3]
    %v424 = vld [vmem:[#allocation5] sm:$0x3]
    %v425 = vld [vmem:[#allocation3 + $0x4] sm:$0x3]
    %v427 = vsel %vm193, %v423, 0
    %429 = vmatprep.subr.mxu0 0.0
    %430 = vmatpush1.msra.mxu0 0.0
    %431 = vmatprep.subr.mxu0 0.0
    %432 = vmatpush1.msra.mxu0 0.0
    %433 = vmatprep.subr.mxu0 0.0
    %434 = vmatpush1.msra.mxu0 0.0
    %435 = vmatprep.subr.mxu0 0.0
    %436 = vmatpush1.msra.mxu0 0.0
    %437 = vmatprep.subr.mxu0 0.0
    %438 = vmatpush1.msra.mxu0 0.0
    %439 = vmatprep.subr.mxu0 0.0
    %440 = vmatpush1.msra.mxu0 0.0
    %441 = vmatprep.subr.mxu0 0.0
    %442 = vmatpush1.msra.mxu0 0.0
    %443 = vmatprep.subr.mxu0 0.0
    %444 = vmatpush1.msra.mxu0 0.0
    %445 = vmatprep.subr.mxu0 0.0
    %446 = vmatpush1.msra.mxu0 0.0
    %447 = vmatprep.subr.mxu0 0.0
    %448 = vmatpush1.msra.mxu0 0.0
    %449 = vmatprep.subr.mxu0 0.0
    %450 = vmatpush1.msra.mxu0 0.0
    %451 = vmatprep.subr.mxu0 0.0
    %452 = vmatpush1.msra.mxu0 0.0
    %453 = vmatprep.subr.mxu0 0.0
    %454 = vmatpush1.msra.mxu0 %v93
    %455 = vmatprep.subr.mxu0 0.0
    %456 = vmatpush1.msra.mxu0 %v92
    %457 = vmatprep.subr.mxu0 0.0
    %458 = vmatpush1.msra.mxu0 %v91
    %459 = vmatprep.subr.mxu0 0.0
    %460 = vmatpush1.msra.mxu0 %v90
    %461 = vmatprep.subr.mxu0 0.0
    %462 = vmatpush2.msra.mxu0 0.0
    %463 = vmatprep.subr.mxu0 0.0
    %464 = vmatpush2.msra.mxu0 0.0
    %465 = vmatprep.subr.mxu0 0.0
    %466 = vmatpush2.msra.mxu0 0.0
    %467 = vmatprep.subr.mxu0 0.0
    %468 = vmatpush2.msra.mxu0 0.0
    %469 = vmatprep.subr.mxu0 0.0
    %470 = vmatpush2.msra.mxu0 0.0
    %471 = vmatprep.subr.mxu0 0.0
    %472 = vmatpush2.msra.mxu0 0.0
    %473 = vmatprep.subr.mxu0 0.0
    %474 = vmatpush2.msra.mxu0 0.0
    %475 = vmatprep.subr.mxu0 0.0
    %476 = vmatpush2.msra.mxu0 0.0
    %477 = vmatprep.subr.mxu0 0.0
    %478 = vmatpush2.msra.mxu0 0.0
    %479 = vmatprep.subr.mxu0 0.0
    %480 = vmatpush2.msra.mxu0 0.0
    %481 = vmatprep.subr.mxu0 0.0
    %482 = vmatpush2.msra.mxu0 0.0
    %483 = vmatprep.subr.mxu0 0.0
    %484 = vmatpush2.msra.mxu0 0.0
    %485 = vmatprep.subr.mxu0 0.0
    %486 = vmatpush2.msra.mxu0 0.0
    %487 = vmatprep.subr.mxu0 0.0
    %488 = vmatpush2.msra.mxu0 0.0
    %489 = vmatprep.subr.mxu0 0.0
    %490 = vmatpush2.msra.mxu0 0.0
    %491 = vmatprep.subr.mxu0 0.0
    %492 = vmatpush2.msra.mxu0 0.0
    %493 = vmatprep.mubr.f32.mxu0 0.0
    %494 = vmatmul.mubr.f32.gmra.mxu0 %v427
    %v495 = vpop.f32.mrf.mxu0
    %v496 = vadd.f32 0.0, %v495
    %v497 = vpop.f32.mrf.mxu0
    %498 = vdwg.mxu0
    %v499 = vadd.f32 %v425, %v496
    %v500 = vxor.u32 %v499, 2147483648
    %v501 = vmul.f32 %v500, 1.442695
    %v502 = vpow.pop %v501
    %v503 = vadd.f32 %v502, 1.0
    %v504 = vrcp.pop %v503
    %v505 = vmul.f32 1.0, %v504
    %v506 = vtanh.pop %v499
    %508 = vrot.lane.b32.xlu0 %v424, 32
    %v509 = vpop.permute.xlu0 %508
    %v511 = vmul.f32 %v505, %v509
    %513 = vrot.lane.b32.xlu0 %v506, 64
    %v514 = vpop.permute.xlu0 %513
    %v516 = vmul.f32 %v505, %v514
    %518 = vrot.lane.b32.xlu0 %v516, 32
    %v519 = vpop.permute.xlu0 %518
    %v521 = vadd.f32 %v511, %v519
    %v522 = vtanh.pop %v521
    %524 = vrot.lane.b32.xlu0 %v522, 64
    %v525 = vpop.permute.xlu0 %524
    %v527 = vmul.f32 %v505, %v525
    %529 = vrot.lane.b32.xlu0 %v527, 32
    %v530 = vpop.permute.xlu0 %529
    %532 = vst.msk [vmem:[#allocation4] sm:$0x3] %vm187, %v530
    %534 = vrot.lane.b32.xlu0 %v521, 96
    %v535 = vpop.permute.xlu0 %534
    %537 = vst.msk [vmem:[#allocation5] sm:$0x3] %vm187, %v535
    %538 = vst.msk [vmem:[#allocation2 + $0x4] sm:$0x3] %vm187, %v530
    %v539 = vld [vmem:[#allocation4] sm:$0x3]
    %v540 = vld [vmem:[#allocation5] sm:$0x3]
    %v541 = vld [vmem:[#allocation3 + $0x6] sm:$0x3]
    %v543 = vsel %vm193, %v539, 0
    %545 = vmatprep.subr.mxu0 0.0
    %546 = vmatpush1.msra.mxu0 0.0
    %547 = vmatprep.subr.mxu0 0.0
    %548 = vmatpush1.msra.mxu0 0.0
    %549 = vmatprep.subr.mxu0 0.0
    %550 = vmatpush1.msra.mxu0 0.0
    %551 = vmatprep.subr.mxu0 0.0
    %552 = vmatpush1.msra.mxu0 0.0
    %553 = vmatprep.subr.mxu0 0.0
    %554 = vmatpush1.msra.mxu0 0.0
    %555 = vmatprep.subr.mxu0 0.0
    %556 = vmatpush1.msra.mxu0 0.0
    %557 = vmatprep.subr.mxu0 0.0
    %558 = vmatpush1.msra.mxu0 0.0
    %559 = vmatprep.subr.mxu0 0.0
    %560 = vmatpush1.msra.mxu0 0.0
    %561 = vmatprep.subr.mxu0 0.0
    %562 = vmatpush1.msra.mxu0 0.0
    %563 = vmatprep.subr.mxu0 0.0
    %564 = vmatpush1.msra.mxu0 0.0
    %565 = vmatprep.subr.mxu0 0.0
    %566 = vmatpush1.msra.mxu0 0.0
    %567 = vmatprep.subr.mxu0 0.0
    %568 = vmatpush1.msra.mxu0 0.0
    %569 = vmatprep.subr.mxu0 0.0
    %570 = vmatpush1.msra.mxu0 %v93
    %571 = vmatprep.subr.mxu0 0.0
    %572 = vmatpush1.msra.mxu0 %v92
    %573 = vmatprep.subr.mxu0 0.0
    %574 = vmatpush1.msra.mxu0 %v91
    %575 = vmatprep.subr.mxu0 0.0
    %576 = vmatpush1.msra.mxu0 %v90
    %577 = vmatprep.subr.mxu0 0.0
    %578 = vmatpush2.msra.mxu0 0.0
    %579 = vmatprep.subr.mxu0 0.0
    %580 = vmatpush2.msra.mxu0 0.0
    %581 = vmatprep.subr.mxu0 0.0
    %582 = vmatpush2.msra.mxu0 0.0
    %583 = vmatprep.subr.mxu0 0.0
    %584 = vmatpush2.msra.mxu0 0.0
    %585 = vmatprep.subr.mxu0 0.0
    %586 = vmatpush2.msra.mxu0 0.0
    %587 = vmatprep.subr.mxu0 0.0
    %588 = vmatpush2.msra.mxu0 0.0
    %589 = vmatprep.subr.mxu0 0.0
    %590 = vmatpush2.msra.mxu0 0.0
    %591 = vmatprep.subr.mxu0 0.0
    %592 = vmatpush2.msra.mxu0 0.0
    %593 = vmatprep.subr.mxu0 0.0
    %594 = vmatpush2.msra.mxu0 0.0
    %595 = vmatprep.subr.mxu0 0.0
    %596 = vmatpush2.msra.mxu0 0.0
    %597 = vmatprep.subr.mxu0 0.0
    %598 = vmatpush2.msra.mxu0 0.0
    %599 = vmatprep.subr.mxu0 0.0
    %600 = vmatpush2.msra.mxu0 0.0
    %601 = vmatprep.subr.mxu0 0.0
    %602 = vmatpush2.msra.mxu0 0.0
    %603 = vmatprep.subr.mxu0 0.0
    %604 = vmatpush2.msra.mxu0 0.0
    %605 = vmatprep.subr.mxu0 0.0
    %606 = vmatpush2.msra.mxu0 0.0
    %607 = vmatprep.subr.mxu0 0.0
    %608 = vmatpush2.msra.mxu0 0.0
    %609 = vmatprep.mubr.f32.mxu0 0.0
    %610 = vmatmul.mubr.f32.gmra.mxu0 %v543
    %v611 = vpop.f32.mrf.mxu0
    %v612 = vadd.f32 0.0, %v611
    %v613 = vpop.f32.mrf.mxu0
    %614 = vdwg.mxu0
    %v615 = vadd.f32 %v541, %v612
    %v616 = vxor.u32 %v615, 2147483648
    %v617 = vmul.f32 %v616, 1.442695
    %v618 = vpow.pop %v617
    %v619 = vadd.f32 %v618, 1.0
    %v620 = vrcp.pop %v619
    %v621 = vmul.f32 1.0, %v620
    %v622 = vtanh.pop %v615
    %624 = vrot.lane.b32.xlu0 %v540, 32
    %v625 = vpop.permute.xlu0 %624
    %v627 = vmul.f32 %v621, %v625
    %629 = vrot.lane.b32.xlu0 %v622, 64
    %v630 = vpop.permute.xlu0 %629
    %v632 = vmul.f32 %v621, %v630
    %634 = vrot.lane.b32.xlu0 %v632, 32
    %v635 = vpop.permute.xlu0 %634
    %v637 = vadd.f32 %v627, %v635
    %v638 = vtanh.pop %v637
    %640 = vrot.lane.b32.xlu0 %v638, 64
    %v641 = vpop.permute.xlu0 %640
    %v643 = vmul.f32 %v621, %v641
    %645 = vrot.lane.b32.xlu0 %v643, 32
    %v646 = vpop.permute.xlu0 %645
    %648 = vst.msk [vmem:[#allocation4] sm:$0x3] %vm187, %v646
    %650 = vrot.lane.b32.xlu0 %v637, 96
    %v651 = vpop.permute.xlu0 %650
    %653 = vst.msk [vmem:[#allocation5] sm:$0x3] %vm187, %v651
    %654 = vst.msk [vmem:[#allocation2 + $0x6] sm:$0x3] %vm187, %v646
    %v655 = vld [vmem:[#allocation4] sm:$0x3]
    %v656 = vld [vmem:[#allocation5] sm:$0x3]
    %v657 = vld [vmem:[#allocation3 + $0x8] sm:$0x3]
    %v659 = vsel %vm193, %v655, 0
    %661 = vmatprep.subr.mxu0 0.0
    %662 = vmatpush1.msra.mxu0 0.0
    %663 = vmatprep.subr.mxu0 0.0
    %664 = vmatpush1.msra.mxu0 0.0
    %665 = vmatprep.subr.mxu0 0.0
    %666 = vmatpush1.msra.mxu0 0.0
    %667 = vmatprep.subr.mxu0 0.0
    %668 = vmatpush1.msra.mxu0 0.0
    %669 = vmatprep.subr.mxu0 0.0
    %670 = vmatpush1.msra.mxu0 0.0
    %671 = vmatprep.subr.mxu0 0.0
    %672 = vmatpush1.msra.mxu0 0.0
    %673 = vmatprep.subr.mxu0 0.0
    %674 = vmatpush1.msra.mxu0 0.0
    %675 = vmatprep.subr.mxu0 0.0
    %676 = vmatpush1.msra.mxu0 0.0
    %677 = vmatprep.subr.mxu0 0.0
    %678 = vmatpush1.msra.mxu0 0.0
    %679 = vmatprep.subr.mxu0 0.0
    %680 = vmatpush1.msra.mxu0 0.0
    %681 = vmatprep.subr.mxu0 0.0
    %682 = vmatpush1.msra.mxu0 0.0
    %683 = vmatprep.subr.mxu0 0.0
    %684 = vmatpush1.msra.mxu0 0.0
    %685 = vmatprep.subr.mxu0 0.0
    %686 = vmatpush1.msra.mxu0 %v93
    %687 = vmatprep.subr.mxu0 0.0
    %688 = vmatpush1.msra.mxu0 %v92
    %689 = vmatprep.subr.mxu0 0.0
    %690 = vmatpush1.msra.mxu0 %v91
    %691 = vmatprep.subr.mxu0 0.0
    %692 = vmatpush1.msra.mxu0 %v90
    %693 = vmatprep.subr.mxu0 0.0
    %694 = vmatpush2.msra.mxu0 0.0
    %695 = vmatprep.subr.mxu0 0.0
    %696 = vmatpush2.msra.mxu0 0.0
    %697 = vmatprep.subr.mxu0 0.0
    %698 = vmatpush2.msra.mxu0 0.0
    %699 = vmatprep.subr.mxu0 0.0
    %700 = vmatpush2.msra.mxu0 0.0
    %701 = vmatprep.subr.mxu0 0.0
    %702 = vmatpush2.msra.mxu0 0.0
    %703 = vmatprep.subr.mxu0 0.0
    %704 = vmatpush2.msra.mxu0 0.0
    %705 = vmatprep.subr.mxu0 0.0
    %706 = vmatpush2.msra.mxu0 0.0
    %707 = vmatprep.subr.mxu0 0.0
    %708 = vmatpush2.msra.mxu0 0.0
    %709 = vmatprep.subr.mxu0 0.0
    %710 = vmatpush2.msra.mxu0 0.0
    %711 = vmatprep.subr.mxu0 0.0
    %712 = vmatpush2.msra.mxu0 0.0
    %713 = vmatprep.subr.mxu0 0.0
    %714 = vmatpush2.msra.mxu0 0.0
    %715 = vmatprep.subr.mxu0 0.0
    %716 = vmatpush2.msra.mxu0 0.0
    %717 = vmatprep.subr.mxu0 0.0
    %718 = vmatpush2.msra.mxu0 0.0
    %719 = vmatprep.subr.mxu0 0.0
    %720 = vmatpush2.msra.mxu0 0.0
    %721 = vmatprep.subr.mxu0 0.0
    %722 = vmatpush2.msra.mxu0 0.0
    %723 = vmatprep.subr.mxu0 0.0
    %724 = vmatpush2.msra.mxu0 0.0
    %725 = vmatprep.mubr.f32.mxu0 0.0
    %726 = vmatmul.mubr.f32.gmra.mxu0 %v659
    %v727 = vpop.f32.mrf.mxu0
    %v728 = vadd.f32 0.0, %v727
    %v729 = vpop.f32.mrf.mxu0
    %730 = vdwg.mxu0
    %v731 = vadd.f32 %v657, %v728
    %v732 = vxor.u32 %v731, 2147483648
    %v733 = vmul.f32 %v732, 1.442695
    %v734 = vpow.pop %v733
    %v735 = vadd.f32 %v734, 1.0
    %v736 = vrcp.pop %v735
    %v737 = vmul.f32 1.0, %v736
    %v738 = vtanh.pop %v731
    %740 = vrot.lane.b32.xlu0 %v656, 32
    %v741 = vpop.permute.xlu0 %740
    %v743 = vmul.f32 %v737, %v741
    %745 = vrot.lane.b32.xlu0 %v738, 64
    %v746 = vpop.permute.xlu0 %745
    %v748 = vmul.f32 %v737, %v746
    %750 = vrot.lane.b32.xlu0 %v748, 32
    %v751 = vpop.permute.xlu0 %750
    %v753 = vadd.f32 %v743, %v751
    %v754 = vtanh.pop %v753
    %756 = vrot.lane.b32.xlu0 %v754, 64
    %v757 = vpop.permute.xlu0 %756
    %v759 = vmul.f32 %v737, %v757
    %761 = vrot.lane.b32.xlu0 %v759, 32
    %v762 = vpop.permute.xlu0 %761
    %764 = vst.msk [vmem:[#allocation4] sm:$0x3] %vm187, %v762
    %766 = vrot.lane.b32.xlu0 %v753, 96
    %v767 = vpop.permute.xlu0 %766
    %769 = vst.msk [vmem:[#allocation5] sm:$0x3] %vm187, %v767
    %770 = vst.msk [vmem:[#allocation2 + $0x8] sm:$0x3] %vm187, %v762
    %v771 = vld [vmem:[#allocation4] sm:$0x3]
    %v772 = vld [vmem:[#allocation5] sm:$0x3]
    %v773 = vld [vmem:[#allocation3 + $0xa] sm:$0x3]
    %v775 = vsel %vm193, %v771, 0
    %777 = vmatprep.subr.mxu0 0.0
    %778 = vmatpush1.msra.mxu0 0.0
    %779 = vmatprep.subr.mxu0 0.0
    %780 = vmatpush1.msra.mxu0 0.0
    %781 = vmatprep.subr.mxu0 0.0
    %782 = vmatpush1.msra.mxu0 0.0
    %783 = vmatprep.subr.mxu0 0.0
    %784 = vmatpush1.msra.mxu0 0.0
    %785 = vmatprep.subr.mxu0 0.0
    %786 = vmatpush1.msra.mxu0 0.0
    %787 = vmatprep.subr.mxu0 0.0
    %788 = vmatpush1.msra.mxu0 0.0
    %789 = vmatprep.subr.mxu0 0.0
    %790 = vmatpush1.msra.mxu0 0.0
    %791 = vmatprep.subr.mxu0 0.0
    %792 = vmatpush1.msra.mxu0 0.0
    %793 = vmatprep.subr.mxu0 0.0
    %794 = vmatpush1.msra.mxu0 0.0
    %795 = vmatprep.subr.mxu0 0.0
    %796 = vmatpush1.msra.mxu0 0.0
    %797 = vmatprep.subr.mxu0 0.0
    %798 = vmatpush1.msra.mxu0 0.0
    %799 = vmatprep.subr.mxu0 0.0
    %800 = vmatpush1.msra.mxu0 0.0
    %801 = vmatprep.subr.mxu0 0.0
    %802 = vmatpush1.msra.mxu0 %v93
    %803 = vmatprep.subr.mxu0 0.0
    %804 = vmatpush1.msra.mxu0 %v92
    %805 = vmatprep.subr.mxu0 0.0
    %806 = vmatpush1.msra.mxu0 %v91
    %807 = vmatprep.subr.mxu0 0.0
    %808 = vmatpush1.msra.mxu0 %v90
    %809 = vmatprep.subr.mxu0 0.0
    %810 = vmatpush2.msra.mxu0 0.0
    %811 = vmatprep.subr.mxu0 0.0
    %812 = vmatpush2.msra.mxu0 0.0
    %813 = vmatprep.subr.mxu0 0.0
    %814 = vmatpush2.msra.mxu0 0.0
    %815 = vmatprep.subr.mxu0 0.0
    %816 = vmatpush2.msra.mxu0 0.0
    %817 = vmatprep.subr.mxu0 0.0
    %818 = vmatpush2.msra.mxu0 0.0
    %819 = vmatprep.subr.mxu0 0.0
    %820 = vmatpush2.msra.mxu0 0.0
    %821 = vmatprep.subr.mxu0 0.0
    %822 = vmatpush2.msra.mxu0 0.0
    %823 = vmatprep.subr.mxu0 0.0
    %824 = vmatpush2.msra.mxu0 0.0
    %825 = vmatprep.subr.mxu0 0.0
    %826 = vmatpush2.msra.mxu0 0.0
    %827 = vmatprep.subr.mxu0 0.0
    %828 = vmatpush2.msra.mxu0 0.0
    %829 = vmatprep.subr.mxu0 0.0
    %830 = vmatpush2.msra.mxu0 0.0
    %831 = vmatprep.subr.mxu0 0.0
    %832 = vmatpush2.msra.mxu0 0.0
    %833 = vmatprep.subr.mxu0 0.0
    %834 = vmatpush2.msra.mxu0 0.0
    %835 = vmatprep.subr.mxu0 0.0
    %836 = vmatpush2.msra.mxu0 0.0
    %837 = vmatprep.subr.mxu0 0.0
    %838 = vmatpush2.msra.mxu0 0.0
    %839 = vmatprep.subr.mxu0 0.0
    %840 = vmatpush2.msra.mxu0 0.0
    %841 = vmatprep.mubr.f32.mxu0 0.0
    %842 = vmatmul.mubr.f32.gmra.mxu0 %v775
    %v843 = vpop.f32.mrf.mxu0
    %v844 = vadd.f32 0.0, %v843
    %v845 = vpop.f32.mrf.mxu0
    %846 = vdwg.mxu0
    %v847 = vadd.f32 %v773, %v844
    %v848 = vxor.u32 %v847, 2147483648
    %v849 = vmul.f32 %v848, 1.442695
    %v850 = vpow.pop %v849
    %v851 = vadd.f32 %v850, 1.0
    %v852 = vrcp.pop %v851
    %v853 = vmul.f32 1.0, %v852
    %v854 = vtanh.pop %v847
    %856 = vrot.lane.b32.xlu0 %v772, 32
    %v857 = vpop.permute.xlu0 %856
    %v859 = vmul.f32 %v853, %v857
    %861 = vrot.lane.b32.xlu0 %v854, 64
    %v862 = vpop.permute.xlu0 %861
    %v864 = vmul.f32 %v853, %v862
    %866 = vrot.lane.b32.xlu0 %v864, 32
    %v867 = vpop.permute.xlu0 %866
    %v869 = vadd.f32 %v859, %v867
    %v870 = vtanh.pop %v869
    %872 = vrot.lane.b32.xlu0 %v870, 64
    %v873 = vpop.permute.xlu0 %872
    %v875 = vmul.f32 %v853, %v873
    %877 = vrot.lane.b32.xlu0 %v875, 32
    %v878 = vpop.permute.xlu0 %877
    %880 = vst.msk [vmem:[#allocation4] sm:$0x3] %vm187, %v878
    %882 = vrot.lane.b32.xlu0 %v869, 96
    %v883 = vpop.permute.xlu0 %882
    %885 = vst.msk [vmem:[#allocation5] sm:$0x3] %vm187, %v883
    %886 = vst.msk [vmem:[#allocation2 + $0xa] sm:$0x3] %vm187, %v878
    %v887 = vld [vmem:[#allocation4] sm:$0x3]
    %v888 = vld [vmem:[#allocation5] sm:$0x3]
    %v889 = vld [vmem:[#allocation3 + $0xc] sm:$0x3]
    %v891 = vsel %vm193, %v887, 0
    %893 = vmatprep.subr.mxu0 0.0
    %894 = vmatpush1.msra.mxu0 0.0
    %895 = vmatprep.subr.mxu0 0.0
    %896 = vmatpush1.msra.mxu0 0.0
    %897 = vmatprep.subr.mxu0 0.0
    %898 = vmatpush1.msra.mxu0 0.0
    %899 = vmatprep.subr.mxu0 0.0
    %900 = vmatpush1.msra.mxu0 0.0
    %901 = vmatprep.subr.mxu0 0.0
    %902 = vmatpush1.msra.mxu0 0.0
    %903 = vmatprep.subr.mxu0 0.0
    %904 = vmatpush1.msra.mxu0 0.0
    %905 = vmatprep.subr.mxu0 0.0
    %906 = vmatpush1.msra.mxu0 0.0
    %907 = vmatprep.subr.mxu0 0.0
    %908 = vmatpush1.msra.mxu0 0.0
    %909 = vmatprep.subr.mxu0 0.0
    %910 = vmatpush1.msra.mxu0 0.0
    %911 = vmatprep.subr.mxu0 0.0
    %912 = vmatpush1.msra.mxu0 0.0
    %913 = vmatprep.subr.mxu0 0.0
    %914 = vmatpush1.msra.mxu0 0.0
    %915 = vmatprep.subr.mxu0 0.0
    %916 = vmatpush1.msra.mxu0 0.0
    %917 = vmatprep.subr.mxu0 0.0
    %918 = vmatpush1.msra.mxu0 %v93
    %919 = vmatprep.subr.mxu0 0.0
    %920 = vmatpush1.msra.mxu0 %v92
    %921 = vmatprep.subr.mxu0 0.0
    %922 = vmatpush1.msra.mxu0 %v91
    %923 = vmatprep.subr.mxu0 0.0
    %924 = vmatpush1.msra.mxu0 %v90
    %925 = vmatprep.subr.mxu0 0.0
    %926 = vmatpush2.msra.mxu0 0.0
    %927 = vmatprep.subr.mxu0 0.0
    %928 = vmatpush2.msra.mxu0 0.0
    %929 = vmatprep.subr.mxu0 0.0
    %930 = vmatpush2.msra.mxu0 0.0
    %931 = vmatprep.subr.mxu0 0.0
    %932 = vmatpush2.msra.mxu0 0.0
    %933 = vmatprep.subr.mxu0 0.0
    %934 = vmatpush2.msra.mxu0 0.0
    %935 = vmatprep.subr.mxu0 0.0
    %936 = vmatpush2.msra.mxu0 0.0
    %937 = vmatprep.subr.mxu0 0.0
    %938 = vmatpush2.msra.mxu0 0.0
    %939 = vmatprep.subr.mxu0 0.0
    %940 = vmatpush2.msra.mxu0 0.0
    %941 = vmatprep.subr.mxu0 0.0
    %942 = vmatpush2.msra.mxu0 0.0
    %943 = vmatprep.subr.mxu0 0.0
    %944 = vmatpush2.msra.mxu0 0.0
    %945 = vmatprep.subr.mxu0 0.0
    %946 = vmatpush2.msra.mxu0 0.0
    %947 = vmatprep.subr.mxu0 0.0
    %948 = vmatpush2.msra.mxu0 0.0
    %949 = vmatprep.subr.mxu0 0.0
    %950 = vmatpush2.msra.mxu0 0.0
    %951 = vmatprep.subr.mxu0 0.0
    %952 = vmatpush2.msra.mxu0 0.0
    %953 = vmatprep.subr.mxu0 0.0
    %954 = vmatpush2.msra.mxu0 0.0
    %955 = vmatprep.subr.mxu0 0.0
    %956 = vmatpush2.msra.mxu0 0.0
    %957 = vmatprep.mubr.f32.mxu0 0.0
    %958 = vmatmul.mubr.f32.gmra.mxu0 %v891
    %v959 = vpop.f32.mrf.mxu0
    %v960 = vadd.f32 0.0, %v959
    %v961 = vpop.f32.mrf.mxu0
    %962 = vdwg.mxu0
    %v963 = vadd.f32 %v889, %v960
    %v964 = vxor.u32 %v963, 2147483648
    %v965 = vmul.f32 %v964, 1.442695
    %v966 = vpow.pop %v965
    %v967 = vadd.f32 %v966, 1.0
    %v968 = vrcp.pop %v967
    %v969 = vmul.f32 1.0, %v968
    %v970 = vtanh.pop %v963
    %972 = vrot.lane.b32.xlu0 %v888, 32
    %v973 = vpop.permute.xlu0 %972
    %v975 = vmul.f32 %v969, %v973
    %977 = vrot.lane.b32.xlu0 %v970, 64
    %v978 = vpop.permute.xlu0 %977
    %v980 = vmul.f32 %v969, %v978
    %982 = vrot.lane.b32.xlu0 %v980, 32
    %v983 = vpop.permute.xlu0 %982
    %v985 = vadd.f32 %v975, %v983
    %v986 = vtanh.pop %v985
    %988 = vrot.lane.b32.xlu0 %v986, 64
    %v989 = vpop.permute.xlu0 %988
    %v991 = vmul.f32 %v969, %v989
    %993 = vrot.lane.b32.xlu0 %v991, 32
    %v994 = vpop.permute.xlu0 %993
    %996 = vst.msk [vmem:[#allocation4] sm:$0x3] %vm187, %v994
    %998 = vrot.lane.b32.xlu0 %v985, 96
    %v999 = vpop.permute.xlu0 %998
    %1001 = vst.msk [vmem:[#allocation5] sm:$0x3] %vm187, %v999
    %1002 = vst.msk [vmem:[#allocation2 + $0xc] sm:$0x3] %vm187, %v994
    %v1003 = vld [vmem:[#allocation4] sm:$0x3]
    %v1004 = vld [vmem:[#allocation5] sm:$0x3]
    %v1005 = vld [vmem:[#allocation3 + $0xe] sm:$0x3]
    %v1007 = vsel %vm193, %v1003, 0
    %1009 = vmatprep.subr.mxu0 0.0
    %1010 = vmatpush1.msra.mxu0 0.0
    %1011 = vmatprep.subr.mxu0 0.0
    %1012 = vmatpush1.msra.mxu0 0.0
    %1013 = vmatprep.subr.mxu0 0.0
    %1014 = vmatpush1.msra.mxu0 0.0
    %1015 = vmatprep.subr.mxu0 0.0
    %1016 = vmatpush1.msra.mxu0 0.0
    %1017 = vmatprep.subr.mxu0 0.0
    %1018 = vmatpush1.msra.mxu0 0.0
    %1019 = vmatprep.subr.mxu0 0.0
    %1020 = vmatpush1.msra.mxu0 0.0
    %1021 = vmatprep.subr.mxu0 0.0
    %1022 = vmatpush1.msra.mxu0 0.0
    %1023 = vmatprep.subr.mxu0 0.0
    %1024 = vmatpush1.msra.mxu0 0.0
    %1025 = vmatprep.subr.mxu0 0.0
    %1026 = vmatpush1.msra.mxu0 0.0
    %1027 = vmatprep.subr.mxu0 0.0
    %1028 = vmatpush1.msra.mxu0 0.0
    %1029 = vmatprep.subr.mxu0 0.0
    %1030 = vmatpush1.msra.mxu0 0.0
    %1031 = vmatprep.subr.mxu0 0.0
    %1032 = vmatpush1.msra.mxu0 0.0
    %1033 = vmatprep.subr.mxu0 0.0
    %1034 = vmatpush1.msra.mxu0 %v93
    %1035 = vmatprep.subr.mxu0 0.0
    %1036 = vmatpush1.msra.mxu0 %v92
    %1037 = vmatprep.subr.mxu0 0.0
    %1038 = vmatpush1.msra.mxu0 %v91
    %1039 = vmatprep.subr.mxu0 0.0
    %1040 = vmatpush1.msra.mxu0 %v90
    %1041 = vmatprep.subr.mxu0 0.0
    %1042 = vmatpush2.msra.mxu0 0.0
    %1043 = vmatprep.subr.mxu0 0.0
    %1044 = vmatpush2.msra.mxu0 0.0
    %1045 = vmatprep.subr.mxu0 0.0
    %1046 = vmatpush2.msra.mxu0 0.0
    %1047 = vmatprep.subr.mxu0 0.0
    %1048 = vmatpush2.msra.mxu0 0.0
    %1049 = vmatprep.subr.mxu0 0.0
    %1050 = vmatpush2.msra.mxu0 0.0
    %1051 = vmatprep.subr.mxu0 0.0
    %1052 = vmatpush2.msra.mxu0 0.0
    %1053 = vmatprep.subr.mxu0 0.0
    %1054 = vmatpush2.msra.mxu0 0.0
    %1055 = vmatprep.subr.mxu0 0.0
    %1056 = vmatpush2.msra.mxu0 0.0
    %1057 = vmatprep.subr.mxu0 0.0
    %1058 = vmatpush2.msra.mxu0 0.0
    %1059 = vmatprep.subr.mxu0 0.0
    %1060 = vmatpush2.msra.mxu0 0.0
    %1061 = vmatprep.subr.mxu0 0.0
    %1062 = vmatpush2.msra.mxu0 0.0
    %1063 = vmatprep.subr.mxu0 0.0
    %1064 = vmatpush2.msra.mxu0 0.0
    %1065 = vmatprep.subr.mxu0 0.0
    %1066 = vmatpush2.msra.mxu0 0.0
    %1067 = vmatprep.subr.mxu0 0.0
    %1068 = vmatpush2.msra.mxu0 0.0
    %1069 = vmatprep.subr.mxu0 0.0
    %1070 = vmatpush2.msra.mxu0 0.0
    %1071 = vmatprep.subr.mxu0 0.0
    %1072 = vmatpush2.msra.mxu0 0.0
    %1073 = vmatprep.mubr.f32.mxu0 0.0
    %1074 = vmatmul.mubr.f32.gmra.mxu0 %v1007
    %v1075 = vpop.f32.mrf.mxu0
    %v1076 = vadd.f32 0.0, %v1075
    %v1077 = vpop.f32.mrf.mxu0
    %1078 = vdwg.mxu0
    %v1079 = vadd.f32 %v1005, %v1076
    %v1080 = vxor.u32 %v1079, 2147483648
    %v1081 = vmul.f32 %v1080, 1.442695
    %v1082 = vpow.pop %v1081
    %v1083 = vadd.f32 %v1082, 1.0
    %v1084 = vrcp.pop %v1083
    %v1085 = vmul.f32 1.0, %v1084
    %v1086 = vtanh.pop %v1079
    %1088 = vrot.lane.b32.xlu0 %v1004, 32
    %v1089 = vpop.permute.xlu0 %1088
    %v1091 = vmul.f32 %v1085, %v1089
    %1093 = vrot.lane.b32.xlu0 %v1086, 64
    %v1094 = vpop.permute.xlu0 %1093
    %v1096 = vmul.f32 %v1085, %v1094
    %1098 = vrot.lane.b32.xlu0 %v1096, 32
    %v1099 = vpop.permute.xlu0 %1098
    %v1101 = vadd.f32 %v1091, %v1099
    %v1102 = vtanh.pop %v1101
    %1104 = vrot.lane.b32.xlu0 %v1102, 64
    %v1105 = vpop.permute.xlu0 %1104
    %v1107 = vmul.f32 %v1085, %v1105
    %1109 = vrot.lane.b32.xlu0 %v1107, 32
    %v1110 = vpop.permute.xlu0 %1109
    %1112 = vst.msk [vmem:[#allocation4] sm:$0x3] %vm187, %v1110
    %1114 = vrot.lane.b32.xlu0 %v1101, 96
    %v1115 = vpop.permute.xlu0 %1114
    %1117 = vst.msk [vmem:[#allocation5] sm:$0x3] %vm187, %v1115
    %1118 = vst.msk [vmem:[#allocation2 + $0xe] sm:$0x3] %vm187, %v1110
    %v1119 = vld [vmem:[#allocation11] sm:$0xff]
    %v1120 = vld [vmem:[#allocation11 + $0x8] sm:$0xff]
    %v1121 = vld [vmem:[#allocation11 + $0x10] sm:$0xff]
    %v1122 = vld [vmem:[#allocation11 + $0x18] sm:$0xff]
    %v1123 = vld [vmem:[#allocation12] sm:$0xff]
    %v1124 = vld [vmem:[#allocation12 + $0x8] sm:$0xff]
    %v1125 = vld [vmem:[#allocation12 + $0x10] sm:$0xff]
    %v1126 = vld [vmem:[#allocation12 + $0x18] sm:$0xff]
    %v1127 = vld [vmem:[%s6] sm:$0x1]
    %v1128 = vld [vmem:[#allocation2] sm:$0xff]
    %v1129 = vld [vmem:[#allocation2 + $0x8] sm:$0xff]
    %v1131 = vlaneseq
    %v1132 = vshrl.u32 %v1131, 7
    %v1133 = vsub.s32 0, %v1132
    %v1134 = vrot.slane %v1127, %v1133
    %v1137 = vsel %vm193, %v1128, 0
    %v1140 = vsel %vm193, %v1129, 0
    %1142 = vmatprep.subr.mxu0 0.0
    %1143 = vmatpush1.msra.mxu0 0.0
    %1144 = vmatprep.subr.mxu0 0.0
    %1145 = vmatpush1.msra.mxu0 0.0
    %1146 = vmatprep.subr.mxu0 0.0
    %1147 = vmatpush1.msra.mxu0 0.0
    %1148 = vmatprep.subr.mxu0 0.0
    %1149 = vmatpush1.msra.mxu0 0.0
    %1150 = vmatprep.subr.mxu0 0.0
    %1151 = vmatpush1.msra.mxu0 0.0
    %1152 = vmatprep.subr.mxu0 0.0
    %1153 = vmatpush1.msra.mxu0 0.0
    %1154 = vmatprep.subr.mxu0 0.0
    %1155 = vmatpush1.msra.mxu0 0.0
    %1156 = vmatprep.subr.mxu0 0.0
    %1157 = vmatpush1.msra.mxu0 0.0
    %1158 = vmatprep.subr.mxu0 0.0
    %1159 = vmatpush1.msra.mxu0 0.0
    %1160 = vmatprep.subr.mxu0 0.0
    %1161 = vmatpush1.msra.mxu0 0.0
    %1162 = vmatprep.subr.mxu0 0.0
    %1163 = vmatpush1.msra.mxu0 0.0
    %1164 = vmatprep.subr.mxu0 0.0
    %1165 = vmatpush1.msra.mxu0 0.0
    %1166 = vmatprep.subr.mxu0 0.0
    %1167 = vmatpush1.msra.mxu0 %v1122
    %1168 = vmatprep.subr.mxu0 0.0
    %1169 = vmatpush1.msra.mxu0 %v1121
    %1170 = vmatprep.subr.mxu0 0.0
    %1171 = vmatpush1.msra.mxu0 %v1120
    %1172 = vmatprep.subr.mxu0 0.0
    %1173 = vmatpush1.msra.mxu0 %v1119
    %1174 = vmatprep.subr.mxu0 0.0
    %1175 = vmatpush2.msra.mxu0 0.0
    %1176 = vmatprep.subr.mxu0 0.0
    %1177 = vmatpush2.msra.mxu0 0.0
    %1178 = vmatprep.subr.mxu0 0.0
    %1179 = vmatpush2.msra.mxu0 0.0
    %1180 = vmatprep.subr.mxu0 0.0
    %1181 = vmatpush2.msra.mxu0 0.0
    %1182 = vmatprep.subr.mxu0 0.0
    %1183 = vmatpush2.msra.mxu0 0.0
    %1184 = vmatprep.subr.mxu0 0.0
    %1185 = vmatpush2.msra.mxu0 0.0
    %1186 = vmatprep.subr.mxu0 0.0
    %1187 = vmatpush2.msra.mxu0 0.0
    %1188 = vmatprep.subr.mxu0 0.0
    %1189 = vmatpush2.msra.mxu0 0.0
    %1190 = vmatprep.subr.mxu0 0.0
    %1191 = vmatpush2.msra.mxu0 0.0
    %1192 = vmatprep.subr.mxu0 0.0
    %1193 = vmatpush2.msra.mxu0 0.0
    %1194 = vmatprep.subr.mxu0 0.0
    %1195 = vmatpush2.msra.mxu0 0.0
    %1196 = vmatprep.subr.mxu0 0.0
    %1197 = vmatpush2.msra.mxu0 0.0
    %1198 = vmatprep.subr.mxu0 0.0
    %1199 = vmatpush2.msra.mxu0 0.0
    %1200 = vmatprep.subr.mxu0 0.0
    %1201 = vmatpush2.msra.mxu0 0.0
    %1202 = vmatprep.subr.mxu0 0.0
    %1203 = vmatpush2.msra.mxu0 0.0
    %1204 = vmatprep.subr.mxu0 0.0
    %1205 = vmatpush2.msra.mxu0 0.0
    %1206 = vmatprep.mubr.f32.mxu0 0.0
    %1207 = vmatmul.mubr.f32.gmra.mxu0 %v1137
    %v1208 = vpop.f32.mrf.mxu0
    %v1209 = vadd.f32 %v1134, %v1208
    %v1210 = vpop.f32.mrf.mxu0
    %1211 = vmatprep.mubr.f32.mxu0 0.0
    %1212 = vmatmul.mubr.f32.gmra.mxu0 %v1140
    %v1213 = vpop.f32.mrf.mxu0
    %v1214 = vadd.f32 %v1134, %v1213
    %v1215 = vpop.f32.mrf.mxu0
    %1216 = vdwg.mxu0
    %1217 = vst [vmem:[#allocation3] sm:$0xff] %v1209
    %1218 = vst [vmem:[#allocation3 + $0x8] sm:$0xff] %v1214
    %1219 = vst.msk [vmem:[#allocation4] sm:$0x3] %vm187, 0.0
    %1220 = vst.msk [vmem:[#allocation5] sm:$0x3] %vm187, 0.0
    %v1221 = vld [vmem:[#allocation4] sm:$0x3]
    %v1222 = vld [vmem:[#allocation5] sm:$0x3]
    %v1223 = vld [vmem:[#allocation3] sm:$0x3]
    %v1225 = vsel %vm193, %v1221, 0
    %1227 = vmatprep.subr.mxu0 0.0
    %1228 = vmatpush1.msra.mxu0 0.0
    %1229 = vmatprep.subr.mxu0 0.0
    %1230 = vmatpush1.msra.mxu0 0.0
    %1231 = vmatprep.subr.mxu0 0.0
    %1232 = vmatpush1.msra.mxu0 0.0
    %1233 = vmatprep.subr.mxu0 0.0
    %1234 = vmatpush1.msra.mxu0 0.0
    %1235 = vmatprep.subr.mxu0 0.0
    %1236 = vmatpush1.msra.mxu0 0.0
    %1237 = vmatprep.subr.mxu0 0.0
    %1238 = vmatpush1.msra.mxu0 0.0
    %1239 = vmatprep.subr.mxu0 0.0
    %1240 = vmatpush1.msra.mxu0 0.0
    %1241 = vmatprep.subr.mxu0 0.0
    %1242 = vmatpush1.msra.mxu0 0.0
    %1243 = vmatprep.subr.mxu0 0.0
    %1244 = vmatpush1.msra.mxu0 0.0
    %1245 = vmatprep.subr.mxu0 0.0
    %1246 = vmatpush1.msra.mxu0 0.0
    %1247 = vmatprep.subr.mxu0 0.0
    %1248 = vmatpush1.msra.mxu0 0.0
    %1249 = vmatprep.subr.mxu0 0.0
    %1250 = vmatpush1.msra.mxu0 0.0
    %1251 = vmatprep.subr.mxu0 0.0
    %1252 = vmatpush1.msra.mxu0 %v1126
    %1253 = vmatprep.subr.mxu0 0.0
    %1254 = vmatpush1.msra.mxu0 %v1125
    %1255 = vmatprep.subr.mxu0 0.0
    %1256 = vmatpush1.msra.mxu0 %v1124
    %1257 = vmatprep.subr.mxu0 0.0
    %1258 = vmatpush1.msra.mxu0 %v1123
    %1259 = vmatprep.subr.mxu0 0.0
    %1260 = vmatpush2.msra.mxu0 0.0
    %1261 = vmatprep.subr.mxu0 0.0
    %1262 = vmatpush2.msra.mxu0 0.0
    %1263 = vmatprep.subr.mxu0 0.0
    %1264 = vmatpush2.msra.mxu0 0.0
    %1265 = vmatprep.subr.mxu0 0.0
    %1266 = vmatpush2.msra.mxu0 0.0
    %1267 = vmatprep.subr.mxu0 0.0
    %1268 = vmatpush2.msra.mxu0 0.0
    %1269 = vmatprep.subr.mxu0 0.0
    %1270 = vmatpush2.msra.mxu0 0.0
    %1271 = vmatprep.subr.mxu0 0.0
    %1272 = vmatpush2.msra.mxu0 0.0
    %1273 = vmatprep.subr.mxu0 0.0
    %1274 = vmatpush2.msra.mxu0 0.0
    %1275 = vmatprep.subr.mxu0 0.0
    %1276 = vmatpush2.msra.mxu0 0.0
    %1277 = vmatprep.subr.mxu0 0.0
    %1278 = vmatpush2.msra.mxu0 0.0
    %1279 = vmatprep.subr.mxu0 0.0
    %1280 = vmatpush2.msra.mxu0 0.0
    %1281 = vmatprep.subr.mxu0 0.0
    %1282 = vmatpush2.msra.mxu0 0.0
    %1283 = vmatprep.subr.mxu0 0.0
    %1284 = vmatpush2.msra.mxu0 0.0
    %1285 = vmatprep.subr.mxu0 0.0
    %1286 = vmatpush2.msra.mxu0 0.0
    %1287 = vmatprep.subr.mxu0 0.0
    %1288 = vmatpush2.msra.mxu0 0.0
    %1289 = vmatprep.subr.mxu0 0.0
    %1290 = vmatpush2.msra.mxu0 0.0
    %1291 = vmatprep.mubr.f32.mxu0 0.0
    %1292 = vmatmul.mubr.f32.gmra.mxu0 %v1225
    %v1293 = vpop.f32.mrf.mxu0
    %v1294 = vadd.f32 0.0, %v1293
    %v1295 = vpop.f32.mrf.mxu0
    %1296 = vdwg.mxu0
    %v1297 = vadd.f32 %v1223, %v1294
    %v1298 = vxor.u32 %v1297, 2147483648
    %v1299 = vmul.f32 %v1298, 1.442695
    %v1300 = vpow.pop %v1299
    %v1301 = vadd.f32 %v1300, 1.0
    %v1302 = vrcp.pop %v1301
    %v1303 = vmul.f32 1.0, %v1302
    %v1304 = vtanh.pop %v1297
    %1306 = vrot.lane.b32.xlu0 %v1222, 32
    %v1307 = vpop.permute.xlu0 %1306
    %v1309 = vmul.f32 %v1303, %v1307
    %1311 = vrot.lane.b32.xlu0 %v1304, 64
    %v1312 = vpop.permute.xlu0 %1311
    %v1314 = vmul.f32 %v1303, %v1312
    %1316 = vrot.lane.b32.xlu0 %v1314, 32
    %v1317 = vpop.permute.xlu0 %1316
    %v1319 = vadd.f32 %v1309, %v1317
    %v1320 = vtanh.pop %v1319
    %1322 = vrot.lane.b32.xlu0 %v1320, 64
    %v1323 = vpop.permute.xlu0 %1322
    %v1325 = vmul.f32 %v1303, %v1323
    %1327 = vrot.lane.b32.xlu0 %v1325, 32
    %v1328 = vpop.permute.xlu0 %1327
    %1330 = vst.msk [vmem:[#allocation4] sm:$0x3] %vm187, %v1328
    %1332 = vrot.lane.b32.xlu0 %v1319, 96
    %v1333 = vpop.permute.xlu0 %1332
    %1335 = vst.msk [vmem:[#allocation5] sm:$0x3] %vm187, %v1333
    %v1336 = vld [vmem:[#allocation4] sm:$0x3]
    %v1337 = vld [vmem:[#allocation5] sm:$0x3]
    %v1338 = vld [vmem:[#allocation3 + $0x2] sm:$0x3]
    %v1340 = vsel %vm193, %v1336, 0
    %1342 = vmatprep.subr.mxu0 0.0
    %1343 = vmatpush1.msra.mxu0 0.0
    %1344 = vmatprep.subr.mxu0 0.0
    %1345 = vmatpush1.msra.mxu0 0.0
    %1346 = vmatprep.subr.mxu0 0.0
    %1347 = vmatpush1.msra.mxu0 0.0
    %1348 = vmatprep.subr.mxu0 0.0
    %1349 = vmatpush1.msra.mxu0 0.0
    %1350 = vmatprep.subr.mxu0 0.0
    %1351 = vmatpush1.msra.mxu0 0.0
    %1352 = vmatprep.subr.mxu0 0.0
    %1353 = vmatpush1.msra.mxu0 0.0
    %1354 = vmatprep.subr.mxu0 0.0
    %1355 = vmatpush1.msra.mxu0 0.0
    %1356 = vmatprep.subr.mxu0 0.0
    %1357 = vmatpush1.msra.mxu0 0.0
    %1358 = vmatprep.subr.mxu0 0.0
    %1359 = vmatpush1.msra.mxu0 0.0
    %1360 = vmatprep.subr.mxu0 0.0
    %1361 = vmatpush1.msra.mxu0 0.0
    %1362 = vmatprep.subr.mxu0 0.0
    %1363 = vmatpush1.msra.mxu0 0.0
    %1364 = vmatprep.subr.mxu0 0.0
    %1365 = vmatpush1.msra.mxu0 0.0
    %1366 = vmatprep.subr.mxu0 0.0
    %1367 = vmatpush1.msra.mxu0 %v1126
    %1368 = vmatprep.subr.mxu0 0.0
    %1369 = vmatpush1.msra.mxu0 %v1125
    %1370 = vmatprep.subr.mxu0 0.0
    %1371 = vmatpush1.msra.mxu0 %v1124
    %1372 = vmatprep.subr.mxu0 0.0
    %1373 = vmatpush1.msra.mxu0 %v1123
    %1374 = vmatprep.subr.mxu0 0.0
    %1375 = vmatpush2.msra.mxu0 0.0
    %1376 = vmatprep.subr.mxu0 0.0
    %1377 = vmatpush2.msra.mxu0 0.0
    %1378 = vmatprep.subr.mxu0 0.0
    %1379 = vmatpush2.msra.mxu0 0.0
    %1380 = vmatprep.subr.mxu0 0.0
    %1381 = vmatpush2.msra.mxu0 0.0
    %1382 = vmatprep.subr.mxu0 0.0
    %1383 = vmatpush2.msra.mxu0 0.0
    %1384 = vmatprep.subr.mxu0 0.0
    %1385 = vmatpush2.msra.mxu0 0.0
    %1386 = vmatprep.subr.mxu0 0.0
    %1387 = vmatpush2.msra.mxu0 0.0
    %1388 = vmatprep.subr.mxu0 0.0
    %1389 = vmatpush2.msra.mxu0 0.0
    %1390 = vmatprep.subr.mxu0 0.0
    %1391 = vmatpush2.msra.mxu0 0.0
    %1392 = vmatprep.subr.mxu0 0.0
    %1393 = vmatpush2.msra.mxu0 0.0
    %1394 = vmatprep.subr.mxu0 0.0
    %1395 = vmatpush2.msra.mxu0 0.0
    %1396 = vmatprep.subr.mxu0 0.0
    %1397 = vmatpush2.msra.mxu0 0.0
    %1398 = vmatprep.subr.mxu0 0.0
    %1399 = vmatpush2.msra.mxu0 0.0
    %1400 = vmatprep.subr.mxu0 0.0
    %1401 = vmatpush2.msra.mxu0 0.0
    %1402 = vmatprep.subr.mxu0 0.0
    %1403 = vmatpush2.msra.mxu0 0.0
    %1404 = vmatprep.subr.mxu0 0.0
    %1405 = vmatpush2.msra.mxu0 0.0
    %1406 = vmatprep.mubr.f32.mxu0 0.0
    %1407 = vmatmul.mubr.f32.gmra.mxu0 %v1340
    %v1408 = vpop.f32.mrf.mxu0
    %v1409 = vadd.f32 0.0, %v1408
    %v1410 = vpop.f32.mrf.mxu0
    %1411 = vdwg.mxu0
    %v1412 = vadd.f32 %v1338, %v1409
    %v1413 = vxor.u32 %v1412, 2147483648
    %v1414 = vmul.f32 %v1413, 1.442695
    %v1415 = vpow.pop %v1414
    %v1416 = vadd.f32 %v1415, 1.0
    %v1417 = vrcp.pop %v1416
    %v1418 = vmul.f32 1.0, %v1417
    %v1419 = vtanh.pop %v1412
    %1421 = vrot.lane.b32.xlu0 %v1337, 32
    %v1422 = vpop.permute.xlu0 %1421
    %v1424 = vmul.f32 %v1418, %v1422
    %1426 = vrot.lane.b32.xlu0 %v1419, 64
    %v1427 = vpop.permute.xlu0 %1426
    %v1429 = vmul.f32 %v1418, %v1427
    %1431 = vrot.lane.b32.xlu0 %v1429, 32
    %v1432 = vpop.permute.xlu0 %1431
    %v1434 = vadd.f32 %v1424, %v1432
    %v1435 = vtanh.pop %v1434
    %1437 = vrot.lane.b32.xlu0 %v1435, 64
    %v1438 = vpop.permute.xlu0 %1437
    %v1440 = vmul.f32 %v1418, %v1438
    %1442 = vrot.lane.b32.xlu0 %v1440, 32
    %v1443 = vpop.permute.xlu0 %1442
    %1445 = vst.msk [vmem:[#allocation4] sm:$0x3] %vm187, %v1443
    %1447 = vrot.lane.b32.xlu0 %v1434, 96
    %v1448 = vpop.permute.xlu0 %1447
    %1450 = vst.msk [vmem:[#allocation5] sm:$0x3] %vm187, %v1448
    %v1451 = vld [vmem:[#allocation4] sm:$0x3]
    %v1452 = vld [vmem:[#allocation5] sm:$0x3]
    %v1453 = vld [vmem:[#allocation3 + $0x4] sm:$0x3]
    %v1455 = vsel %vm193, %v1451, 0
    %1457 = vmatprep.subr.mxu0 0.0
    %1458 = vmatpush1.msra.mxu0 0.0
    %1459 = vmatprep.subr.mxu0 0.0
    %1460 = vmatpush1.msra.mxu0 0.0
    %1461 = vmatprep.subr.mxu0 0.0
    %1462 = vmatpush1.msra.mxu0 0.0
    %1463 = vmatprep.subr.mxu0 0.0
    %1464 = vmatpush1.msra.mxu0 0.0
    %1465 = vmatprep.subr.mxu0 0.0
    %1466 = vmatpush1.msra.mxu0 0.0
    %1467 = vmatprep.subr.mxu0 0.0
    %1468 = vmatpush1.msra.mxu0 0.0
    %1469 = vmatprep.subr.mxu0 0.0
    %1470 = vmatpush1.msra.mxu0 0.0
    %1471 = vmatprep.subr.mxu0 0.0
    %1472 = vmatpush1.msra.mxu0 0.0
    %1473 = vmatprep.subr.mxu0 0.0
    %1474 = vmatpush1.msra.mxu0 0.0
    %1475 = vmatprep.subr.mxu0 0.0
    %1476 = vmatpush1.msra.mxu0 0.0
    %1477 = vmatprep.subr.mxu0 0.0
    %1478 = vmatpush1.msra.mxu0 0.0
    %1479 = vmatprep.subr.mxu0 0.0
    %1480 = vmatpush1.msra.mxu0 0.0
    %1481 = vmatprep.subr.mxu0 0.0
    %1482 = vmatpush1.msra.mxu0 %v1126
    %1483 = vmatprep.subr.mxu0 0.0
    %1484 = vmatpush1.msra.mxu0 %v1125
    %1485 = vmatprep.subr.mxu0 0.0
    %1486 = vmatpush1.msra.mxu0 %v1124
    %1487 = vmatprep.subr.mxu0 0.0
    %1488 = vmatpush1.msra.mxu0 %v1123
    %1489 = vmatprep.subr.mxu0 0.0
    %1490 = vmatpush2.msra.mxu0 0.0
    %1491 = vmatprep.subr.mxu0 0.0
    %1492 = vmatpush2.msra.mxu0 0.0
    %1493 = vmatprep.subr.mxu0 0.0
    %1494 = vmatpush2.msra.mxu0 0.0
    %1495 = vmatprep.subr.mxu0 0.0
    %1496 = vmatpush2.msra.mxu0 0.0
    %1497 = vmatprep.subr.mxu0 0.0
    %1498 = vmatpush2.msra.mxu0 0.0
    %1499 = vmatprep.subr.mxu0 0.0
    %1500 = vmatpush2.msra.mxu0 0.0
    %1501 = vmatprep.subr.mxu0 0.0
    %1502 = vmatpush2.msra.mxu0 0.0
    %1503 = vmatprep.subr.mxu0 0.0
    %1504 = vmatpush2.msra.mxu0 0.0
    %1505 = vmatprep.subr.mxu0 0.0
    %1506 = vmatpush2.msra.mxu0 0.0
    %1507 = vmatprep.subr.mxu0 0.0
    %1508 = vmatpush2.msra.mxu0 0.0
    %1509 = vmatprep.subr.mxu0 0.0
    %1510 = vmatpush2.msra.mxu0 0.0
    %1511 = vmatprep.subr.mxu0 0.0
    %1512 = vmatpush2.msra.mxu0 0.0
    %1513 = vmatprep.subr.mxu0 0.0
    %1514 = vmatpush2.msra.mxu0 0.0
    %1515 = vmatprep.subr.mxu0 0.0
    %1516 = vmatpush2.msra.mxu0 0.0
    %1517 = vmatprep.subr.mxu0 0.0
    %1518 = vmatpush2.msra.mxu0 0.0
    %1519 = vmatprep.subr.mxu0 0.0
    %1520 = vmatpush2.msra.mxu0 0.0
    %1521 = vmatprep.mubr.f32.mxu0 0.0
    %1522 = vmatmul.mubr.f32.gmra.mxu0 %v1455
    %v1523 = vpop.f32.mrf.mxu0
    %v1524 = vadd.f32 0.0, %v1523
    %v1525 = vpop.f32.mrf.mxu0
    %1526 = vdwg.mxu0
    %v1527 = vadd.f32 %v1453, %v1524
    %v1528 = vxor.u32 %v1527, 2147483648
    %v1529 = vmul.f32 %v1528, 1.442695
    %v1530 = vpow.pop %v1529
    %v1531 = vadd.f32 %v1530, 1.0
    %v1532 = vrcp.pop %v1531
    %v1533 = vmul.f32 1.0, %v1532
    %v1534 = vtanh.pop %v1527
    %1536 = vrot.lane.b32.xlu0 %v1452, 32
    %v1537 = vpop.permute.xlu0 %1536
    %v1539 = vmul.f32 %v1533, %v1537
    %1541 = vrot.lane.b32.xlu0 %v1534, 64
    %v1542 = vpop.permute.xlu0 %1541
    %v1544 = vmul.f32 %v1533, %v1542
    %1546 = vrot.lane.b32.xlu0 %v1544, 32
    %v1547 = vpop.permute.xlu0 %1546
    %v1549 = vadd.f32 %v1539, %v1547
    %v1550 = vtanh.pop %v1549
    %1552 = vrot.lane.b32.xlu0 %v1550, 64
    %v1553 = vpop.permute.xlu0 %1552
    %v1555 = vmul.f32 %v1533, %v1553
    %1557 = vrot.lane.b32.xlu0 %v1555, 32
    %v1558 = vpop.permute.xlu0 %1557
    %1560 = vst.msk [vmem:[#allocation4] sm:$0x3] %vm187, %v1558
    %1562 = vrot.lane.b32.xlu0 %v1549, 96
    %v1563 = vpop.permute.xlu0 %1562
    %1565 = vst.msk [vmem:[#allocation5] sm:$0x3] %vm187, %v1563
    %v1566 = vld [vmem:[#allocation4] sm:$0x3]
    %v1567 = vld [vmem:[#allocation5] sm:$0x3]
    %v1568 = vld [vmem:[#allocation3 + $0x6] sm:$0x3]
    %v1570 = vsel %vm193, %v1566, 0
    %1572 = vmatprep.subr.mxu0 0.0
    %1573 = vmatpush1.msra.mxu0 0.0
    %1574 = vmatprep.subr.mxu0 0.0
    %1575 = vmatpush1.msra.mxu0 0.0
    %1576 = vmatprep.subr.mxu0 0.0
    %1577 = vmatpush1.msra.mxu0 0.0
    %1578 = vmatprep.subr.mxu0 0.0
    %1579 = vmatpush1.msra.mxu0 0.0
    %1580 = vmatprep.subr.mxu0 0.0
    %1581 = vmatpush1.msra.mxu0 0.0
    %1582 = vmatprep.subr.mxu0 0.0
    %1583 = vmatpush1.msra.mxu0 0.0
    %1584 = vmatprep.subr.mxu0 0.0
    %1585 = vmatpush1.msra.mxu0 0.0
    %1586 = vmatprep.subr.mxu0 0.0
    %1587 = vmatpush1.msra.mxu0 0.0
    %1588 = vmatprep.subr.mxu0 0.0
    %1589 = vmatpush1.msra.mxu0 0.0
    %1590 = vmatprep.subr.mxu0 0.0
    %1591 = vmatpush1.msra.mxu0 0.0
    %1592 = vmatprep.subr.mxu0 0.0
    %1593 = vmatpush1.msra.mxu0 0.0
    %1594 = vmatprep.subr.mxu0 0.0
    %1595 = vmatpush1.msra.mxu0 0.0
    %1596 = vmatprep.subr.mxu0 0.0
    %1597 = vmatpush1.msra.mxu0 %v1126
    %1598 = vmatprep.subr.mxu0 0.0
    %1599 = vmatpush1.msra.mxu0 %v1125
    %1600 = vmatprep.subr.mxu0 0.0
    %1601 = vmatpush1.msra.mxu0 %v1124
    %1602 = vmatprep.subr.mxu0 0.0
    %1603 = vmatpush1.msra.mxu0 %v1123
    %1604 = vmatprep.subr.mxu0 0.0
    %1605 = vmatpush2.msra.mxu0 0.0
    %1606 = vmatprep.subr.mxu0 0.0
    %1607 = vmatpush2.msra.mxu0 0.0
    %1608 = vmatprep.subr.mxu0 0.0
    %1609 = vmatpush2.msra.mxu0 0.0
    %1610 = vmatprep.subr.mxu0 0.0
    %1611 = vmatpush2.msra.mxu0 0.0
    %1612 = vmatprep.subr.mxu0 0.0
    %1613 = vmatpush2.msra.mxu0 0.0
    %1614 = vmatprep.subr.mxu0 0.0
    %1615 = vmatpush2.msra.mxu0 0.0
    %1616 = vmatprep.subr.mxu0 0.0
    %1617 = vmatpush2.msra.mxu0 0.0
    %1618 = vmatprep.subr.mxu0 0.0
    %1619 = vmatpush2.msra.mxu0 0.0
    %1620 = vmatprep.subr.mxu0 0.0
    %1621 = vmatpush2.msra.mxu0 0.0
    %1622 = vmatprep.subr.mxu0 0.0
    %1623 = vmatpush2.msra.mxu0 0.0
    %1624 = vmatprep.subr.mxu0 0.0
    %1625 = vmatpush2.msra.mxu0 0.0
    %1626 = vmatprep.subr.mxu0 0.0
    %1627 = vmatpush2.msra.mxu0 0.0
    %1628 = vmatprep.subr.mxu0 0.0
    %1629 = vmatpush2.msra.mxu0 0.0
    %1630 = vmatprep.subr.mxu0 0.0
    %1631 = vmatpush2.msra.mxu0 0.0
    %1632 = vmatprep.subr.mxu0 0.0
    %1633 = vmatpush2.msra.mxu0 0.0
    %1634 = vmatprep.subr.mxu0 0.0
    %1635 = vmatpush2.msra.mxu0 0.0
    %1636 = vmatprep.mubr.f32.mxu0 0.0
    %1637 = vmatmul.mubr.f32.gmra.mxu0 %v1570
    %v1638 = vpop.f32.mrf.mxu0
    %v1639 = vadd.f32 0.0, %v1638
    %v1640 = vpop.f32.mrf.mxu0
    %1641 = vdwg.mxu0
    %v1642 = vadd.f32 %v1568, %v1639
    %v1643 = vxor.u32 %v1642, 2147483648
    %v1644 = vmul.f32 %v1643, 1.442695
    %v1645 = vpow.pop %v1644
    %v1646 = vadd.f32 %v1645, 1.0
    %v1647 = vrcp.pop %v1646
    %v1648 = vmul.f32 1.0, %v1647
    %v1649 = vtanh.pop %v1642
    %1651 = vrot.lane.b32.xlu0 %v1567, 32
    %v1652 = vpop.permute.xlu0 %1651
    %v1654 = vmul.f32 %v1648, %v1652
    %1656 = vrot.lane.b32.xlu0 %v1649, 64
    %v1657 = vpop.permute.xlu0 %1656
    %v1659 = vmul.f32 %v1648, %v1657
    %1661 = vrot.lane.b32.xlu0 %v1659, 32
    %v1662 = vpop.permute.xlu0 %1661
    %v1664 = vadd.f32 %v1654, %v1662
    %v1665 = vtanh.pop %v1664
    %1667 = vrot.lane.b32.xlu0 %v1665, 64
    %v1668 = vpop.permute.xlu0 %1667
    %v1670 = vmul.f32 %v1648, %v1668
    %1672 = vrot.lane.b32.xlu0 %v1670, 32
    %v1673 = vpop.permute.xlu0 %1672
    %1675 = vst.msk [vmem:[#allocation4] sm:$0x3] %vm187, %v1673
    %1677 = vrot.lane.b32.xlu0 %v1664, 96
    %v1678 = vpop.permute.xlu0 %1677
    %1680 = vst.msk [vmem:[#allocation5] sm:$0x3] %vm187, %v1678
    %v1681 = vld [vmem:[#allocation4] sm:$0x3]
    %v1682 = vld [vmem:[#allocation5] sm:$0x3]
    %v1683 = vld [vmem:[#allocation3 + $0x8] sm:$0x3]
    %v1685 = vsel %vm193, %v1681, 0
    %1687 = vmatprep.subr.mxu0 0.0
    %1688 = vmatpush1.msra.mxu0 0.0
    %1689 = vmatprep.subr.mxu0 0.0
    %1690 = vmatpush1.msra.mxu0 0.0
    %1691 = vmatprep.subr.mxu0 0.0
    %1692 = vmatpush1.msra.mxu0 0.0
    %1693 = vmatprep.subr.mxu0 0.0
    %1694 = vmatpush1.msra.mxu0 0.0
    %1695 = vmatprep.subr.mxu0 0.0
    %1696 = vmatpush1.msra.mxu0 0.0
    %1697 = vmatprep.subr.mxu0 0.0
    %1698 = vmatpush1.msra.mxu0 0.0
    %1699 = vmatprep.subr.mxu0 0.0
    %1700 = vmatpush1.msra.mxu0 0.0
    %1701 = vmatprep.subr.mxu0 0.0
    %1702 = vmatpush1.msra.mxu0 0.0
    %1703 = vmatprep.subr.mxu0 0.0
    %1704 = vmatpush1.msra.mxu0 0.0
    %1705 = vmatprep.subr.mxu0 0.0
    %1706 = vmatpush1.msra.mxu0 0.0
    %1707 = vmatprep.subr.mxu0 0.0
    %1708 = vmatpush1.msra.mxu0 0.0
    %1709 = vmatprep.subr.mxu0 0.0
    %1710 = vmatpush1.msra.mxu0 0.0
    %1711 = vmatprep.subr.mxu0 0.0
    %1712 = vmatpush1.msra.mxu0 %v1126
    %1713 = vmatprep.subr.mxu0 0.0
    %1714 = vmatpush1.msra.mxu0 %v1125
    %1715 = vmatprep.subr.mxu0 0.0
    %1716 = vmatpush1.msra.mxu0 %v1124
    %1717 = vmatprep.subr.mxu0 0.0
    %1718 = vmatpush1.msra.mxu0 %v1123
    %1719 = vmatprep.subr.mxu0 0.0
    %1720 = vmatpush2.msra.mxu0 0.0
    %1721 = vmatprep.subr.mxu0 0.0
    %1722 = vmatpush2.msra.mxu0 0.0
    %1723 = vmatprep.subr.mxu0 0.0
    %1724 = vmatpush2.msra.mxu0 0.0
    %1725 = vmatprep.subr.mxu0 0.0
    %1726 = vmatpush2.msra.mxu0 0.0
    %1727 = vmatprep.subr.mxu0 0.0
    %1728 = vmatpush2.msra.mxu0 0.0
    %1729 = vmatprep.subr.mxu0 0.0
    %1730 = vmatpush2.msra.mxu0 0.0
    %1731 = vmatprep.subr.mxu0 0.0
    %1732 = vmatpush2.msra.mxu0 0.0
    %1733 = vmatprep.subr.mxu0 0.0
    %1734 = vmatpush2.msra.mxu0 0.0
    %1735 = vmatprep.subr.mxu0 0.0
    %1736 = vmatpush2.msra.mxu0 0.0
    %1737 = vmatprep.subr.mxu0 0.0
    %1738 = vmatpush2.msra.mxu0 0.0
    %1739 = vmatprep.subr.mxu0 0.0
    %1740 = vmatpush2.msra.mxu0 0.0
    %1741 = vmatprep.subr.mxu0 0.0
    %1742 = vmatpush2.msra.mxu0 0.0
    %1743 = vmatprep.subr.mxu0 0.0
    %1744 = vmatpush2.msra.mxu0 0.0
    %1745 = vmatprep.subr.mxu0 0.0
    %1746 = vmatpush2.msra.mxu0 0.0
    %1747 = vmatprep.subr.mxu0 0.0
    %1748 = vmatpush2.msra.mxu0 0.0
    %1749 = vmatprep.subr.mxu0 0.0
    %1750 = vmatpush2.msra.mxu0 0.0
    %1751 = vmatprep.mubr.f32.mxu0 0.0
    %1752 = vmatmul.mubr.f32.gmra.mxu0 %v1685
    %v1753 = vpop.f32.mrf.mxu0
    %v1754 = vadd.f32 0.0, %v1753
    %v1755 = vpop.f32.mrf.mxu0
    %1756 = vdwg.mxu0
    %v1757 = vadd.f32 %v1683, %v1754
    %v1758 = vxor.u32 %v1757, 2147483648
    %v1759 = vmul.f32 %v1758, 1.442695
    %v1760 = vpow.pop %v1759
    %v1761 = vadd.f32 %v1760, 1.0
    %v1762 = vrcp.pop %v1761
    %v1763 = vmul.f32 1.0, %v1762
    %v1764 = vtanh.pop %v1757
    %1766 = vrot.lane.b32.xlu0 %v1682, 32
    %v1767 = vpop.permute.xlu0 %1766
    %v1769 = vmul.f32 %v1763, %v1767
    %1771 = vrot.lane.b32.xlu0 %v1764, 64
    %v1772 = vpop.permute.xlu0 %1771
    %v1774 = vmul.f32 %v1763, %v1772
    %1776 = vrot.lane.b32.xlu0 %v1774, 32
    %v1777 = vpop.permute.xlu0 %1776
    %v1779 = vadd.f32 %v1769, %v1777
    %v1780 = vtanh.pop %v1779
    %1782 = vrot.lane.b32.xlu0 %v1780, 64
    %v1783 = vpop.permute.xlu0 %1782
    %v1785 = vmul.f32 %v1763, %v1783
    %1787 = vrot.lane.b32.xlu0 %v1785, 32
    %v1788 = vpop.permute.xlu0 %1787
    %1790 = vst.msk [vmem:[#allocation4] sm:$0x3] %vm187, %v1788
    %1792 = vrot.lane.b32.xlu0 %v1779, 96
    %v1793 = vpop.permute.xlu0 %1792
    %1795 = vst.msk [vmem:[#allocation5] sm:$0x3] %vm187, %v1793
    %v1796 = vld [vmem:[#allocation4] sm:$0x3]
    %v1797 = vld [vmem:[#allocation5] sm:$0x3]
    %v1798 = vld [vmem:[#allocation3 + $0xa] sm:$0x3]
    %v1800 = vsel %vm193, %v1796, 0
    %1802 = vmatprep.subr.mxu0 0.0
    %1803 = vmatpush1.msra.mxu0 0.0
    %1804 = vmatprep.subr.mxu0 0.0
    %1805 = vmatpush1.msra.mxu0 0.0
    %1806 = vmatprep.subr.mxu0 0.0
    %1807 = vmatpush1.msra.mxu0 0.0
    %1808 = vmatprep.subr.mxu0 0.0
    %1809 = vmatpush1.msra.mxu0 0.0
    %1810 = vmatprep.subr.mxu0 0.0
    %1811 = vmatpush1.msra.mxu0 0.0
    %1812 = vmatprep.subr.mxu0 0.0
    %1813 = vmatpush1.msra.mxu0 0.0
    %1814 = vmatprep.subr.mxu0 0.0
    %1815 = vmatpush1.msra.mxu0 0.0
    %1816 = vmatprep.subr.mxu0 0.0
    %1817 = vmatpush1.msra.mxu0 0.0
    %1818 = vmatprep.subr.mxu0 0.0
    %1819 = vmatpush1.msra.mxu0 0.0
    %1820 = vmatprep.subr.mxu0 0.0
    %1821 = vmatpush1.msra.mxu0 0.0
    %1822 = vmatprep.subr.mxu0 0.0
    %1823 = vmatpush1.msra.mxu0 0.0
    %1824 = vmatprep.subr.mxu0 0.0
    %1825 = vmatpush1.msra.mxu0 0.0
    %1826 = vmatprep.subr.mxu0 0.0
    %1827 = vmatpush1.msra.mxu0 %v1126
    %1828 = vmatprep.subr.mxu0 0.0
    %1829 = vmatpush1.msra.mxu0 %v1125
    %1830 = vmatprep.subr.mxu0 0.0
    %1831 = vmatpush1.msra.mxu0 %v1124
    %1832 = vmatprep.subr.mxu0 0.0
    %1833 = vmatpush1.msra.mxu0 %v1123
    %1834 = vmatprep.subr.mxu0 0.0
    %1835 = vmatpush2.msra.mxu0 0.0
    %1836 = vmatprep.subr.mxu0 0.0
    %1837 = vmatpush2.msra.mxu0 0.0
    %1838 = vmatprep.subr.mxu0 0.0
    %1839 = vmatpush2.msra.mxu0 0.0
    %1840 = vmatprep.subr.mxu0 0.0
    %1841 = vmatpush2.msra.mxu0 0.0
    %1842 = vmatprep.subr.mxu0 0.0
    %1843 = vmatpush2.msra.mxu0 0.0
    %1844 = vmatprep.subr.mxu0 0.0
    %1845 = vmatpush2.msra.mxu0 0.0
    %1846 = vmatprep.subr.mxu0 0.0
    %1847 = vmatpush2.msra.mxu0 0.0
    %1848 = vmatprep.subr.mxu0 0.0
    %1849 = vmatpush2.msra.mxu0 0.0
    %1850 = vmatprep.subr.mxu0 0.0
    %1851 = vmatpush2.msra.mxu0 0.0
    %1852 = vmatprep.subr.mxu0 0.0
    %1853 = vmatpush2.msra.mxu0 0.0
    %1854 = vmatprep.subr.mxu0 0.0
    %1855 = vmatpush2.msra.mxu0 0.0
    %1856 = vmatprep.subr.mxu0 0.0
    %1857 = vmatpush2.msra.mxu0 0.0
    %1858 = vmatprep.subr.mxu0 0.0
    %1859 = vmatpush2.msra.mxu0 0.0
    %1860 = vmatprep.subr.mxu0 0.0
    %1861 = vmatpush2.msra.mxu0 0.0
    %1862 = vmatprep.subr.mxu0 0.0
    %1863 = vmatpush2.msra.mxu0 0.0
    %1864 = vmatprep.subr.mxu0 0.0
    %1865 = vmatpush2.msra.mxu0 0.0
    %1866 = vmatprep.mubr.f32.mxu0 0.0
    %1867 = vmatmul.mubr.f32.gmra.mxu0 %v1800
    %v1868 = vpop.f32.mrf.mxu0
    %v1869 = vadd.f32 0.0, %v1868
    %v1870 = vpop.f32.mrf.mxu0
    %1871 = vdwg.mxu0
    %v1872 = vadd.f32 %v1798, %v1869
    %v1873 = vxor.u32 %v1872, 2147483648
    %v1874 = vmul.f32 %v1873, 1.442695
    %v1875 = vpow.pop %v1874
    %v1876 = vadd.f32 %v1875, 1.0
    %v1877 = vrcp.pop %v1876
    %v1878 = vmul.f32 1.0, %v1877
    %v1879 = vtanh.pop %v1872
    %1881 = vrot.lane.b32.xlu0 %v1797, 32
    %v1882 = vpop.permute.xlu0 %1881
    %v1884 = vmul.f32 %v1878, %v1882
    %1886 = vrot.lane.b32.xlu0 %v1879, 64
    %v1887 = vpop.permute.xlu0 %1886
    %v1889 = vmul.f32 %v1878, %v1887
    %1891 = vrot.lane.b32.xlu0 %v1889, 32
    %v1892 = vpop.permute.xlu0 %1891
    %v1894 = vadd.f32 %v1884, %v1892
    %v1895 = vtanh.pop %v1894
    %1897 = vrot.lane.b32.xlu0 %v1895, 64
    %v1898 = vpop.permute.xlu0 %1897
    %v1900 = vmul.f32 %v1878, %v1898
    %1902 = vrot.lane.b32.xlu0 %v1900, 32
    %v1903 = vpop.permute.xlu0 %1902
    %1905 = vst.msk [vmem:[#allocation4] sm:$0x3] %vm187, %v1903
    %1907 = vrot.lane.b32.xlu0 %v1894, 96
    %v1908 = vpop.permute.xlu0 %1907
    %1910 = vst.msk [vmem:[#allocation5] sm:$0x3] %vm187, %v1908
    %v1911 = vld [vmem:[#allocation4] sm:$0x3]
    %v1912 = vld [vmem:[#allocation5] sm:$0x3]
    %v1913 = vld [vmem:[#allocation3 + $0xc] sm:$0x3]
    %v1915 = vsel %vm193, %v1911, 0
    %1917 = vmatprep.subr.mxu0 0.0
    %1918 = vmatpush1.msra.mxu0 0.0
    %1919 = vmatprep.subr.mxu0 0.0
    %1920 = vmatpush1.msra.mxu0 0.0
    %1921 = vmatprep.subr.mxu0 0.0
    %1922 = vmatpush1.msra.mxu0 0.0
    %1923 = vmatprep.subr.mxu0 0.0
    %1924 = vmatpush1.msra.mxu0 0.0
    %1925 = vmatprep.subr.mxu0 0.0
    %1926 = vmatpush1.msra.mxu0 0.0
    %1927 = vmatprep.subr.mxu0 0.0
    %1928 = vmatpush1.msra.mxu0 0.0
    %1929 = vmatprep.subr.mxu0 0.0
    %1930 = vmatpush1.msra.mxu0 0.0
    %1931 = vmatprep.subr.mxu0 0.0
    %1932 = vmatpush1.msra.mxu0 0.0
    %1933 = vmatprep.subr.mxu0 0.0
    %1934 = vmatpush1.msra.mxu0 0.0
    %1935 = vmatprep.subr.mxu0 0.0
    %1936 = vmatpush1.msra.mxu0 0.0
    %1937 = vmatprep.subr.mxu0 0.0
    %1938 = vmatpush1.msra.mxu0 0.0
    %1939 = vmatprep.subr.mxu0 0.0
    %1940 = vmatpush1.msra.mxu0 0.0
    %1941 = vmatprep.subr.mxu0 0.0
    %1942 = vmatpush1.msra.mxu0 %v1126
    %1943 = vmatprep.subr.mxu0 0.0
    %1944 = vmatpush1.msra.mxu0 %v1125
    %1945 = vmatprep.subr.mxu0 0.0
    %1946 = vmatpush1.msra.mxu0 %v1124
    %1947 = vmatprep.subr.mxu0 0.0
    %1948 = vmatpush1.msra.mxu0 %v1123
    %1949 = vmatprep.subr.mxu0 0.0
    %1950 = vmatpush2.msra.mxu0 0.0
    %1951 = vmatprep.subr.mxu0 0.0
    %1952 = vmatpush2.msra.mxu0 0.0
    %1953 = vmatprep.subr.mxu0 0.0
    %1954 = vmatpush2.msra.mxu0 0.0
    %1955 = vmatprep.subr.mxu0 0.0
    %1956 = vmatpush2.msra.mxu0 0.0
    %1957 = vmatprep.subr.mxu0 0.0
    %1958 = vmatpush2.msra.mxu0 0.0
    %1959 = vmatprep.subr.mxu0 0.0
    %1960 = vmatpush2.msra.mxu0 0.0
    %1961 = vmatprep.subr.mxu0 0.0
    %1962 = vmatpush2.msra.mxu0 0.0
    %1963 = vmatprep.subr.mxu0 0.0
    %1964 = vmatpush2.msra.mxu0 0.0
    %1965 = vmatprep.subr.mxu0 0.0
    %1966 = vmatpush2.msra.mxu0 0.0
    %1967 = vmatprep.subr.mxu0 0.0
    %1968 = vmatpush2.msra.mxu0 0.0
    %1969 = vmatprep.subr.mxu0 0.0
    %1970 = vmatpush2.msra.mxu0 0.0
    %1971 = vmatprep.subr.mxu0 0.0
    %1972 = vmatpush2.msra.mxu0 0.0
    %1973 = vmatprep.subr.mxu0 0.0
    %1974 = vmatpush2.msra.mxu0 0.0
    %1975 = vmatprep.subr.mxu0 0.0
    %1976 = vmatpush2.msra.mxu0 0.0
    %1977 = vmatprep.subr.mxu0 0.0
    %1978 = vmatpush2.msra.mxu0 0.0
    %1979 = vmatprep.subr.mxu0 0.0
    %1980 = vmatpush2.msra.mxu0 0.0
    %1981 = vmatprep.mubr.f32.mxu0 0.0
    %1982 = vmatmul.mubr.f32.gmra.mxu0 %v1915
    %v1983 = vpop.f32.mrf.mxu0
    %v1984 = vadd.f32 0.0, %v1983
    %v1985 = vpop.f32.mrf.mxu0
    %1986 = vdwg.mxu0
    %v1987 = vadd.f32 %v1913, %v1984
    %v1988 = vxor.u32 %v1987, 2147483648
    %v1989 = vmul.f32 %v1988, 1.442695
    %v1990 = vpow.pop %v1989
    %v1991 = vadd.f32 %v1990, 1.0
    %v1992 = vrcp.pop %v1991
    %v1993 = vmul.f32 1.0, %v1992
    %v1994 = vtanh.pop %v1987
    %1996 = vrot.lane.b32.xlu0 %v1912, 32
    %v1997 = vpop.permute.xlu0 %1996
    %v1999 = vmul.f32 %v1993, %v1997
    %2001 = vrot.lane.b32.xlu0 %v1994, 64
    %v2002 = vpop.permute.xlu0 %2001
    %v2004 = vmul.f32 %v1993, %v2002
    %2006 = vrot.lane.b32.xlu0 %v2004, 32
    %v2007 = vpop.permute.xlu0 %2006
    %v2009 = vadd.f32 %v1999, %v2007
    %v2010 = vtanh.pop %v2009
    %2012 = vrot.lane.b32.xlu0 %v2010, 64
    %v2013 = vpop.permute.xlu0 %2012
    %v2015 = vmul.f32 %v1993, %v2013
    %2017 = vrot.lane.b32.xlu0 %v2015, 32
    %v2018 = vpop.permute.xlu0 %2017
    %2020 = vst.msk [vmem:[#allocation4] sm:$0x3] %vm187, %v2018
    %2022 = vrot.lane.b32.xlu0 %v2009, 96
    %v2023 = vpop.permute.xlu0 %2022
    %2025 = vst.msk [vmem:[#allocation5] sm:$0x3] %vm187, %v2023
    %v2026 = vld [vmem:[#allocation4] sm:$0x3]
    %v2027 = vld [vmem:[#allocation5] sm:$0x3]
    %v2028 = vld [vmem:[#allocation3 + $0xe] sm:$0x3]
    %v2030 = vsel %vm193, %v2026, 0
    %2032 = vmatprep.subr.mxu0 0.0
    %2033 = vmatpush1.msra.mxu0 0.0
    %2034 = vmatprep.subr.mxu0 0.0
    %2035 = vmatpush1.msra.mxu0 0.0
    %2036 = vmatprep.subr.mxu0 0.0
    %2037 = vmatpush1.msra.mxu0 0.0
    %2038 = vmatprep.subr.mxu0 0.0
    %2039 = vmatpush1.msra.mxu0 0.0
    %2040 = vmatprep.subr.mxu0 0.0
    %2041 = vmatpush1.msra.mxu0 0.0
    %2042 = vmatprep.subr.mxu0 0.0
    %2043 = vmatpush1.msra.mxu0 0.0
    %2044 = vmatprep.subr.mxu0 0.0
    %2045 = vmatpush1.msra.mxu0 0.0
    %2046 = vmatprep.subr.mxu0 0.0
    %2047 = vmatpush1.msra.mxu0 0.0
    %2048 = vmatprep.subr.mxu0 0.0
    %2049 = vmatpush1.msra.mxu0 0.0
    %2050 = vmatprep.subr.mxu0 0.0
    %2051 = vmatpush1.msra.mxu0 0.0
    %2052 = vmatprep.subr.mxu0 0.0
    %2053 = vmatpush1.msra.mxu0 0.0
    %2054 = vmatprep.subr.mxu0 0.0
    %2055 = vmatpush1.msra.mxu0 0.0
    %2056 = vmatprep.subr.mxu0 0.0
    %2057 = vmatpush1.msra.mxu0 %v1126
    %2058 = vmatprep.subr.mxu0 0.0
    %2059 = vmatpush1.msra.mxu0 %v1125
    %2060 = vmatprep.subr.mxu0 0.0
    %2061 = vmatpush1.msra.mxu0 %v1124
    %2062 = vmatprep.subr.mxu0 0.0
    %2063 = vmatpush1.msra.mxu0 %v1123
    %2064 = vmatprep.subr.mxu0 0.0
    %2065 = vmatpush2.msra.mxu0 0.0
    %2066 = vmatprep.subr.mxu0 0.0
    %2067 = vmatpush2.msra.mxu0 0.0
    %2068 = vmatprep.subr.mxu0 0.0
    %2069 = vmatpush2.msra.mxu0 0.0
    %2070 = vmatprep.subr.mxu0 0.0
    %2071 = vmatpush2.msra.mxu0 0.0
    %2072 = vmatprep.subr.mxu0 0.0
    %2073 = vmatpush2.msra.mxu0 0.0
    %2074 = vmatprep.subr.mxu0 0.0
    %2075 = vmatpush2.msra.mxu0 0.0
    %2076 = vmatprep.subr.mxu0 0.0
    %2077 = vmatpush2.msra.mxu0 0.0
    %2078 = vmatprep.subr.mxu0 0.0
    %2079 = vmatpush2.msra.mxu0 0.0
    %2080 = vmatprep.subr.mxu0 0.0
    %2081 = vmatpush2.msra.mxu0 0.0
    %2082 = vmatprep.subr.mxu0 0.0
    %2083 = vmatpush2.msra.mxu0 0.0
    %2084 = vmatprep.subr.mxu0 0.0
    %2085 = vmatpush2.msra.mxu0 0.0
    %2086 = vmatprep.subr.mxu0 0.0
    %2087 = vmatpush2.msra.mxu0 0.0
    %2088 = vmatprep.subr.mxu0 0.0
    %2089 = vmatpush2.msra.mxu0 0.0
    %2090 = vmatprep.subr.mxu0 0.0
    %2091 = vmatpush2.msra.mxu0 0.0
    %2092 = vmatprep.subr.mxu0 0.0
    %2093 = vmatpush2.msra.mxu0 0.0
    %2094 = vmatprep.subr.mxu0 0.0
    %2095 = vmatpush2.msra.mxu0 0.0
    %2096 = vmatprep.mubr.f32.mxu0 0.0
    %2097 = vmatmul.mubr.f32.gmra.mxu0 %v2030
    %v2098 = vpop.f32.mrf.mxu0
    %v2099 = vadd.f32 0.0, %v2098
    %v2100 = vpop.f32.mrf.mxu0
    %2101 = vdwg.mxu0
    %v2102 = vadd.f32 %v2028, %v2099
    %v2103 = vxor.u32 %v2102, 2147483648
    %v2104 = vmul.f32 %v2103, 1.442695
    %v2105 = vpow.pop %v2104
    %v2106 = vadd.f32 %v2105, 1.0
    %v2107 = vrcp.pop %v2106
    %v2108 = vmul.f32 1.0, %v2107
    %v2109 = vtanh.pop %v2102
    %2111 = vrot.lane.b32.xlu0 %v2027, 32
    %v2112 = vpop.permute.xlu0 %2111
    %v2114 = vmul.f32 %v2108, %v2112
    %2116 = vrot.lane.b32.xlu0 %v2109, 64
    %v2117 = vpop.permute.xlu0 %2116
    %v2119 = vmul.f32 %v2108, %v2117
    %2121 = vrot.lane.b32.xlu0 %v2119, 32
    %v2122 = vpop.permute.xlu0 %2121
    %v2124 = vadd.f32 %v2114, %v2122
    %v2125 = vtanh.pop %v2124
    %2127 = vrot.lane.b32.xlu0 %v2125, 64
    %v2128 = vpop.permute.xlu0 %2127
    %v2130 = vmul.f32 %v2108, %v2128
    %2132 = vrot.lane.b32.xlu0 %v2130, 32
    %v2133 = vpop.permute.xlu0 %2132
    %2135 = vst.msk [vmem:[#allocation4] sm:$0x3] %vm187, %v2133
    %2137 = vrot.lane.b32.xlu0 %v2124, 96
    %v2138 = vpop.permute.xlu0 %2137
    %2140 = vst.msk [vmem:[#allocation5] sm:$0x3] %vm187, %v2138
    %v2141 = vld [vmem:[#allocation4] sm:$0x3]
    %v2142 = vld [vmem:[%s7] sm:$0xff]
    %v2143 = vld [vmem:[%s7 + $0x8] sm:$0xff]
    %v2144 = vld [vmem:[%s7 + $0x10] sm:$0xff]
    %v2145 = vld [vmem:[%s7 + $0x18] sm:$0xff]
    %v2146 = vld [vmem:[%s8] sm:$0x1]
    %v2148 = vlaneseq
    %v2149 = vshrl.u32 %v2148, 7
    %v2150 = vsub.s32 0, %v2149
    %v2151 = vrot.slane %v2146, %v2150
    %v2154 = vsel %vm193, %v2141, 0
    %2156 = vmatprep.subr.mxu0 0.0
    %2157 = vmatpush1.msra.mxu0 0.0
    %2158 = vmatprep.subr.mxu0 0.0
    %2159 = vmatpush1.msra.mxu0 0.0
    %2160 = vmatprep.subr.mxu0 0.0
    %2161 = vmatpush1.msra.mxu0 0.0
    %2162 = vmatprep.subr.mxu0 0.0
    %2163 = vmatpush1.msra.mxu0 0.0
    %2164 = vmatprep.subr.mxu0 0.0
    %2165 = vmatpush1.msra.mxu0 0.0
    %2166 = vmatprep.subr.mxu0 0.0
    %2167 = vmatpush1.msra.mxu0 0.0
    %2168 = vmatprep.subr.mxu0 0.0
    %2169 = vmatpush1.msra.mxu0 0.0
    %2170 = vmatprep.subr.mxu0 0.0
    %2171 = vmatpush1.msra.mxu0 0.0
    %2172 = vmatprep.subr.mxu0 0.0
    %2173 = vmatpush1.msra.mxu0 0.0
    %2174 = vmatprep.subr.mxu0 0.0
    %2175 = vmatpush1.msra.mxu0 0.0
    %2176 = vmatprep.subr.mxu0 0.0
    %2177 = vmatpush1.msra.mxu0 0.0
    %2178 = vmatprep.subr.mxu0 0.0
    %2179 = vmatpush1.msra.mxu0 0.0
    %2180 = vmatprep.subr.mxu0 0.0
    %2181 = vmatpush1.msra.mxu0 %v2145
    %2182 = vmatprep.subr.mxu0 0.0
    %2183 = vmatpush1.msra.mxu0 %v2144
    %2184 = vmatprep.subr.mxu0 0.0
    %2185 = vmatpush1.msra.mxu0 %v2143
    %2186 = vmatprep.subr.mxu0 0.0
    %2187 = vmatpush1.msra.mxu0 %v2142
    %2188 = vmatprep.subr.mxu0 0.0
    %2189 = vmatpush2.msra.mxu0 0.0
    %2190 = vmatprep.subr.mxu0 0.0
    %2191 = vmatpush2.msra.mxu0 0.0
    %2192 = vmatprep.subr.mxu0 0.0
    %2193 = vmatpush2.msra.mxu0 0.0
    %2194 = vmatprep.subr.mxu0 0.0
    %2195 = vmatpush2.msra.mxu0 0.0
    %2196 = vmatprep.subr.mxu0 0.0
    %2197 = vmatpush2.msra.mxu0 0.0
    %2198 = vmatprep.subr.mxu0 0.0
    %2199 = vmatpush2.msra.mxu0 0.0
    %2200 = vmatprep.subr.mxu0 0.0
    %2201 = vmatpush2.msra.mxu0 0.0
    %2202 = vmatprep.subr.mxu0 0.0
    %2203 = vmatpush2.msra.mxu0 0.0
    %2204 = vmatprep.subr.mxu0 0.0
    %2205 = vmatpush2.msra.mxu0 0.0
    %2206 = vmatprep.subr.mxu0 0.0
    %2207 = vmatpush2.msra.mxu0 0.0
    %2208 = vmatprep.subr.mxu0 0.0
    %2209 = vmatpush2.msra.mxu0 0.0
    %2210 = vmatprep.subr.mxu0 0.0
    %2211 = vmatpush2.msra.mxu0 0.0
    %2212 = vmatprep.subr.mxu0 0.0
    %2213 = vmatpush2.msra.mxu0 0.0
    %2214 = vmatprep.subr.mxu0 0.0
    %2215 = vmatpush2.msra.mxu0 0.0
    %2216 = vmatprep.subr.mxu0 0.0
    %2217 = vmatpush2.msra.mxu0 0.0
    %2218 = vmatprep.subr.mxu0 0.0
    %2219 = vmatpush2.msra.mxu0 0.0
    %2220 = vmatprep.mubr.f32.mxu0 0.0
    %2221 = vmatmul.mubr.f32.gmra.mxu0 %v2154
    %v2222 = vpop.f32.mrf.mxu0
    %v2223 = vadd.f32 %v2151, %v2222
    %v2224 = vpop.f32.mrf.mxu0
    %2225 = vdwg.mxu0
    %vm2226 = vcmask 25600
    %2227 = vst.msk [vmem:[#allocation14] sm:$0x3] %vm2226, %v2223
    // Predicated region
    $region54: #{tpu_custom_call.1} parent=1 // pred_check
      _
    $region55: #{tpu_custom_call.1} parent=1 // pred_check_branch
      %2229 = sbr.rel (0) target = $region57
    $region56: #{tpu_custom_call.1} parent=1 // pred_region
      %s2231 = ssub.s32 32, 32
      %2232 = vsyncadd [#allocation8], %s2231
      %s2234 = sshll.u32 [#allocation14], 4
      %s2235 = int_to_ptr.vmem [resolvable:$true] %s2234
      %2237 = dma.vmem_to_hbm [thread:$0]  %s2235, 32, %s9, [#allocation8]
    $region57: #{tpu_custom_call.1} parent=1 // pred_fallthru
      _
    // Predicated region
    $region58: #{tpu_custom_call.1} parent=1 // pred_check
      _
    $region59: #{tpu_custom_call.1} parent=1 // pred_check_branch
      %2239 = sbr.rel (0) target = $region61
    $region60: #{tpu_custom_call.1} parent=1 // pred_region
      %2240 = dma.done [#allocation8], 32
    $region61: #{tpu_custom_call.1} parent=1 // pred_fallthru
      _
    %2241 = vsyncpa [#allocation7], 1
    %2242 = vsyncpa [#allocation10], 1
    %2243 = vsyncpa [#allocation13], 1
    %2244 = vsyncpa [#allocation8], 1

</llo_original>
